<compile_context>
chip_gen: v7x
topology: tpu7x:2x2x1
jax: 0.10.0
libtpu: 0.0.40
codegen_flags: <defaults>
</compile_context>

<pallas_src>
import functools

import jax
import jax.numpy as jnp
from jax.experimental import pallas as pl
from jax.experimental.pallas import tpu as pltpu

PATCH = 32  # stand-in backbone downsamples by 32x, like ResNeXt-50


# ----------------------------- helpers ----------------------------------- #

def _im2col(x4d, patch=PATCH):
    """(N, Cin, H, W) -> (N*Hp*Wp, Cin*patch*patch) patches (plain JAX glue).

    Call with a bf16 x4d so the materialized patch buffer is bf16.
    TODO(synk): fully folding the patch extraction into the conv kernel via a
    BlockSpec index_map over (frame, Hp, Wp) would remove this buffer too.
    """
    N, Cin, H, W = x4d.shape
    Hp, Wp = H // patch, W // patch
    p = (x4d.reshape(N, Cin, Hp, patch, Wp, patch)
             .transpose(0, 2, 4, 1, 3, 5)
             .reshape(N * Hp * Wp, Cin * patch * patch))
    return p, Hp, Wp


def _vmem_capacity_bytes():
    """Per-TensorCore VMEM capacity (generation-aware tiling / vmem limits)."""
    try:
        return int(pltpu.get_tpu_info().vmem_capacity_bytes)
    except Exception:
        return 64 << 20  # conservative (v7x per-core capacity)


def _choose_fn(N, S, row_cap):
    """Frame-tile size: divisor of N, rows multiple of 8, bounded block.

    Prefers >= 2 frame blocks so the grid pipelines HBM DMAs and shards across
    TensorCores (v7x megacore); falls back to a single full block.
    """
    rows_allowed = max(1, row_cap // max(S, 1))
    for cap in (min(N // 2, rows_allowed), min(N, rows_allowed)):
        for fn in range(cap, 0, -1):
            if N % fn == 0 and (fn * S) % 8 == 0:
                return fn
    return N


def _choose_tk(K, cap):
    """K-tile size: prefer multiples of 256 (v6e/v7x MXU width), then 128."""
    cap = min(K, cap)
    for align in (256, 128):
        for tk in range(cap - cap % align, align - 1, -align):
            if K % tk == 0:
                return tk
    return K


# --------------------- fused conv(+bias+ReLU)+avgpool --------------------- #

def _conv_pool_single_kernel(a_ref, w_ref, b_ref, feat_ref, pool_ref, *, S):
    """Single-shot path (degenerate tiny problems): no grid, no scratch."""
    N, C = pool_ref.shape
    act = jnp.maximum(
        jnp.dot(a_ref[...], w_ref[...], preferred_element_type=jnp.float32)
        + b_ref[...], 0.0)
    feat_ref[...] = act.astype(feat_ref.dtype)
    # AdaptiveAvgPool2d(1): per-frame spatial mean on the XLU (no pool matrix)
    pool_ref[...] = jnp.mean(act.reshape(N, S, C), axis=1)


def _conv_pool_single(a, w_t, bias, N, S):
    M, K = a.shape
    C = w_t.shape[1]
    return pl.pallas_call(
        functools.partial(_conv_pool_single_kernel, S=S),
        out_shape=(jax.ShapeDtypeStruct((M, C), jnp.bfloat16),
                   jax.ShapeDtypeStruct((N, C), jnp.float32)),
        in_specs=[pl.BlockSpec(memory_space=pltpu.MemorySpace.VMEM)] * 3,
        out_specs=(pl.BlockSpec(memory_space=pltpu.MemorySpace.VMEM),
                   pl.BlockSpec(memory_space=pltpu.MemorySpace.VMEM)),
    )(a, w_t, bias.reshape(1, C))


def _conv_pool_tiled_kernel(a_ref, w_ref, b_ref, feat_ref, pool_ref, acc_ref,
                            *, S):
    """Main path: grid=(frame_tiles, K_tiles), K accumulated in f32 VMEM."""
    k = pl.program_id(1)

    @pl.when(k == 0)
    def _():
        acc_ref[...] = jnp.zeros_like(acc_ref)

    acc_ref[...] += jnp.dot(a_ref[...], w_ref[...],
                            preferred_element_type=jnp.float32)

    @pl.when(k == pl.num_programs(1) - 1)
    def _():
        fn, C = pool_ref.shape[1], acc_ref.shape[1]
        # bias + ReLU written through acc_ref (no large live f32 value)
        acc_ref[...] = jnp.maximum(acc_ref[...] + b_ref[...], 0.0)
        feat_ref[...] = acc_ref[...].astype(feat_ref.dtype)
        # spatial mean on the XLU (idle in this kernel) -> essentially free
        pool_ref[0] = jnp.mean(acc_ref[...].reshape(fn, S, C), axis=1)


def _conv_pool_tiled(a, w_t, bias, N, S, *, fn, tk, vmem_limit_bytes=None):
    M, K = a.shape
    C = w_t.shape[1]
    assert M == N * S
    assert N % fn == 0 and K % tk == 0
    assert (fn * S) % 8 == 0 or fn * S == M
    nft = N // fn
    feat, pooled = pl.pallas_call(
        functools.partial(_conv_pool_tiled_kernel, S=S),
        out_shape=(jax.ShapeDtypeStruct((M, C), jnp.bfloat16),
                   jax.ShapeDtypeStruct((nft, fn, C), jnp.float32)),
        grid=(nft, K // tk),
        in_specs=[pl.BlockSpec((fn * S, tk), lambda i, k: (i, k)),
                  pl.BlockSpec((tk, C), lambda i, k: (k, 0)),
                  pl.BlockSpec((1, C), lambda i, k: (0, 0))],
        out_specs=(pl.BlockSpec((fn * S, C), lambda i, k: (i, 0)),
                   pl.BlockSpec((1, fn, C), lambda i, k: (i, 0, 0))),
        scratch_shapes=[pltpu.VMEM((fn * S, C), jnp.float32)],
        compiler_params=pltpu.CompilerParams(
            # frame axis shards across TensorCores (v7x megacore); K is the
            # reduction axis.
            dimension_semantics=("parallel", "arbitrary"),
            vmem_limit_bytes=vmem_limit_bytes),
    )(a, w_t, bias.reshape(1, C))
    return feat, pooled.reshape(N, C)


def conv_pool(patches_bf16, w_t, bias, N, S):
    """Fused 'backbone' conv + global average pool.

    Prefers the tiled/grid kernel (pipelined DMA, megacore sharding) whenever
    the grid has >= 2 steps; the single-shot kernel handles only degenerate
    tiny problems.  Tile caps / vmem limits are derived from the chip's VMEM
    capacity (v7x: 64 MiB per TC; v5e/v6e: 128 MiB).
    """
    M, K = patches_bf16.shape
    C = w_t.shape[1]
    cap = _vmem_capacity_bytes()
    if cap >= (96 << 20):            # v5e / v6e: 128 MiB physical VMEM
        row_cap, tk_cap, vlim = 2048, 2048, 96 << 20
    else:                            # v7x: 64 MiB per TensorCore
        row_cap, tk_cap, vlim = 1024, 1024, 44 << 20

    fn = _choose_fn(N, S, row_cap)
    tk = _choose_tk(K, tk_cap)
    nft, nkt = N // fn, K // tk

    itm = patches_bf16.dtype.itemsize
    est_single = M * K * itm + K * C * 2 + M * C * 6 + N * C * 4
    if nft * nkt == 1 and est_single <= min(12 << 20, cap // 4):
        return _conv_pool_single(patches_bf16, w_t, bias, N, S)
    return _conv_pool_tiled(patches_bf16, w_t, bias, N, S,
                            fn=fn, tk=tk, vmem_limit_bytes=vlim)


# ------------------- fused LSTM + time-mean + Linear ---------------------- #

def _lstm_linear_kernel(x_ref, wih_ref, whh_ref, b_ref, lw_ref, lb_ref,
                        out_ref, gx_ref, *, T, B, H):
    """Single-layer LSTM (PyTorch gate order i,f,g,o), h0=c0=0, then
    Linear(mean_t(h_t)).  x: (T*B, D) time-major f32; wih: (D, 4H) bf16;
    whh: (H, 4H) bf16; b: (1, 4H) = b_ih + b_hh; lw: (H, n_cls); lb: (1, n_cls).
    """
    # Hoisted input projection with the bias folded in ONCE (removes a
    # broadcast-add from every serial time step).  bf16 MXU / f32 accumulate.
    gx_ref[...] = jnp.dot(x_ref[...].astype(jnp.bfloat16), wih_ref[...],
                          preferred_element_type=jnp.float32) + b_ref[...]

    def step(t, carry):
        h, c, acc = carry
        # bf16 recurrent matmul (single MXU pass) with f32 accumulation.
        # TODO(synk): bf16 rounding of h/whh deviates slightly from a pure-f32
        # PyTorch LSTM; validated against the bf16 reference below.
        gates = gx_ref[pl.ds(t * B, B), :] + jnp.dot(
            h.astype(jnp.bfloat16), whh_ref[...],
            preferred_element_type=jnp.float32)
        i = jax.nn.sigmoid(gates[:, 0:H])
        f = jax.nn.sigmoid(gates[:, H:2 * H])
        g = jnp.tanh(gates[:, 2 * H:3 * H])
        o = jax.nn.sigmoid(gates[:, 3 * H:4 * H])
        c_new = f * c + i * g
        h_new = o * jnp.tanh(c_new)
        return (h_new, c_new, acc + h_new)

    zeros = jnp.zeros((B, H), jnp.float32)
    _, _, acc = jax.lax.fori_loop(0, T, step, (zeros, zeros, zeros),
                                  unroll=True if T <= 8 else 4)
    h_mean = acc * (1.0 / T)
    # TODO(synk): nn.Dropout(0.4) is identity in eval mode; train-mode random
    # masking is not reproduced here.
    out_ref[...] = (jnp.dot(h_mean, lw_ref[...],
                            preferred_element_type=jnp.float32) + lb_ref[...])


def lstm_mean_linear(x2d, params, B, T):
    H = params["whh_t"].shape[0]
    ncls = params["lin_b"].shape[-1]
    return pl.pallas_call(
        functools.partial(_lstm_linear_kernel, T=T, B=B, H=H),
        out_shape=jax.ShapeDtypeStruct((B, ncls), jnp.float32),
        in_specs=[pl.BlockSpec(memory_space=pltpu.MemorySpace.VMEM)] * 6,
        out_specs=pl.BlockSpec(memory_space=pltpu.MemorySpace.VMEM),
        scratch_shapes=[pltpu.VMEM((T * B, 4 * H), jnp.float32)],
    )(x2d, params["wih_t"], params["whh_t"], params["lstm_b"],
      params["lin_w_t"], params["lin_b"])


# ------------------------- forward + params ------------------------------- #

def model_forward(x, params):
    B, T, Cin, Himg, Wimg = x.shape
    assert Himg % PATCH == 0 and Wimg % PATCH == 0, \
        "spatial dims must be multiples of the stride-32 patch size"
    N = B * T

    # bf16 BEFORE im2col: the patch buffer is written once, in bf16, and fed
    # straight to the MXU (f32 accumulation inside the kernel).
    patches, Hp, Wp = _im2col(x.astype(jnp.bfloat16).reshape(N, Cin, Himg, Wimg))
    S = Hp * Wp

    feat, pooled = conv_pool(patches, params["conv_w_t"], params["conv_b"], N, S)
    C = feat.shape[-1]

    # NCHW kept only for PyTorch parity; the transpose runs on bf16 data
    # (half the previous traffic).  NHWC consumers can use `feat` directly.
    # TODO(synk): returned fmap is bf16 (PyTorch would return f32).
    fmap = jnp.transpose(feat.reshape(N, Hp, Wp, C), (0, 3, 1, 2))

    # time-major LSTM input: row index = t*B + b
    x2d = pooled.reshape(B, T, C).transpose(1, 0, 2).reshape(T * B, C)
    out = lstm_mean_linear(x2d, params, B, T)
    return fmap, out


def init_params(key, latent_dim=256, hidden_dim=256, num_classes=2, in_ch=3):
    ks = jax.random.split(key, 7)
    K = in_ch * PATCH * PATCH
    s = 1.0 / (hidden_dim ** 0.5)
    conv_w = jax.random.normal(ks[0], (latent_dim, K), jnp.float32) * 0.02
    conv_b = jnp.zeros((latent_dim,), jnp.float32)
    wih = jax.random.uniform(ks[1], (4 * hidden_dim, latent_dim),
                             jnp.float32, -s, s)
    whh = jax.random.uniform(ks[2], (4 * hidden_dim, hidden_dim),
                             jnp.float32, -s, s)
    b_ih = jax.random.uniform(ks[3], (4 * hidden_dim,), jnp.float32, -s, s)
    b_hh = jax.random.uniform(ks[4], (4 * hidden_dim,), jnp.float32, -s, s)
    lin_w = jax.random.uniform(ks[5], (num_classes, hidden_dim),
                               jnp.float32, -s, s)
    lin_b = jax.random.uniform(ks[6], (num_classes,), jnp.float32, -s, s)
    return {
        "conv_w_t": conv_w.T.astype(jnp.bfloat16),             # (K, latent)
        "conv_b": conv_b,
        "wih_t": wih.T.astype(jnp.bfloat16),                   # (D, 4H)
        "whh_t": whh.T.astype(jnp.bfloat16),                   # (H, 4H)
        "lstm_b": (b_ih + b_hh).reshape(1, 4 * hidden_dim),
        "lin_w_t": lin_w.T,                                    # (H, classes)
        "lin_b": lin_b.reshape(1, num_classes),
    }


# ----------------------- pure-JAX reference (tests) ----------------------- #

def _ref_conv_pool(patches_bf16, w_t, bias, N, S):
    act = jnp.maximum(
        jnp.dot(patches_bf16, w_t, preferred_element_type=jnp.float32)
        + bias[None, :], 0.0)
    C = act.shape[-1]
    return act.astype(jnp.bfloat16), jnp.mean(act.reshape(N, S, C), axis=1)


def _ref_lstm(x2d, params, B, T):
    H = params["whh_t"].shape[0]
    gx = jnp.dot(x2d.astype(jnp.bfloat16), params["wih_t"],
                 preferred_element_type=jnp.float32) + params["lstm_b"]
    h = jnp.zeros((B, H), jnp.float32)
    c = jnp.zeros((B, H), jnp.float32)
    acc = jnp.zeros((B, H), jnp.float32)
    for t in range(T):
        gates = gx[t * B:(t + 1) * B] + jnp.dot(
            h.astype(jnp.bfloat16), params["whh_t"],
            preferred_element_type=jnp.float32)
        i = jax.nn.sigmoid(gates[:, 0:H])
        f = jax.nn.sigmoid(gates[:, H:2 * H])
        g = jnp.tanh(gates[:, 2 * H:3 * H])
        o = jax.nn.sigmoid(gates[:, 3 * H:4 * H])
        c = f * c + i * g
        h = o * jnp.tanh(c)
        acc = acc + h
    h_mean = acc / T
    return jnp.dot(h_mean, params["lin_w_t"],
                   preferred_element_type=jnp.float32) + params["lin_b"]


if __name__ == "__main__":
    key = jax.random.PRNGKey(0)
    pkey, xkey = jax.random.split(key)

    # small shapes consistent with forward(): (batch, seq, c, h, w)
    latent_dim = hidden_dim = 256
    num_classes = 2
    B, T, Cin, Himg, Wimg = 2, 4, 3, 64, 64

    params = init_params(pkey, latent_dim, hidden_dim, num_classes, Cin)
    x = jax.random.normal(xkey, (B, T, Cin, Himg, Wimg), jnp.float32)

    fmap, out = jax.jit(model_forward)(x, params)
    jax.block_until_ready((fmap, out))
    assert fmap.shape == (B * T, latent_dim, Himg // PATCH, Wimg // PATCH)
    assert out.shape == (B, num_classes)

    # ---- pure-JAX reference (same bf16 operand quantization) ----
    N = B * T
    patches, Hp, Wp = _im2col(x.astype(jnp.bfloat16).reshape(N, Cin, Himg, Wimg))
    S = Hp * Wp
    feat_exp, pool_exp = _ref_conv_pool(patches, params["conv_w_t"],
                                        params["conv_b"], N, S)
    fmap_exp = jnp.transpose(feat_exp.reshape(N, Hp, Wp, latent_dim), (0, 3, 1, 2))
    x2d_exp = pool_exp.reshape(B, T, latent_dim).transpose(1, 0, 2).reshape(
        T * B, latent_dim)
    out_exp = _ref_lstm(x2d_exp, params, B, T)
    jax.block_until_ready((fmap_exp, out_exp))

    FEAT_TOL, VEC_TOL = 6e-2, 2e-2   # bf16 feat: up to ~1 ulp at |act|~5
    assert float(jnp.max(jnp.abs(fmap.astype(jnp.float32)
                                 - fmap_exp.astype(jnp.float32)))) < FEAT_TOL
    assert float(jnp.max(jnp.abs(out - out_exp))) < VEC_TOL

    # ---- also exercise both conv+pool paths and check they agree ----
    feat1, pool1 = _conv_pool_single(patches, params["conv_w_t"],
                                     params["conv_b"], N, S)
    feat2, pool2 = _conv_pool_tiled(patches, params["conv_w_t"],
                                    params["conv_b"], N, S, fn=4, tk=1024)
    jax.block_until_ready((feat1, pool1, feat2, pool2))
    assert float(jnp.max(jnp.abs(feat1.astype(jnp.float32)
                                 - feat2.astype(jnp.float32)))) < FEAT_TOL
    assert float(jnp.max(jnp.abs(pool1 - pool2))) < VEC_TOL
    assert float(jnp.max(jnp.abs(pool2 - pool_exp))) < VEC_TOL

    print("KERNEL_OK")
</pallas_src>

<mosaic_0001>
module attributes {stable_mosaic.version = 11 : i64} {
  func.func @_conv_pool_tiled_kernel(%arg0: i32, %arg1: i32, %arg2: memref<16x1024xbf16, #tpu.memory_space<vmem>>, %arg3: memref<1024x256xbf16, #tpu.memory_space<vmem>>, %arg4: memref<1x256xf32, #tpu.memory_space<vmem>>, %arg5: memref<16x256xbf16, #tpu.memory_space<vmem>>, %arg6: memref<1x4x256xf32, #tpu.memory_space<vmem>>, %arg7: memref<16x256xf32, #tpu.memory_space<vmem>>) attributes {dimension_semantics = [#tpu.dimension_semantics<parallel>, #tpu.dimension_semantics<arbitrary>], iteration_bounds = array<i64: 2, 3>, scalar_prefetch = 0 : i64, scratch_operands = 1 : i64, tpu.core_type = #tpu.core_type<tc>, window_params = [{transform_indices = @transform_0, window_bounds = array<i64: 16, 1024>}, {transform_indices = @transform_1, window_bounds = array<i64: 1024, 256>}, {pipeline_mode = #tpu.pipeline_mode<synchronous>, transform_indices = @transform_2, window_bounds = array<i64: 1, 256>}, {transform_indices = @transform_3, window_bounds = array<i64: 16, 256>}, {transform_indices = @transform_4, window_bounds = array<i64: 1, 4, 256>}]} {
    %c0_i32 = arith.constant 0 : i32
    %0 = arith.cmpi eq, %arg1, %c0_i32 : i32
    %1 = arith.extui %0 : i1 to i32
    %c0_i32_0 = arith.constant 0 : i32
    %2 = arith.cmpi ne, %1, %c0_i32_0 : i32
    scf.if %2 {
      %cst_9 = arith.constant 0.000000e+00 : f32
      %12 = vector.broadcast %cst_9 : f32 to vector<16x256xf32>
      %c0_10 = arith.constant 0 : index
      %c0_11 = arith.constant 0 : index
      %13 = vector.load %arg7[%c0_10, %c0_11] : memref<16x256xf32, #tpu.memory_space<vmem>>, vector<16x256xf32>
      tpu.vector_store %arg7[%c0_10, %c0_11], %12 {strides = array<i32>} : memref<16x256xf32, #tpu.memory_space<vmem>>, vector<16x256xf32>,
    } else {
    }
    %c0 = arith.constant 0 : index
    %c0_1 = arith.constant 0 : index
    %3 = vector.load %arg7[%c0, %c0_1] : memref<16x256xf32, #tpu.memory_space<vmem>>, vector<16x256xf32>
    %c0_2 = arith.constant 0 : index
    %c0_3 = arith.constant 0 : index
    %4 = vector.load %arg2[%c0_2, %c0_3] : memref<16x1024xbf16, #tpu.memory_space<vmem>>, vector<16x1024xbf16>
    %c0_4 = arith.constant 0 : index
    %c0_5 = arith.constant 0 : index
    %5 = vector.load %arg3[%c0_4, %c0_5] : memref<1024x256xbf16, #tpu.memory_space<vmem>>, vector<1024x256xbf16>
    %cst = arith.constant dense<0.000000e+00> : vector<16x256xf32>
    %6 = tpu.matmul %4, %5, %cst {dimension_numbers = #tpu.dot_dimension_numbers<[1], [0], [0], [1], [0, 0, 1, 1], [], []>} : vector<16x1024xbf16>, vector<1024x256xbf16>, vector<16x256xf32> -> vector<16x256xf32>
    %7 = arith.addf %3, %6 : vector<16x256xf32>
    %c0_6 = arith.constant 0 : index
    %c0_7 = arith.constant 0 : index
    %8 = vector.load %arg7[%c0_6, %c0_7] : memref<16x256xf32, #tpu.memory_space<vmem>>, vector<16x256xf32>
    tpu.vector_store %arg7[%c0_6, %c0_7], %7 {strides = array<i32>} : memref<16x256xf32, #tpu.memory_space<vmem>>, vector<16x256xf32>,
    %c2_i32 = arith.constant 2 : i32
    %9 = arith.cmpi eq, %arg1, %c2_i32 : i32
    %10 = arith.extui %9 : i1 to i32
    %c0_i32_8 = arith.constant 0 : i32
    %11 = arith.cmpi ne, %10, %c0_i32_8 : i32
    scf.if %11 {
      %c0_9 = arith.constant 0 : index
      %c0_10 = arith.constant 0 : index
      %12 = vector.load %arg7[%c0_9, %c0_10] : memref<16x256xf32, #tpu.memory_space<vmem>>, vector<16x256xf32>
      %c0_11 = arith.constant 0 : index
      %c0_12 = arith.constant 0 : index
      %13 = vector.load %arg4[%c0_11, %c0_12] : memref<1x256xf32, #tpu.memory_space<vmem>>, vector<1x256xf32>
      %14 = vector.broadcast %13 : vector<1x256xf32> to vector<16x256xf32>
      %15 = arith.addf %12, %14 : vector<16x256xf32>
      %cst_13 = arith.constant 0.000000e+00 : f32
      %16 = vector.broadcast %cst_13 : f32 to vector<16x256xf32>
      %17 = arith.maximumf %15, %16 : vector<16x256xf32>
      %c0_14 = arith.constant 0 : index
      %c0_15 = arith.constant 0 : index
      %18 = vector.load %arg7[%c0_14, %c0_15] : memref<16x256xf32, #tpu.memory_space<vmem>>, vector<16x256xf32>
      tpu.vector_store %arg7[%c0_14, %c0_15], %17 {strides = array<i32>} : memref<16x256xf32, #tpu.memory_space<vmem>>, vector<16x256xf32>,
      %c0_16 = arith.constant 0 : index
      %c0_17 = arith.constant 0 : index
      %19 = vector.load %arg7[%c0_16, %c0_17] : memref<16x256xf32, #tpu.memory_space<vmem>>, vector<16x256xf32>
      %20 = arith.truncf %19 : vector<16x256xf32> to vector<16x256xbf16>
      %c0_18 = arith.constant 0 : index
      %c0_19 = arith.constant 0 : index
      %21 = vector.load %arg5[%c0_18, %c0_19] : memref<16x256xbf16, #tpu.memory_space<vmem>>, vector<16x256xbf16>
      tpu.vector_store %arg5[%c0_18, %c0_19], %20 {strides = array<i32>} : memref<16x256xbf16, #tpu.memory_space<vmem>>, vector<16x256xbf16>,
      %c0_20 = arith.constant 0 : index
      %c0_21 = arith.constant 0 : index
      %22 = vector.load %arg7[%c0_20, %c0_21] : memref<16x256xf32, #tpu.memory_space<vmem>>, vector<16x256xf32>
      %23 = vector.shape_cast %22 : vector<16x256xf32> to vector<4x4x256xf32>
      %cst_22 = arith.constant dense<0.000000e+00> : vector<4x256xf32>
      %24 = vector.multi_reduction <add>, %23, %cst_22 [1] : vector<4x4x256xf32> to vector<4x256xf32>
      %cst_23 = arith.constant 4.000000e+00 : f32
      %25 = vector.broadcast %cst_23 : f32 to vector<4x256xf32>
      %26 = arith.divf %24, %25 : vector<4x256xf32>
      %c0_24 = arith.constant 0 : index
      %c0_25 = arith.constant 0 : index
      %c0_26 = arith.constant 0 : index
      %27 = vector.load %arg6[%c0_24, %c0_25, %c0_26] : memref<1x4x256xf32, #tpu.memory_space<vmem>>, vector<1x4x256xf32>
      %28 = vector.shape_cast %27 : vector<1x4x256xf32> to vector<4x256xf32>
      %29 = vector.shape_cast %26 : vector<4x256xf32> to vector<1x4x256xf32>
      tpu.vector_store %arg6[%c0_24, %c0_25, %c0_26], %29 {strides = array<i32>} : memref<1x4x256xf32, #tpu.memory_space<vmem>>, vector<1x4x256xf32>,
    } else {
    }
    return
  }
  func.func @transform_0(%arg0: i32, %arg1: i32) -> (i32, i32) {
    %c0_i32 = arith.constant 0 : i32
    return %arg0, %arg1 : i32, i32
  }
  func.func @transform_1(%arg0: i32, %arg1: i32) -> (i32, i32) {
    %c0_i32 = arith.constant 0 : i32
    %c0_i32_0 = arith.constant 0 : i32
    return %arg1, %c0_i32 : i32, i32
  }
  func.func @transform_2(%arg0: i32, %arg1: i32) -> (i32, i32) {
    %c0_i32 = arith.constant 0 : i32
    %c0_i32_0 = arith.constant 0 : i32
    %c0_i32_1 = arith.constant 0 : i32
    return %c0_i32, %c0_i32_0 : i32, i32
  }
  func.func @transform_3(%arg0: i32, %arg1: i32) -> (i32, i32) {
    %c0_i32 = arith.constant 0 : i32
    %c0_i32_0 = arith.constant 0 : i32
    return %arg0, %c0_i32 : i32, i32
  }
  func.func @transform_4(%arg0: i32, %arg1: i32) -> (i32, i32, i32) {
    %c0_i32 = arith.constant 0 : i32
    %c0_i32_0 = arith.constant 0 : i32
    %c0_i32_1 = arith.constant 0 : i32
    return %arg0, %c0_i32, %c0_i32_0 : i32, i32, i32
  }
}

module attributes {stable_mosaic.version = 11 : i64} {
  func.func @_lstm_linear_kernel(%arg0: memref<8x256xf32, #tpu.memory_space<vmem>>, %arg1: memref<256x1024xbf16, #tpu.memory_space<vmem>>, %arg2: memref<256x1024xbf16, #tpu.memory_space<vmem>>, %arg3: memref<1x1024xf32, #tpu.memory_space<vmem>>, %arg4: memref<256x2xf32, #tpu.memory_space<vmem>>, %arg5: memref<1x2xf32, #tpu.memory_space<vmem>>, %arg6: memref<2x2xf32, #tpu.memory_space<vmem>>, %arg7: memref<8x1024xf32, #tpu.memory_space<vmem>>) attributes {dimension_semantics = [], scalar_prefetch = 0 : i64, scratch_operands = 1 : i64, tpu.core_type = #tpu.core_type<tc>} {
    %c0 = arith.constant 0 : index
    %c0_0 = arith.constant 0 : index
    %0 = vector.load %arg0[%c0, %c0_0] : memref<8x256xf32, #tpu.memory_space<vmem>>, vector<8x256xf32>
    %1 = arith.truncf %0 : vector<8x256xf32> to vector<8x256xbf16>
    %c0_1 = arith.constant 0 : index
    %c0_2 = arith.constant 0 : index
    %2 = vector.load %arg1[%c0_1, %c0_2] : memref<256x1024xbf16, #tpu.memory_space<vmem>>, vector<256x1024xbf16>
    %cst = arith.constant dense<0.000000e+00> : vector<8x1024xf32>
    %3 = tpu.matmul %1, %2, %cst {dimension_numbers = #tpu.dot_dimension_numbers<[1], [0], [0], [1], [0, 0, 1, 1], [], []>} : vector<8x256xbf16>, vector<256x1024xbf16>, vector<8x1024xf32> -> vector<8x1024xf32>
    %c0_3 = arith.constant 0 : index
    %c0_4 = arith.constant 0 : index
    %4 = vector.load %arg3[%c0_3, %c0_4] : memref<1x1024xf32, #tpu.memory_space<vmem>>, vector<1x1024xf32>
    %5 = vector.broadcast %4 : vector<1x1024xf32> to vector<8x1024xf32>
    %6 = arith.addf %3, %5 : vector<8x1024xf32>
    %c0_5 = arith.constant 0 : index
    %c0_6 = arith.constant 0 : index
    %7 = vector.load %arg7[%c0_5, %c0_6] : memref<8x1024xf32, #tpu.memory_space<vmem>>, vector<8x1024xf32>
    tpu.vector_store %arg7[%c0_5, %c0_6], %6 {strides = array<i32>} : memref<8x1024xf32, #tpu.memory_space<vmem>>, vector<8x1024xf32>,
    %cst_7 = arith.constant 0.000000e+00 : f32
    %8 = vector.broadcast %cst_7 : f32 to vector<2x256xf32>
    %c0_i32 = arith.constant 0 : i32
    %c2_i32 = arith.constant 2 : i32
    %9 = arith.muli %c0_i32, %c2_i32 : i32
    %10 = arith.index_cast %9 : i32 to index
    %c0_8 = arith.constant 0 : index
    %11 = vector.load %arg7[%10, %c0_8] : memref<8x1024xf32, #tpu.memory_space<vmem>>, vector<2x1024xf32>
    %12 = arith.truncf %8 : vector<2x256xf32> to vector<2x256xbf16>
    %c0_9 = arith.constant 0 : index
    %c0_10 = arith.constant 0 : index
    %13 = vector.load %arg2[%c0_9, %c0_10] : memref<256x1024xbf16, #tpu.memory_space<vmem>>, vector<256x1024xbf16>
    %cst_11 = arith.constant dense<0.000000e+00> : vector<2x1024xf32>
    %14 = tpu.matmul %12, %13, %cst_11 {dimension_numbers = #tpu.dot_dimension_numbers<[1], [0], [0], [1], [0, 0, 1, 1], [], []>} : vector<2x256xbf16>, vector<256x1024xbf16>, vector<2x1024xf32> -> vector<2x1024xf32>
    %15 = arith.addf %11, %14 : vector<2x1024xf32>
    %16 = vector.extract_strided_slice %15 {offsets = [0, 0], sizes = [2, 256], strides = [1, 1]} : vector<2x1024xf32> to vector<2x256xf32>
    %17 = arith.negf %16 : vector<2x256xf32>
    %18 = math.exp %17 : vector<2x256xf32>
    %cst_12 = arith.constant 1.000000e+00 : f32
    %19 = vector.broadcast %cst_12 : f32 to vector<2x256xf32>
    %20 = arith.addf %19, %18 : vector<2x256xf32>
    %21 = arith.divf %19, %20 : vector<2x256xf32>
    %22 = vector.extract_strided_slice %15 {offsets = [0, 256], sizes = [2, 256], strides = [1, 1]} : vector<2x1024xf32> to vector<2x256xf32>
    %23 = arith.negf %22 : vector<2x256xf32>
    %24 = math.exp %23 : vector<2x256xf32>
    %cst_13 = arith.constant 1.000000e+00 : f32
    %25 = vector.broadcast %cst_13 : f32 to vector<2x256xf32>
    %26 = arith.addf %25, %24 : vector<2x256xf32>
    %27 = arith.divf %25, %26 : vector<2x256xf32>
    %28 = vector.extract_strided_slice %15 {offsets = [0, 512], sizes = [2, 256], strides = [1, 1]} : vector<2x1024xf32> to vector<2x256xf32>
    %29 = math.tanh %28 : vector<2x256xf32>
    %30 = vector.extract_strided_slice %15 {offsets = [0, 768], sizes = [2, 256], strides = [1, 1]} : vector<2x1024xf32> to vector<2x256xf32>
    %31 = arith.negf %30 : vector<2x256xf32>
    %32 = math.exp %31 : vector<2x256xf32>
    %cst_14 = arith.constant 1.000000e+00 : f32
    %33 = vector.broadcast %cst_14 : f32 to vector<2x256xf32>
    %34 = arith.addf %33, %32 : vector<2x256xf32>
    %35 = arith.divf %33, %34 : vector<2x256xf32>
    %36 = arith.mulf %27, %8 : vector<2x256xf32>
    %37 = arith.mulf %21, %29 : vector<2x256xf32>
    %38 = arith.addf %36, %37 : vector<2x256xf32>
    %39 = math.tanh %38 : vector<2x256xf32>
    %40 = arith.mulf %35, %39 : vector<2x256xf32>
    %41 = arith.addf %8, %40 : vector<2x256xf32>
    %c1_i32 = arith.constant 1 : i32
    %c2_i32_15 = arith.constant 2 : i32
    %42 = arith.muli %c1_i32, %c2_i32_15 : i32
    %43 = arith.index_cast %42 : i32 to index
    %c0_16 = arith.constant 0 : index
    %44 = vector.load %arg7[%43, %c0_16] : memref<8x1024xf32, #tpu.memory_space<vmem>>, vector<2x1024xf32>
    %45 = arith.truncf %40 : vector<2x256xf32> to vector<2x256xbf16>
    %c0_17 = arith.constant 0 : index
    %c0_18 = arith.constant 0 : index
    %46 = vector.load %arg2[%c0_17, %c0_18] : memref<256x1024xbf16, #tpu.memory_space<vmem>>, vector<256x1024xbf16>
    %cst_19 = arith.constant dense<0.000000e+00> : vector<2x1024xf32>
    %47 = tpu.matmul %45, %46, %cst_19 {dimension_numbers = #tpu.dot_dimension_numbers<[1], [0], [0], [1], [0, 0, 1, 1], [], []>} : vector<2x256xbf16>, vector<256x1024xbf16>, vector<2x1024xf32> -> vector<2x1024xf32>
    %48 = arith.addf %44, %47 : vector<2x1024xf32>
    %49 = vector.extract_strided_slice %48 {offsets = [0, 0], sizes = [2, 256], strides = [1, 1]} : vector<2x1024xf32> to vector<2x256xf32>
    %50 = arith.negf %49 : vector<2x256xf32>
    %51 = math.exp %50 : vector<2x256xf32>
    %cst_20 = arith.constant 1.000000e+00 : f32
    %52 = vector.broadcast %cst_20 : f32 to vector<2x256xf32>
    %53 = arith.addf %52, %51 : vector<2x256xf32>
    %54 = arith.divf %52, %53 : vector<2x256xf32>
    %55 = vector.extract_strided_slice %48 {offsets = [0, 256], sizes = [2, 256], strides = [1, 1]} : vector<2x1024xf32> to vector<2x256xf32>
    %56 = arith.negf %55 : vector<2x256xf32>
    %57 = math.exp %56 : vector<2x256xf32>
    %cst_21 = arith.constant 1.000000e+00 : f32
    %58 = vector.broadcast %cst_21 : f32 to vector<2x256xf32>
    %59 = arith.addf %58, %57 : vector<2x256xf32>
    %60 = arith.divf %58, %59 : vector<2x256xf32>
    %61 = vector.extract_strided_slice %48 {offsets = [0, 512], sizes = [2, 256], strides = [1, 1]} : vector<2x1024xf32> to vector<2x256xf32>
    %62 = math.tanh %61 : vector<2x256xf32>
    %63 = vector.extract_strided_slice %48 {offsets = [0, 768], sizes = [2, 256], strides = [1, 1]} : vector<2x1024xf32> to vector<2x256xf32>
    %64 = arith.negf %63 : vector<2x256xf32>
    %65 = math.exp %64 : vector<2x256xf32>
    %cst_22 = arith.constant 1.000000e+00 : f32
    %66 = vector.broadcast %cst_22 : f32 to vector<2x256xf32>
    %67 = arith.addf %66, %65 : vector<2x256xf32>
    %68 = arith.divf %66, %67 : vector<2x256xf32>
    %69 = arith.mulf %60, %38 : vector<2x256xf32>
    %70 = arith.mulf %54, %62 : vector<2x256xf32>
    %71 = arith.addf %69, %70 : vector<2x256xf32>
    %72 = math.tanh %71 : vector<2x256xf32>
    %73 = arith.mulf %68, %72 : vector<2x256xf32>
    %74 = arith.addf %41, %73 : vector<2x256xf32>
    %c2_i32_23 = arith.constant 2 : i32
    %c2_i32_24 = arith.constant 2 : i32
    %75 = arith.muli %c2_i32_23, %c2_i32_24 : i32
    %76 = arith.index_cast %75 : i32 to index
    %c0_25 = arith.constant 0 : index
    %77 = vector.load %arg7[%76, %c0_25] : memref<8x1024xf32, #tpu.memory_space<vmem>>, vector<2x1024xf32>
    %78 = arith.truncf %73 : vector<2x256xf32> to vector<2x256xbf16>
    %c0_26 = arith.constant 0 : index
    %c0_27 = arith.constant 0 : index
    %79 = vector.load %arg2[%c0_26, %c0_27] : memref<256x1024xbf16, #tpu.memory_space<vmem>>, vector<256x1024xbf16>
    %cst_28 = arith.constant dense<0.000000e+00> : vector<2x1024xf32>
    %80 = tpu.matmul %78, %79, %cst_28 {dimension_numbers = #tpu.dot_dimension_numbers<[1], [0], [0], [1], [0, 0, 1, 1], [], []>} : vector<2x256xbf16>, vector<256x1024xbf16>, vector<2x1024xf32> -> vector<2x1024xf32>
    %81 = arith.addf %77, %80 : vector<2x1024xf32>
    %82 = vector.extract_strided_slice %81 {offsets = [0, 0], sizes = [2, 256], strides = [1, 1]} : vector<2x1024xf32> to vector<2x256xf32>
    %83 = arith.negf %82 : vector<2x256xf32>
    %84 = math.exp %83 : vector<2x256xf32>
    %cst_29 = arith.constant 1.000000e+00 : f32
    %85 = vector.broadcast %cst_29 : f32 to vector<2x256xf32>
    %86 = arith.addf %85, %84 : vector<2x256xf32>
    %87 = arith.divf %85, %86 : vector<2x256xf32>
    %88 = vector.extract_strided_slice %81 {offsets = [0, 256], sizes = [2, 256], strides = [1, 1]} : vector<2x1024xf32> to vector<2x256xf32>
    %89 = arith.negf %88 : vector<2x256xf32>
    %90 = math.exp %89 : vector<2x256xf32>
    %cst_30 = arith.constant 1.000000e+00 : f32
    %91 = vector.broadcast %cst_30 : f32 to vector<2x256xf32>
    %92 = arith.addf %91, %90 : vector<2x256xf32>
    %93 = arith.divf %91, %92 : vector<2x256xf32>
    %94 = vector.extract_strided_slice %81 {offsets = [0, 512], sizes = [2, 256], strides = [1, 1]} : vector<2x1024xf32> to vector<2x256xf32>
    %95 = math.tanh %94 : vector<2x256xf32>
    %96 = vector.extract_strided_slice %81 {offsets = [0, 768], sizes = [2, 256], strides = [1, 1]} : vector<2x1024xf32> to vector<2x256xf32>
    %97 = arith.negf %96 : vector<2x256xf32>
    %98 = math.exp %97 : vector<2x256xf32>
    %cst_31 = arith.constant 1.000000e+00 : f32
    %99 = vector.broadcast %cst_31 : f32 to vector<2x256xf32>
    %100 = arith.addf %99, %98 : vector<2x256xf32>
    %101 = arith.divf %99, %100 : vector<2x256xf32>
    %102 = arith.mulf %93, %71 : vector<2x256xf32>
    %103 = arith.mulf %87, %95 : vector<2x256xf32>
    %104 = arith.addf %102, %103 : vector<2x256xf32>
    %105 = math.tanh %104 : vector<2x256xf32>
    %106 = arith.mulf %101, %105 : vector<2x256xf32>
    %107 = arith.addf %74, %106 : vector<2x256xf32>
    %c3_i32 = arith.constant 3 : i32
    %c2_i32_32 = arith.constant 2 : i32
    %108 = arith.muli %c3_i32, %c2_i32_32 : i32
    %109 = arith.index_cast %108 : i32 to index
    %c0_33 = arith.constant 0 : index
    %110 = vector.load %arg7[%109, %c0_33] : memref<8x1024xf32, #tpu.memory_space<vmem>>, vector<2x1024xf32>
    %111 = arith.truncf %106 : vector<2x256xf32> to vector<2x256xbf16>
    %c0_34 = arith.constant 0 : index
    %c0_35 = arith.constant 0 : index
    %112 = vector.load %arg2[%c0_34, %c0_35] : memref<256x1024xbf16, #tpu.memory_space<vmem>>, vector<256x1024xbf16>
    %cst_36 = arith.constant dense<0.000000e+00> : vector<2x1024xf32>
    %113 = tpu.matmul %111, %112, %cst_36 {dimension_numbers = #tpu.dot_dimension_numbers<[1], [0], [0], [1], [0, 0, 1, 1], [], []>} : vector<2x256xbf16>, vector<256x1024xbf16>, vector<2x1024xf32> -> vector<2x1024xf32>
    %114 = arith.addf %110, %113 : vector<2x1024xf32>
    %115 = vector.extract_strided_slice %114 {offsets = [0, 0], sizes = [2, 256], strides = [1, 1]} : vector<2x1024xf32> to vector<2x256xf32>
    %116 = arith.negf %115 : vector<2x256xf32>
    %117 = math.exp %116 : vector<2x256xf32>
    %cst_37 = arith.constant 1.000000e+00 : f32
    %118 = vector.broadcast %cst_37 : f32 to vector<2x256xf32>
    %119 = arith.addf %118, %117 : vector<2x256xf32>
    %120 = arith.divf %118, %119 : vector<2x256xf32>
    %121 = vector.extract_strided_slice %114 {offsets = [0, 256], sizes = [2, 256], strides = [1, 1]} : vector<2x1024xf32> to vector<2x256xf32>
    %122 = arith.negf %121 : vector<2x256xf32>
    %123 = math.exp %122 : vector<2x256xf32>
    %cst_38 = arith.constant 1.000000e+00 : f32
    %124 = vector.broadcast %cst_38 : f32 to vector<2x256xf32>
    %125 = arith.addf %124, %123 : vector<2x256xf32>
    %126 = arith.divf %124, %125 : vector<2x256xf32>
    %127 = vector.extract_strided_slice %114 {offsets = [0, 512], sizes = [2, 256], strides = [1, 1]} : vector<2x1024xf32> to vector<2x256xf32>
    %128 = math.tanh %127 : vector<2x256xf32>
    %129 = vector.extract_strided_slice %114 {offsets = [0, 768], sizes = [2, 256], strides = [1, 1]} : vector<2x1024xf32> to vector<2x256xf32>
    %130 = arith.negf %129 : vector<2x256xf32>
    %131 = math.exp %130 : vector<2x256xf32>
    %cst_39 = arith.constant 1.000000e+00 : f32
    %132 = vector.broadcast %cst_39 : f32 to vector<2x256xf32>
    %133 = arith.addf %132, %131 : vector<2x256xf32>
    %134 = arith.divf %132, %133 : vector<2x256xf32>
    %135 = arith.mulf %126, %104 : vector<2x256xf32>
    %136 = arith.mulf %120, %128 : vector<2x256xf32>
    %137 = arith.addf %135, %136 : vector<2x256xf32>
    %138 = math.tanh %137 : vector<2x256xf32>
    %139 = arith.mulf %134, %138 : vector<2x256xf32>
    %140 = arith.addf %107, %139 : vector<2x256xf32>
    %c4_i32 = arith.constant 4 : i32
    %cst_40 = arith.constant 2.500000e-01 : f32
    %141 = vector.broadcast %cst_40 : f32 to vector<2x256xf32>
    %142 = arith.mulf %140, %141 : vector<2x256xf32>
    %c0_41 = arith.constant 0 : index
    %c0_42 = arith.constant 0 : index
    %143 = vector.load %arg4[%c0_41, %c0_42] : memref<256x2xf32, #tpu.memory_space<vmem>>, vector<256x2xf32>
    %cst_43 = arith.constant dense<0.000000e+00> : vector<2x2xf32>
    %144 = tpu.matmul %142, %143, %cst_43 {dimension_numbers = #tpu.dot_dimension_numbers<[1], [0], [0], [1], [0, 0, 1, 1], [], []>} : vector<2x256xf32>, vector<256x2xf32>, vector<2x2xf32> -> vector<2x2xf32>
    %c0_44 = arith.constant 0 : index
    %c0_45 = arith.constant 0 : index
    %145 = vector.load %arg5[%c0_44, %c0_45] : memref<1x2xf32, #tpu.memory_space<vmem>>, vector<1x2xf32>
    %146 = vector.broadcast %145 : vector<1x2xf32> to vector<2x2xf32>
    %147 = arith.addf %144, %146 : vector<2x2xf32>
    %c0_46 = arith.constant 0 : index
    %c0_47 = arith.constant 0 : index
    %148 = vector.load %arg6[%c0_46, %c0_47] : memref<2x2xf32, #tpu.memory_space<vmem>>, vector<2x2xf32>
    tpu.vector_store %arg6[%c0_46, %c0_47], %147 {strides = array<i32>} : memref<2x2xf32, #tpu.memory_space<vmem>>, vector<2x2xf32>,
    return
  }
}

</mosaic_0001>

<llo_original>
// kernel: model_forward.2
$region0: #{model_forward.2}
  #allocation0 [shape = 'u32[]', space=smem, size = 0x4, offset = 0x4, fixed_abs, tag = 'smem constant byte address 0x4 - core index']
  #allocation1 [shape = 'u32[144,128]{1,0:T(1,128)}', space=vmem, size = 0x12000, scoped, tag = 'internal scratch']
  #allocation2 [shape = 'f32[16,256]{1,0:T(8,128)}', space=vmem, size = 0x4000, scoped, tag = 'scratch operand']
  %s0 = inlined_call_operand.vmem [shape: bf16[32,3072], index: 0, kind: input, shape index: {}]
  %s1 = inlined_call_operand.vmem [shape: bf16[3072,256], index: 1, kind: input, shape index: {}]
  %s2 = inlined_call_operand.vmem [shape: f32[1,256], index: 2, kind: input, shape index: {}]
  %s3 = inlined_call_operand.vmem [shape: bf16[32,256], index: 3, kind: output, shape index: {0}]
  %s4 = inlined_call_operand.vmem [shape: f32[2,4,256], index: 4, kind: output, shape index: {1}]
  %5 = xla_tuple %s3, %s4
  %s6 = sld [smem:[#allocation0]]
  $region84: #{model_forward.2} parent=0
    _
  %s8 = ssub.s32 1, %s6
  %s9 = scalar_select 0, %s8, %s6
  $region1: #{model_forward.2} parent=0
    #allocation3 [shape = 'u8[65536]{0}', space=vmem, size = 0x10000, scoped, tag = 'input window, operand 0']
    loop: start=0, step=1, limit=8
    $region2: #{model_forward.2} parent=1 // loop_pre_header
      _
    $region3: #{model_forward.2} parent=1 // loop_header
      %s11 = sphi 0, %s15
      %p12 = scmp.ge.s32.totalorder %s11, 8
      %s18 = sphi 0, %s30
      %s19 = sphi 0, %s26
      %s20 = sphi 0, %s18
      %s21 = sphi 0, %s19
      %s22 = sphi 0, %s20
      %s23 = sphi 0, %s21
      %s35 = sphi 0, %s37
      %s38 = sphi 0, %s35
      %s39 = sphi 0, %s38
      %s55 = sphi 0, %s39
      %s61 = sphi 0, %s63
      %s64 = sphi 0, %s61
      %s65 = sphi 0, %s64
      %s81 = sphi 0, %s65
      %s85 = sphi 0, %s85
      %s87 = sphi 0, %s85
      %s88 = sphi 0, %s87
      %s102 = sphi 0, %s88
      %s108 = sphi 0, %s110
      %s111 = sphi 0, %s108
      %s112 = sphi 0, %s111
      %s128 = sphi 0, %s112
      %s134 = sphi 0, %s136
      %s137 = sphi 0, %s134
      %s138 = sphi 0, %s137
      %s154 = sphi 0, %s138
    $region4: #{model_forward.2} parent=1 // loop_header_branch
      %14 = sbr.rel (%p12) target = $region8
    $region5: #{model_forward.2} parent=1 // loop_body
      %s16 = ssub.s32 %s11, 1
      %s17 = ssub.s32 %s11, 2
      %s24 = sadd.s32 1, %s19
      %p25 = scmp.ge.s32.totalorder %s24, 3
      %s26 = scalar_select %p25, 0, %s24
      %s27 = sadd.s32 1, %s18
      %s28 = scalar_select %p25, %s27, %s18
      %p29 = scmp.ge.s32.totalorder %s28, 2
      %s30 = scalar_select %p29, 0, %s28
      %s31 = ssub.s32 %s18, %s30
      %s32 = ssub.s32 %s19, %s26
      %s33 = sor.u32 %s31, %s32
      %p34 = scmp.eq.s32.totalorder %s33, 0
      %s36 = sadd.s32 %s35, 1
      %s37 = scalar_select %p34, %s35, %s36
      %p40 = pneg %p34
      %p41 = scmp.eq.s32.totalorder %s11, 5
      %p42 = por %p40, %p41
      %p43 = scmp.ne.s32.totalorder %s35, %s38
      %p44 = scmp.eq.s32.totalorder %s11, 0
      %p45 = por %p43, %p44
      %p46 = scmp.ne.s32.totalorder %s35, %s38
      %p47 = scmp.eq.s32.totalorder %s16, 5
      %p48 = por %p46, %p47
      %p49 = scmp.ne.s32.totalorder %s38, %s39
      %p50 = scmp.eq.s32.totalorder %s16, 0
      %p51 = por %p49, %p50
      %p52 = scmp.ne.s32.totalorder %s38, %s39
      %p53 = scmp.eq.s32.totalorder %s17, 5
      %p54 = por %p52, %p53
      %p56 = scmp.ne.s32.totalorder %s39, %s55
      %p57 = scmp.eq.s32.totalorder %s17, 0
      %p58 = por %p56, %p57
      %s59 = ssub.s32 %s19, %s26
      %p60 = scmp.eq.s32.totalorder %s59, 0
      %s62 = sadd.s32 %s61, 1
      %s63 = scalar_select %p60, %s61, %s62
      %p66 = pneg %p60
      %p67 = scmp.eq.s32.totalorder %s11, 5
      %p68 = por %p66, %p67
      %p69 = scmp.ne.s32.totalorder %s61, %s64
      %p70 = scmp.eq.s32.totalorder %s11, 0
      %p71 = por %p69, %p70
      %p72 = scmp.ne.s32.totalorder %s61, %s64
      %p73 = scmp.eq.s32.totalorder %s16, 5
      %p74 = por %p72, %p73
      %p75 = scmp.ne.s32.totalorder %s64, %s65
      %p76 = scmp.eq.s32.totalorder %s16, 0
      %p77 = por %p75, %p76
      %p78 = scmp.ne.s32.totalorder %s64, %s65
      %p79 = scmp.eq.s32.totalorder %s17, 5
      %p80 = por %p78, %p79
      %p82 = scmp.ne.s32.totalorder %s65, %s81
      %p83 = scmp.eq.s32.totalorder %s17, 0
      %p84 = por %p82, %p83
      %s86 = sadd.s32 %s85, 1
      %p89 = scmp.eq.s32.totalorder %s11, 5
      %p90 = scmp.ne.s32.totalorder %s85, %s87
      %p91 = scmp.eq.s32.totalorder %s11, 0
      %p92 = por %p90, %p91
      %p93 = scmp.ne.s32.totalorder %s85, %s87
      %p94 = scmp.eq.s32.totalorder %s16, 5
      %p95 = por %p93, %p94
      %p96 = scmp.ne.s32.totalorder %s87, %s88
      %p97 = scmp.eq.s32.totalorder %s16, 0
      %p98 = por %p96, %p97
      %p99 = scmp.ne.s32.totalorder %s87, %s88
      %p100 = scmp.eq.s32.totalorder %s17, 5
      %p101 = por %p99, %p100
      %p103 = scmp.ne.s32.totalorder %s88, %s102
      %p104 = scmp.eq.s32.totalorder %s17, 0
      %p105 = por %p103, %p104
      %s106 = ssub.s32 %s18, %s30
      %p107 = scmp.eq.s32.totalorder %s106, 0
      %s109 = sadd.s32 %s108, 1
      %s110 = scalar_select %p107, %s108, %s109
      %p113 = pneg %p107
      %p114 = scmp.eq.s32.totalorder %s11, 5
      %p115 = por %p113, %p114
      %p116 = scmp.ne.s32.totalorder %s108, %s111
      %p117 = scmp.eq.s32.totalorder %s11, 0
      %p118 = por %p116, %p117
      %p119 = scmp.ne.s32.totalorder %s108, %s111
      %p120 = scmp.eq.s32.totalorder %s16, 5
      %p121 = por %p119, %p120
      %p122 = scmp.ne.s32.totalorder %s111, %s112
      %p123 = scmp.eq.s32.totalorder %s16, 0
      %p124 = por %p122, %p123
      %p125 = scmp.ne.s32.totalorder %s111, %s112
      %p126 = scmp.eq.s32.totalorder %s17, 5
      %p127 = por %p125, %p126
      %p129 = scmp.ne.s32.totalorder %s112, %s128
      %p130 = scmp.eq.s32.totalorder %s17, 0
      %p131 = por %p129, %p130
      %s132 = ssub.s32 %s18, %s30
      %p133 = scmp.eq.s32.totalorder %s132, 0
      %s135 = sadd.s32 %s134, 1
      %s136 = scalar_select %p133, %s134, %s135
      %p139 = pneg %p133
      %p140 = scmp.eq.s32.totalorder %s11, 5
      %p141 = por %p139, %p140
      %p142 = scmp.ne.s32.totalorder %s134, %s137
      %p143 = scmp.eq.s32.totalorder %s11, 0
      %p144 = por %p142, %p143
      %p145 = scmp.ne.s32.totalorder %s134, %s137
      %p146 = scmp.eq.s32.totalorder %s16, 5
      %p147 = por %p145, %p146
      %p148 = scmp.ne.s32.totalorder %s137, %s138
      %p149 = scmp.eq.s32.totalorder %s16, 0
      %p150 = por %p148, %p149
      %p151 = scmp.ne.s32.totalorder %s137, %s138
      %p152 = scmp.eq.s32.totalorder %s17, 5
      %p153 = por %p151, %p152
      %p155 = scmp.ne.s32.totalorder %s138, %s154
      %p156 = scmp.eq.s32.totalorder %s17, 0
      %p157 = por %p155, %p156
      %p158 = scmp.le.s32.totalorder 1, %s11
      %p159 = scmp.lt.s32.totalorder %s11, 7
      %p160 = pnand %p158, %p159
      %p161 = pneg %p160
      // Predicated region
      $region9: #{model_forward.2} parent=5 // pred_check
        _
      $region10: #{model_forward.2} parent=5 // pred_check_branch
        %163 = sbr.rel (%p160) target = $region12
      $region11: #{model_forward.2} parent=5 // pred_region
        %s164 = ssub.s32 %s11, 1
        // Predicated region
        $region13: #{model_forward.2} parent=11 // pred_check
          %p165 = pneg %p98
        $region14: #{model_forward.2} parent=11 // pred_check_branch
          %167 = sbr.rel (%p165) target = $region16
        $region15: #{model_forward.2} parent=11 // pred_region
          _
        $region16: #{model_forward.2} parent=11 // pred_fallthru
          _
      $region12: #{model_forward.2} parent=5 // pred_fallthru
        _
      %p168 = scmp.lt.s32.totalorder %s11, 6
      // Predicated region
      $region17: #{model_forward.2} parent=5 // pred_check
        %p169 = pneg %p168
      $region18: #{model_forward.2} parent=5 // pred_check_branch
        %171 = sbr.rel (%p169) target = $region20
      $region19: #{model_forward.2} parent=5 // pred_region
        // Predicated region
        $region21: #{model_forward.2} parent=19 // pred_check
          %p172 = pneg %p45
        $region22: #{model_forward.2} parent=19 // pred_check_branch
          %174 = sbr.rel (%p172) target = $region24
        $region23: #{model_forward.2} parent=19 // pred_region
          %s175 = sand.u32 %s35, 1
          %s176 = sand.u32 %s35, 1
          %s177 = smul.addr %s176, 64
          %s178 = scalar_lea.vmem [#allocation3], %s177
          %s179 = smul.u32 2, %s18
          %s180 = smul.u32 8, %s19
          %s181 = smul.addr %s179, 24
          %s182 = sadd.s32 %s180, %s181
          %s183 = smul.addr %s182, 4
          %s184 = scalar_lea.vmem %s0, %s183
          // Predicated region
          $region25: #{model_forward.2} parent=23 // pred_check
            _
          $region26: #{model_forward.2} parent=23 // pred_check_branch
            %186 = sbr.rel (0) target = $region28
          $region27: #{model_forward.2} parent=23 // pred_region
            // Predicated region
            $region29: #{model_forward.2} parent=27 // pred_check
              _
            $region30: #{model_forward.2} parent=27 // pred_check_branch
              %188 = sbr.rel (0) target = $region32
            $region31: #{model_forward.2} parent=27 // pred_region
              loop: start=0, step=1, limit=1
              $region33: #{model_forward.2} parent=31 // loop_pre_header
                _
              $region34: #{model_forward.2} parent=31 // loop_header
                %s190 = sphi 0, %s194
                %p191 = scmp.ge.s32.totalorder %s190, 1
                %s195 = sphi %s184, %s184
                %s196 = sphi %s178, %s178
              $region35: #{model_forward.2} parent=31 // loop_header_branch
                %193 = sbr.rel (%p191) target = $region39
              $region36: #{model_forward.2} parent=31 // loop_body
                %v197 = vld [vmem:[%s195] sm:$0xff]
                %198 = vst [vmem:[%s196] sm:$0xff] %v197
                %v199 = vld [vmem:[%s195 + $0x8] sm:$0xff]
                %200 = vst [vmem:[%s196 + $0x8] sm:$0xff] %v199
                %v201 = vld [vmem:[%s195 + $0x10] sm:$0xff]
                %202 = vst [vmem:[%s196 + $0x10] sm:$0xff] %v201
                %v203 = vld [vmem:[%s195 + $0x18] sm:$0xff]
                %204 = vst [vmem:[%s196 + $0x18] sm:$0xff] %v203
                %v205 = vld [vmem:[%s195 + $0x60] sm:$0xff]
                %206 = vst [vmem:[%s196 + $0x20] sm:$0xff] %v205
                %v207 = vld [vmem:[%s195 + $0x68] sm:$0xff]
                %208 = vst [vmem:[%s196 + $0x28] sm:$0xff] %v207
                %v209 = vld [vmem:[%s195 + $0x70] sm:$0xff]
                %210 = vst [vmem:[%s196 + $0x30] sm:$0xff] %v209
                %v211 = vld [vmem:[%s195 + $0x78] sm:$0xff]
                %212 = vst [vmem:[%s196 + $0x38] sm:$0xff] %v211
              $region37: #{model_forward.2} parent=31 // loop_footer
                %s194 = sadd.s32 1, %s190
              $region38: #{model_forward.2} parent=31 // loop_footer_branch
                %189 = sbr.rel target = $region34
              $region39: #{model_forward.2} parent=31 // loop_exit
                _
            $region32: #{model_forward.2} parent=27 // pred_fallthru
              _
            // Predicated region
            $region40: #{model_forward.2} parent=27 // pred_check
              _
            $region41: #{model_forward.2} parent=27 // pred_check_branch
              %214 = sbr.rel target = $region43
            $region42: #{model_forward.2} parent=27 // pred_region
              _
            $region43: #{model_forward.2} parent=27 // pred_fallthru
              _
          $region28: #{model_forward.2} parent=23 // pred_fallthru
            _
          %215 = vnop
        $region24: #{model_forward.2} parent=19 // pred_fallthru
          _
        // Predicated region
        $region44: #{model_forward.2} parent=19 // pred_check
          %p216 = pneg %p71
        $region45: #{model_forward.2} parent=19 // pred_check_branch
          %218 = sbr.rel (%p216) target = $region47
        $region46: #{model_forward.2} parent=19 // pred_region
          %s219 = smul.u32 128, %s19
          %p220 = scmp.lt.s32.totalorder %s219, 383
          %s221 = scalar_select %p220, %s219, 383
          %s222 = smul.addr %s221, 2
          %s223 = smul.addr %s222, 4
          %s224 = scalar_lea.vmem %s1, %s223
          %s225 = smul.u32 128, %s19
        $region47: #{model_forward.2} parent=19 // pred_fallthru
          _
      $region20: #{model_forward.2} parent=5 // pred_fallthru
        _
      %p226 = scmp.le.s32.totalorder 1, %s11
      %p227 = scmp.lt.s32.totalorder %s11, 7
      %p228 = pnand %p226, %p227
      %p229 = pneg %p228
      // Predicated region
      $region48: #{model_forward.2} parent=5 // pred_check
        _
      $region49: #{model_forward.2} parent=5 // pred_check_branch
        %231 = sbr.rel (%p228) target = $region51
      $region50: #{model_forward.2} parent=5 // pred_region
        %s232 = ssub.s32 %s11, 1
        %s233 = sand.u32 %s38, 1
        %s234 = sand.u32 %s38, 1
        %s235 = smul.addr %s234, 64
        %s236 = scalar_lea.vmem [#allocation3], %s235
        // Predicated region
        $region52: #{model_forward.2} parent=50 // pred_check
          %p237 = pneg %p51
        $region53: #{model_forward.2} parent=50 // pred_check_branch
          %239 = sbr.rel (%p237) target = $region55
        $region54: #{model_forward.2} parent=50 // pred_region
          _
        $region55: #{model_forward.2} parent=50 // pred_fallthru
          _
        %s240 = sand.u32 %s38, 1
        %s241 = sand.u32 %s38, 1
        %s242 = smul.addr %s241, 64
        %s243 = scalar_lea.vmem [#allocation3], %s242
        %p244 = pneg %p51
        %p245 = pneg %p48
        %s246 = smul.u32 128, %s21
        %p247 = scmp.lt.s32.totalorder %s246, 383
        %s248 = scalar_select %p247, %s246, 383
        %s249 = smul.addr %s248, 2
        %s250 = smul.addr %s249, 4
        %s251 = scalar_lea.vmem %s1, %s250
        %p252 = pneg %p77
        %p253 = pneg %p74
        %p254 = pneg %p98
        %p255 = pneg %p95
        %p256 = pneg %p124
        %p257 = pneg %p121
        %s258 = smul.u32 2, %s20
        %p259 = scmp.lt.s32.totalorder %s258, 3
        %s260 = scalar_select %p259, %s258, 3
        %s261 = smul.addr %s260, 2
        %s262 = smul.addr %s261, 4
        %s263 = scalar_lea.vmem %s3, %s262
        %p264 = pneg %p150
        %p265 = pneg %p147
        %p266 = scmp.lt.s32.totalorder %s20, 1
        %s267 = scalar_select %p266, %s20, 1
        %s268 = smul.addr %s267, 2
        %s269 = smul.addr %s268, 4
        %s270 = scalar_lea.vmem %s4, %s269
        %s271 = smul.u32 2, %s20
        %s272 = smul.u32 8, %s21
        %s273 = smul.u32 128, %s21
        %p274 = scmp.lt.s32.totalorder %s273, 383
        %s275 = scalar_select %p274, %s273, 383
        %s276 = smul.addr %s275, 2
        %s277 = smul.addr %s276, 4
        %s278 = scalar_lea.vmem %s1, %s277
        %s279 = smul.u32 128, %s21
        %s280 = smul.u32 2, %s20
        %p281 = scmp.lt.s32.totalorder %s280, 3
        %s282 = scalar_select %p281, %s280, 3
        %s283 = smul.addr %s282, 2
        %s284 = smul.addr %s283, 4
        %s285 = scalar_lea.vmem %s3, %s284
        %s286 = smul.u32 2, %s20
        %p287 = scmp.lt.s32.totalorder %s20, 1
        %s288 = scalar_select %p287, %s20, 1
        %s289 = smul.addr %s288, 2
        %s290 = smul.addr %s289, 4
        %s291 = scalar_lea.vmem %s4, %s290
        %p292 = scmp.eq.s32.totalorder %s21, 0
        // Predicated region
        $region56: #{model_forward.2} parent=50 // pred_check
          %p293 = pneg %p292
        $region57: #{model_forward.2} parent=50 // pred_check_branch
          %295 = sbr.rel (%p293) target = $region59
        $region58: #{model_forward.2} parent=50 // pred_region
          %296 = vst [vmem:[#allocation2] sm:$0xff] 0.0
          %297 = vst [vmem:[#allocation2 + $0x8] sm:$0xff] 0.0
          %298 = vst [vmem:[#allocation2 + $0x10] sm:$0xff] 0.0
          %299 = vst [vmem:[#allocation2 + $0x18] sm:$0xff] 0.0
        $region59: #{model_forward.2} parent=50 // pred_fallthru
          _
        %v300 = vld [vmem:[#allocation2] sm:$0xff]
        %v301 = vld [vmem:[#allocation2 + $0x8] sm:$0xff]
        %v302 = vld [vmem:[#allocation2 + $0x10] sm:$0xff]
        %v303 = vld [vmem:[#allocation2 + $0x18] sm:$0xff]
        %v304 = vld [vmem:[%s236] sm:$0xff]
        %v305 = vld [vmem:[%s236 + $0x8] sm:$0xff]
        %v306 = vld [vmem:[%s236 + $0x10] sm:$0xff]
        %v307 = vld [vmem:[%s236 + $0x18] sm:$0xff]
        %v308 = vld [vmem:[%s236 + $0x20] sm:$0xff]
        %v309 = vld [vmem:[%s236 + $0x28] sm:$0xff]
        %v310 = vld [vmem:[%s236 + $0x30] sm:$0xff]
        %v311 = vld [vmem:[%s236 + $0x38] sm:$0xff]
        %v312 = vld [vmem:[%s278] sm:$0xff]
        %v313 = vld [vmem:[%s278 + $0x8] sm:$0xff]
        %v314 = vld [vmem:[%s278 + $0x10] sm:$0xff]
        %v315 = vld [vmem:[%s278 + $0x18] sm:$0xff]
        %v316 = vld [vmem:[%s278 + $0x20] sm:$0xff]
        %v317 = vld [vmem:[%s278 + $0x28] sm:$0xff]
        %v318 = vld [vmem:[%s278 + $0x30] sm:$0xff]
        %v319 = vld [vmem:[%s278 + $0x38] sm:$0xff]
        %v320 = vld [vmem:[%s278 + $0x40] sm:$0xff]
        %v321 = vld [vmem:[%s278 + $0x48] sm:$0xff]
        %v322 = vld [vmem:[%s278 + $0x50] sm:$0xff]
        %v323 = vld [vmem:[%s278 + $0x58] sm:$0xff]
        %v324 = vld [vmem:[%s278 + $0x60] sm:$0xff]
        %v325 = vld [vmem:[%s278 + $0x68] sm:$0xff]
        %v326 = vld [vmem:[%s278 + $0x70] sm:$0xff]
        %v327 = vld [vmem:[%s278 + $0x78] sm:$0xff]
        %v328 = vld [vmem:[%s278 + $0x80] sm:$0xff]
        %v329 = vld [vmem:[%s278 + $0x88] sm:$0xff]
        %v330 = vld [vmem:[%s278 + $0x90] sm:$0xff]
        %v331 = vld [vmem:[%s278 + $0x98] sm:$0xff]
        %v332 = vld [vmem:[%s278 + $0xa0] sm:$0xff]
        %v333 = vld [vmem:[%s278 + $0xa8] sm:$0xff]
        %v334 = vld [vmem:[%s278 + $0xb0] sm:$0xff]
        %v335 = vld [vmem:[%s278 + $0xb8] sm:$0xff]
        %v336 = vld [vmem:[%s278 + $0xc0] sm:$0xff]
        %v337 = vld [vmem:[%s278 + $0xc8] sm:$0xff]
        %v338 = vld [vmem:[%s278 + $0xd0] sm:$0xff]
        %v339 = vld [vmem:[%s278 + $0xd8] sm:$0xff]
        %v340 = vld [vmem:[%s278 + $0xe0] sm:$0xff]
        %v341 = vld [vmem:[%s278 + $0xe8] sm:$0xff]
        %v342 = vld [vmem:[%s278 + $0xf0] sm:$0xff]
        %v343 = vld [vmem:[%s278 + $0xf8] sm:$0xff]
        %v344 = vld [vmem:[%s278 + $0x100] sm:$0xff]
        %v345 = vld [vmem:[%s278 + $0x108] sm:$0xff]
        %v346 = vld [vmem:[%s278 + $0x110] sm:$0xff]
        %v347 = vld [vmem:[%s278 + $0x118] sm:$0xff]
        %v348 = vld [vmem:[%s278 + $0x120] sm:$0xff]
        %v349 = vld [vmem:[%s278 + $0x128] sm:$0xff]
        %v350 = vld [vmem:[%s278 + $0x130] sm:$0xff]
        %v351 = vld [vmem:[%s278 + $0x138] sm:$0xff]
        %v352 = vld [vmem:[%s278 + $0x140] sm:$0xff]
        %v353 = vld [vmem:[%s278 + $0x148] sm:$0xff]
        %v354 = vld [vmem:[%s278 + $0x150] sm:$0xff]
        %v355 = vld [vmem:[%s278 + $0x158] sm:$0xff]
        %v356 = vld [vmem:[%s278 + $0x160] sm:$0xff]
        %v357 = vld [vmem:[%s278 + $0x168] sm:$0xff]
        %v358 = vld [vmem:[%s278 + $0x170] sm:$0xff]
        %v359 = vld [vmem:[%s278 + $0x178] sm:$0xff]
        %v360 = vld [vmem:[%s278 + $0x180] sm:$0xff]
        %v361 = vld [vmem:[%s278 + $0x188] sm:$0xff]
        %v362 = vld [vmem:[%s278 + $0x190] sm:$0xff]
        %v363 = vld [vmem:[%s278 + $0x198] sm:$0xff]
        %v364 = vld [vmem:[%s278 + $0x1a0] sm:$0xff]
        %v365 = vld [vmem:[%s278 + $0x1a8] sm:$0xff]
        %v366 = vld [vmem:[%s278 + $0x1b0] sm:$0xff]
        %v367 = vld [vmem:[%s278 + $0x1b8] sm:$0xff]
        %v368 = vld [vmem:[%s278 + $0x1c0] sm:$0xff]
        %v369 = vld [vmem:[%s278 + $0x1c8] sm:$0xff]
        %v370 = vld [vmem:[%s278 + $0x1d0] sm:$0xff]
        %v371 = vld [vmem:[%s278 + $0x1d8] sm:$0xff]
        %v372 = vld [vmem:[%s278 + $0x1e0] sm:$0xff]
        %v373 = vld [vmem:[%s278 + $0x1e8] sm:$0xff]
        %v374 = vld [vmem:[%s278 + $0x1f0] sm:$0xff]
        %v375 = vld [vmem:[%s278 + $0x1f8] sm:$0xff]
        %v376 = vld [vmem:[%s278 + $0x200] sm:$0xff]
        %v377 = vld [vmem:[%s278 + $0x208] sm:$0xff]
        %v378 = vld [vmem:[%s278 + $0x210] sm:$0xff]
        %v379 = vld [vmem:[%s278 + $0x218] sm:$0xff]
        %v380 = vld [vmem:[%s278 + $0x220] sm:$0xff]
        %v381 = vld [vmem:[%s278 + $0x228] sm:$0xff]
        %v382 = vld [vmem:[%s278 + $0x230] sm:$0xff]
        %v383 = vld [vmem:[%s278 + $0x238] sm:$0xff]
        %v384 = vld [vmem:[%s278 + $0x240] sm:$0xff]
        %v385 = vld [vmem:[%s278 + $0x248] sm:$0xff]
        %v386 = vld [vmem:[%s278 + $0x250] sm:$0xff]
        %v387 = vld [vmem:[%s278 + $0x258] sm:$0xff]
        %v388 = vld [vmem:[%s278 + $0x260] sm:$0xff]
        %v389 = vld [vmem:[%s278 + $0x268] sm:$0xff]
        %v390 = vld [vmem:[%s278 + $0x270] sm:$0xff]
        %v391 = vld [vmem:[%s278 + $0x278] sm:$0xff]
        %v392 = vld [vmem:[%s278 + $0x280] sm:$0xff]
        %v393 = vld [vmem:[%s278 + $0x288] sm:$0xff]
        %v394 = vld [vmem:[%s278 + $0x290] sm:$0xff]
        %v395 = vld [vmem:[%s278 + $0x298] sm:$0xff]
        %v396 = vld [vmem:[%s278 + $0x2a0] sm:$0xff]
        %v397 = vld [vmem:[%s278 + $0x2a8] sm:$0xff]
        %v398 = vld [vmem:[%s278 + $0x2b0] sm:$0xff]
        %v399 = vld [vmem:[%s278 + $0x2b8] sm:$0xff]
        %v400 = vld [vmem:[%s278 + $0x2c0] sm:$0xff]
        %v401 = vld [vmem:[%s278 + $0x2c8] sm:$0xff]
        %v402 = vld [vmem:[%s278 + $0x2d0] sm:$0xff]
        %v403 = vld [vmem:[%s278 + $0x2d8] sm:$0xff]
        %v404 = vld [vmem:[%s278 + $0x2e0] sm:$0xff]
        %v405 = vld [vmem:[%s278 + $0x2e8] sm:$0xff]
        %v406 = vld [vmem:[%s278 + $0x2f0] sm:$0xff]
        %v407 = vld [vmem:[%s278 + $0x2f8] sm:$0xff]
        %v408 = vld [vmem:[%s278 + $0x300] sm:$0xff]
        %v409 = vld [vmem:[%s278 + $0x308] sm:$0xff]
        %v410 = vld [vmem:[%s278 + $0x310] sm:$0xff]
        %v411 = vld [vmem:[%s278 + $0x318] sm:$0xff]
        %v412 = vld [vmem:[%s278 + $0x320] sm:$0xff]
        %v413 = vld [vmem:[%s278 + $0x328] sm:$0xff]
        %v414 = vld [vmem:[%s278 + $0x330] sm:$0xff]
        %v415 = vld [vmem:[%s278 + $0x338] sm:$0xff]
        %v416 = vld [vmem:[%s278 + $0x340] sm:$0xff]
        %v417 = vld [vmem:[%s278 + $0x348] sm:$0xff]
        %v418 = vld [vmem:[%s278 + $0x350] sm:$0xff]
        %v419 = vld [vmem:[%s278 + $0x358] sm:$0xff]
        %v420 = vld [vmem:[%s278 + $0x360] sm:$0xff]
        %v421 = vld [vmem:[%s278 + $0x368] sm:$0xff]
        %v422 = vld [vmem:[%s278 + $0x370] sm:$0xff]
        %v423 = vld [vmem:[%s278 + $0x378] sm:$0xff]
        %v424 = vld [vmem:[%s278 + $0x380] sm:$0xff]
        %v425 = vld [vmem:[%s278 + $0x388] sm:$0xff]
        %v426 = vld [vmem:[%s278 + $0x390] sm:$0xff]
        %v427 = vld [vmem:[%s278 + $0x398] sm:$0xff]
        %v428 = vld [vmem:[%s278 + $0x3a0] sm:$0xff]
        %v429 = vld [vmem:[%s278 + $0x3a8] sm:$0xff]
        %v430 = vld [vmem:[%s278 + $0x3b0] sm:$0xff]
        %v431 = vld [vmem:[%s278 + $0x3b8] sm:$0xff]
        %v432 = vld [vmem:[%s278 + $0x3c0] sm:$0xff]
        %v433 = vld [vmem:[%s278 + $0x3c8] sm:$0xff]
        %v434 = vld [vmem:[%s278 + $0x3d0] sm:$0xff]
        %v435 = vld [vmem:[%s278 + $0x3d8] sm:$0xff]
        %v436 = vld [vmem:[%s278 + $0x3e0] sm:$0xff]
        %v437 = vld [vmem:[%s278 + $0x3e8] sm:$0xff]
        %v438 = vld [vmem:[%s278 + $0x3f0] sm:$0xff]
        %v439 = vld [vmem:[%s278 + $0x3f8] sm:$0xff]
        %v448 = vunpack.c.l.b16 %v304
        %v449 = vunpack.c.h.b16 %v304
        %v450 = vunpack.c.l.b16 %v305
        %v451 = vunpack.c.h.b16 %v305
        %v452 = vunpack.c.l.b16 %v306
        %v453 = vunpack.c.h.b16 %v306
        %v454 = vunpack.c.l.b16 %v307
        %v455 = vunpack.c.h.b16 %v307
        %v456 = vunpack.c.l.b16 %v308
        %v457 = vunpack.c.h.b16 %v308
        %v458 = vunpack.c.l.b16 %v309
        %v459 = vunpack.c.h.b16 %v309
        %v460 = vunpack.c.l.b16 %v310
        %v461 = vunpack.c.h.b16 %v310
        %v462 = vunpack.c.l.b16 %v311
        %v463 = vunpack.c.h.b16 %v311
        %v464 = vpack.c.b16 %v456, %v448
        %v465 = vpack.c.b16 %v457, %v449
        %v466 = vpack.c.b16 %v458, %v450
        %v467 = vpack.c.b16 %v459, %v451
        %v468 = vpack.c.b16 %v460, %v452
        %v469 = vpack.c.b16 %v461, %v453
        %v470 = vpack.c.b16 %v462, %v454
        %v471 = vpack.c.b16 %v463, %v455
        %v608 = vunpack.c.l.b16 %v312
        %v609 = vunpack.c.h.b16 %v312
        %v610 = vunpack.c.l.b16 %v313
        %v611 = vunpack.c.h.b16 %v313
        %v612 = vunpack.c.l.b16 %v314
        %v613 = vunpack.c.h.b16 %v314
        %v614 = vunpack.c.l.b16 %v315
        %v615 = vunpack.c.h.b16 %v315
        %v616 = vunpack.c.l.b16 %v316
        %v617 = vunpack.c.h.b16 %v316
        %v618 = vunpack.c.l.b16 %v317
        %v619 = vunpack.c.h.b16 %v317
        %v620 = vunpack.c.l.b16 %v318
        %v621 = vunpack.c.h.b16 %v318
        %v622 = vunpack.c.l.b16 %v319
        %v623 = vunpack.c.h.b16 %v319
        %v624 = vunpack.c.l.b16 %v320
        %v625 = vunpack.c.h.b16 %v320
        %v626 = vunpack.c.l.b16 %v321
        %v627 = vunpack.c.h.b16 %v321
        %v628 = vunpack.c.l.b16 %v322
        %v629 = vunpack.c.h.b16 %v322
        %v630 = vunpack.c.l.b16 %v323
        %v631 = vunpack.c.h.b16 %v323
        %v632 = vunpack.c.l.b16 %v324
        %v633 = vunpack.c.h.b16 %v324
        %v634 = vunpack.c.l.b16 %v325
        %v635 = vunpack.c.h.b16 %v325
        %v636 = vunpack.c.l.b16 %v326
        %v637 = vunpack.c.h.b16 %v326
        %v638 = vunpack.c.l.b16 %v327
        %v639 = vunpack.c.h.b16 %v327
        %v640 = vunpack.c.l.b16 %v328
        %v641 = vunpack.c.h.b16 %v328
        %v642 = vunpack.c.l.b16 %v329
        %v643 = vunpack.c.h.b16 %v329
        %v644 = vunpack.c.l.b16 %v330
        %v645 = vunpack.c.h.b16 %v330
        %v646 = vunpack.c.l.b16 %v331
        %v647 = vunpack.c.h.b16 %v331
        %v648 = vunpack.c.l.b16 %v332
        %v649 = vunpack.c.h.b16 %v332
        %v650 = vunpack.c.l.b16 %v333
        %v651 = vunpack.c.h.b16 %v333
        %v652 = vunpack.c.l.b16 %v334
        %v653 = vunpack.c.h.b16 %v334
        %v654 = vunpack.c.l.b16 %v335
        %v655 = vunpack.c.h.b16 %v335
        %v656 = vunpack.c.l.b16 %v336
        %v657 = vunpack.c.h.b16 %v336
        %v658 = vunpack.c.l.b16 %v337
        %v659 = vunpack.c.h.b16 %v337
        %v660 = vunpack.c.l.b16 %v338
        %v661 = vunpack.c.h.b16 %v338
        %v662 = vunpack.c.l.b16 %v339
        %v663 = vunpack.c.h.b16 %v339
        %v664 = vunpack.c.l.b16 %v340
        %v665 = vunpack.c.h.b16 %v340
        %v666 = vunpack.c.l.b16 %v341
        %v667 = vunpack.c.h.b16 %v341
        %v668 = vunpack.c.l.b16 %v342
        %v669 = vunpack.c.h.b16 %v342
        %v670 = vunpack.c.l.b16 %v343
        %v671 = vunpack.c.h.b16 %v343
        %v672 = vunpack.c.l.b16 %v344
        %v673 = vunpack.c.h.b16 %v344
        %v674 = vunpack.c.l.b16 %v345
        %v675 = vunpack.c.h.b16 %v345
        %v676 = vunpack.c.l.b16 %v346
        %v677 = vunpack.c.h.b16 %v346
        %v678 = vunpack.c.l.b16 %v347
        %v679 = vunpack.c.h.b16 %v347
        %v680 = vunpack.c.l.b16 %v348
        %v681 = vunpack.c.h.b16 %v348
        %v682 = vunpack.c.l.b16 %v349
        %v683 = vunpack.c.h.b16 %v349
        %v684 = vunpack.c.l.b16 %v350
        %v685 = vunpack.c.h.b16 %v350
        %v686 = vunpack.c.l.b16 %v351
        %v687 = vunpack.c.h.b16 %v351
        %v688 = vunpack.c.l.b16 %v352
        %v689 = vunpack.c.h.b16 %v352
        %v690 = vunpack.c.l.b16 %v353
        %v691 = vunpack.c.h.b16 %v353
        %v692 = vunpack.c.l.b16 %v354
        %v693 = vunpack.c.h.b16 %v354
        %v694 = vunpack.c.l.b16 %v355
        %v695 = vunpack.c.h.b16 %v355
        %v696 = vunpack.c.l.b16 %v356
        %v697 = vunpack.c.h.b16 %v356
        %v698 = vunpack.c.l.b16 %v357
        %v699 = vunpack.c.h.b16 %v357
        %v700 = vunpack.c.l.b16 %v358
        %v701 = vunpack.c.h.b16 %v358
        %v702 = vunpack.c.l.b16 %v359
        %v703 = vunpack.c.h.b16 %v359
        %v704 = vunpack.c.l.b16 %v360
        %v705 = vunpack.c.h.b16 %v360
        %v706 = vunpack.c.l.b16 %v361
        %v707 = vunpack.c.h.b16 %v361
        %v708 = vunpack.c.l.b16 %v362
        %v709 = vunpack.c.h.b16 %v362
        %v710 = vunpack.c.l.b16 %v363
        %v711 = vunpack.c.h.b16 %v363
        %v712 = vunpack.c.l.b16 %v364
        %v713 = vunpack.c.h.b16 %v364
        %v714 = vunpack.c.l.b16 %v365
        %v715 = vunpack.c.h.b16 %v365
        %v716 = vunpack.c.l.b16 %v366
        %v717 = vunpack.c.h.b16 %v366
        %v718 = vunpack.c.l.b16 %v367
        %v719 = vunpack.c.h.b16 %v367
        %v720 = vunpack.c.l.b16 %v368
        %v721 = vunpack.c.h.b16 %v368
        %v722 = vunpack.c.l.b16 %v369
        %v723 = vunpack.c.h.b16 %v369
        %v724 = vunpack.c.l.b16 %v370
        %v725 = vunpack.c.h.b16 %v370
        %v726 = vunpack.c.l.b16 %v371
        %v727 = vunpack.c.h.b16 %v371
        %v728 = vunpack.c.l.b16 %v372
        %v729 = vunpack.c.h.b16 %v372
        %v730 = vunpack.c.l.b16 %v373
        %v731 = vunpack.c.h.b16 %v373
        %v732 = vunpack.c.l.b16 %v374
        %v733 = vunpack.c.h.b16 %v374
        %v734 = vunpack.c.l.b16 %v375
        %v735 = vunpack.c.h.b16 %v375
        %v736 = vunpack.c.l.b16 %v376
        %v737 = vunpack.c.h.b16 %v376
        %v738 = vunpack.c.l.b16 %v377
        %v739 = vunpack.c.h.b16 %v377
        %v740 = vunpack.c.l.b16 %v378
        %v741 = vunpack.c.h.b16 %v378
        %v742 = vunpack.c.l.b16 %v379
        %v743 = vunpack.c.h.b16 %v379
        %v744 = vunpack.c.l.b16 %v380
        %v745 = vunpack.c.h.b16 %v380
        %v746 = vunpack.c.l.b16 %v381
        %v747 = vunpack.c.h.b16 %v381
        %v748 = vunpack.c.l.b16 %v382
        %v749 = vunpack.c.h.b16 %v382
        %v750 = vunpack.c.l.b16 %v383
        %v751 = vunpack.c.h.b16 %v383
        %v752 = vunpack.c.l.b16 %v384
        %v753 = vunpack.c.h.b16 %v384
        %v754 = vunpack.c.l.b16 %v385
        %v755 = vunpack.c.h.b16 %v385
        %v756 = vunpack.c.l.b16 %v386
        %v757 = vunpack.c.h.b16 %v386
        %v758 = vunpack.c.l.b16 %v387
        %v759 = vunpack.c.h.b16 %v387
        %v760 = vunpack.c.l.b16 %v388
        %v761 = vunpack.c.h.b16 %v388
        %v762 = vunpack.c.l.b16 %v389
        %v763 = vunpack.c.h.b16 %v389
        %v764 = vunpack.c.l.b16 %v390
        %v765 = vunpack.c.h.b16 %v390
        %v766 = vunpack.c.l.b16 %v391
        %v767 = vunpack.c.h.b16 %v391
        %v768 = vunpack.c.l.b16 %v392
        %v769 = vunpack.c.h.b16 %v392
        %v770 = vunpack.c.l.b16 %v393
        %v771 = vunpack.c.h.b16 %v393
        %v772 = vunpack.c.l.b16 %v394
        %v773 = vunpack.c.h.b16 %v394
        %v774 = vunpack.c.l.b16 %v395
        %v775 = vunpack.c.h.b16 %v395
        %v776 = vunpack.c.l.b16 %v396
        %v777 = vunpack.c.h.b16 %v396
        %v778 = vunpack.c.l.b16 %v397
        %v779 = vunpack.c.h.b16 %v397
        %v780 = vunpack.c.l.b16 %v398
        %v781 = vunpack.c.h.b16 %v398
        %v782 = vunpack.c.l.b16 %v399
        %v783 = vunpack.c.h.b16 %v399
        %v784 = vunpack.c.l.b16 %v400
        %v785 = vunpack.c.h.b16 %v400
        %v786 = vunpack.c.l.b16 %v401
        %v787 = vunpack.c.h.b16 %v401
        %v788 = vunpack.c.l.b16 %v402
        %v789 = vunpack.c.h.b16 %v402
        %v790 = vunpack.c.l.b16 %v403
        %v791 = vunpack.c.h.b16 %v403
        %v792 = vunpack.c.l.b16 %v404
        %v793 = vunpack.c.h.b16 %v404
        %v794 = vunpack.c.l.b16 %v405
        %v795 = vunpack.c.h.b16 %v405
        %v796 = vunpack.c.l.b16 %v406
        %v797 = vunpack.c.h.b16 %v406
        %v798 = vunpack.c.l.b16 %v407
        %v799 = vunpack.c.h.b16 %v407
        %v800 = vunpack.c.l.b16 %v408
        %v801 = vunpack.c.h.b16 %v408
        %v802 = vunpack.c.l.b16 %v409
        %v803 = vunpack.c.h.b16 %v409
        %v804 = vunpack.c.l.b16 %v410
        %v805 = vunpack.c.h.b16 %v410
        %v806 = vunpack.c.l.b16 %v411
        %v807 = vunpack.c.h.b16 %v411
        %v808 = vunpack.c.l.b16 %v412
        %v809 = vunpack.c.h.b16 %v412
        %v810 = vunpack.c.l.b16 %v413
        %v811 = vunpack.c.h.b16 %v413
        %v812 = vunpack.c.l.b16 %v414
        %v813 = vunpack.c.h.b16 %v414
        %v814 = vunpack.c.l.b16 %v415
        %v815 = vunpack.c.h.b16 %v415
        %v816 = vunpack.c.l.b16 %v416
        %v817 = vunpack.c.h.b16 %v416
        %v818 = vunpack.c.l.b16 %v417
        %v819 = vunpack.c.h.b16 %v417
        %v820 = vunpack.c.l.b16 %v418
        %v821 = vunpack.c.h.b16 %v418
        %v822 = vunpack.c.l.b16 %v419
        %v823 = vunpack.c.h.b16 %v419
        %v824 = vunpack.c.l.b16 %v420
        %v825 = vunpack.c.h.b16 %v420
        %v826 = vunpack.c.l.b16 %v421
        %v827 = vunpack.c.h.b16 %v421
        %v828 = vunpack.c.l.b16 %v422
        %v829 = vunpack.c.h.b16 %v422
        %v830 = vunpack.c.l.b16 %v423
        %v831 = vunpack.c.h.b16 %v423
        %v832 = vunpack.c.l.b16 %v424
        %v833 = vunpack.c.h.b16 %v424
        %v834 = vunpack.c.l.b16 %v425
        %v835 = vunpack.c.h.b16 %v425
        %v836 = vunpack.c.l.b16 %v426
        %v837 = vunpack.c.h.b16 %v426
        %v838 = vunpack.c.l.b16 %v427
        %v839 = vunpack.c.h.b16 %v427
        %v840 = vunpack.c.l.b16 %v428
        %v841 = vunpack.c.h.b16 %v428
        %v842 = vunpack.c.l.b16 %v429
        %v843 = vunpack.c.h.b16 %v429
        %v844 = vunpack.c.l.b16 %v430
        %v845 = vunpack.c.h.b16 %v430
        %v846 = vunpack.c.l.b16 %v431
        %v847 = vunpack.c.h.b16 %v431
        %v848 = vunpack.c.l.b16 %v432
        %v849 = vunpack.c.h.b16 %v432
        %v850 = vunpack.c.l.b16 %v433
        %v851 = vunpack.c.h.b16 %v433
        %v852 = vunpack.c.l.b16 %v434
        %v853 = vunpack.c.h.b16 %v434
        %v854 = vunpack.c.l.b16 %v435
        %v855 = vunpack.c.h.b16 %v435
        %v856 = vunpack.c.l.b16 %v436
        %v857 = vunpack.c.h.b16 %v436
        %v858 = vunpack.c.l.b16 %v437
        %v859 = vunpack.c.h.b16 %v437
        %v860 = vunpack.c.l.b16 %v438
        %v861 = vunpack.c.h.b16 %v438
        %v862 = vunpack.c.l.b16 %v439
        %v863 = vunpack.c.h.b16 %v439
        %v864 = vpack.c.b16 %v610, %v608
        %v865 = vpack.c.b16 %v611, %v609
        %v866 = vpack.c.b16 %v614, %v612
        %v867 = vpack.c.b16 %v615, %v613
        %v868 = vpack.c.b16 %v618, %v616
        %v869 = vpack.c.b16 %v619, %v617
        %v870 = vpack.c.b16 %v622, %v620
        %v871 = vpack.c.b16 %v623, %v621
        %v872 = vpack.c.b16 %v626, %v624
        %v873 = vpack.c.b16 %v627, %v625
        %v874 = vpack.c.b16 %v630, %v628
        %v875 = vpack.c.b16 %v631, %v629
        %v876 = vpack.c.b16 %v634, %v632
        %v877 = vpack.c.b16 %v635, %v633
        %v878 = vpack.c.b16 %v638, %v636
        %v879 = vpack.c.b16 %v639, %v637
        %v880 = vpack.c.b16 %v642, %v640
        %v881 = vpack.c.b16 %v643, %v641
        %v882 = vpack.c.b16 %v646, %v644
        %v883 = vpack.c.b16 %v647, %v645
        %v884 = vpack.c.b16 %v650, %v648
        %v885 = vpack.c.b16 %v651, %v649
        %v886 = vpack.c.b16 %v654, %v652
        %v887 = vpack.c.b16 %v655, %v653
        %v888 = vpack.c.b16 %v658, %v656
        %v889 = vpack.c.b16 %v659, %v657
        %v890 = vpack.c.b16 %v662, %v660
        %v891 = vpack.c.b16 %v663, %v661
        %v892 = vpack.c.b16 %v666, %v664
        %v893 = vpack.c.b16 %v667, %v665
        %v894 = vpack.c.b16 %v670, %v668
        %v895 = vpack.c.b16 %v671, %v669
        %v896 = vpack.c.b16 %v674, %v672
        %v897 = vpack.c.b16 %v675, %v673
        %v898 = vpack.c.b16 %v678, %v676
        %v899 = vpack.c.b16 %v679, %v677
        %v900 = vpack.c.b16 %v682, %v680
        %v901 = vpack.c.b16 %v683, %v681
        %v902 = vpack.c.b16 %v686, %v684
        %v903 = vpack.c.b16 %v687, %v685
        %v904 = vpack.c.b16 %v690, %v688
        %v905 = vpack.c.b16 %v691, %v689
        %v906 = vpack.c.b16 %v694, %v692
        %v907 = vpack.c.b16 %v695, %v693
        %v908 = vpack.c.b16 %v698, %v696
        %v909 = vpack.c.b16 %v699, %v697
        %v910 = vpack.c.b16 %v702, %v700
        %v911 = vpack.c.b16 %v703, %v701
        %v912 = vpack.c.b16 %v706, %v704
        %v913 = vpack.c.b16 %v707, %v705
        %v914 = vpack.c.b16 %v710, %v708
        %v915 = vpack.c.b16 %v711, %v709
        %v916 = vpack.c.b16 %v714, %v712
        %v917 = vpack.c.b16 %v715, %v713
        %v918 = vpack.c.b16 %v718, %v716
        %v919 = vpack.c.b16 %v719, %v717
        %v920 = vpack.c.b16 %v722, %v720
        %v921 = vpack.c.b16 %v723, %v721
        %v922 = vpack.c.b16 %v726, %v724
        %v923 = vpack.c.b16 %v727, %v725
        %v924 = vpack.c.b16 %v730, %v728
        %v925 = vpack.c.b16 %v731, %v729
        %v926 = vpack.c.b16 %v734, %v732
        %v927 = vpack.c.b16 %v735, %v733
        %v928 = vpack.c.b16 %v738, %v736
        %v929 = vpack.c.b16 %v739, %v737
        %v930 = vpack.c.b16 %v742, %v740
        %v931 = vpack.c.b16 %v743, %v741
        %v932 = vpack.c.b16 %v746, %v744
        %v933 = vpack.c.b16 %v747, %v745
        %v934 = vpack.c.b16 %v750, %v748
        %v935 = vpack.c.b16 %v751, %v749
        %v936 = vpack.c.b16 %v754, %v752
        %v937 = vpack.c.b16 %v755, %v753
        %v938 = vpack.c.b16 %v758, %v756
        %v939 = vpack.c.b16 %v759, %v757
        %v940 = vpack.c.b16 %v762, %v760
        %v941 = vpack.c.b16 %v763, %v761
        %v942 = vpack.c.b16 %v766, %v764
        %v943 = vpack.c.b16 %v767, %v765
        %v944 = vpack.c.b16 %v770, %v768
        %v945 = vpack.c.b16 %v771, %v769
        %v946 = vpack.c.b16 %v774, %v772
        %v947 = vpack.c.b16 %v775, %v773
        %v948 = vpack.c.b16 %v778, %v776
        %v949 = vpack.c.b16 %v779, %v777
        %v950 = vpack.c.b16 %v782, %v780
        %v951 = vpack.c.b16 %v783, %v781
        %v952 = vpack.c.b16 %v786, %v784
        %v953 = vpack.c.b16 %v787, %v785
        %v954 = vpack.c.b16 %v790, %v788
        %v955 = vpack.c.b16 %v791, %v789
        %v956 = vpack.c.b16 %v794, %v792
        %v957 = vpack.c.b16 %v795, %v793
        %v958 = vpack.c.b16 %v798, %v796
        %v959 = vpack.c.b16 %v799, %v797
        %v960 = vpack.c.b16 %v802, %v800
        %v961 = vpack.c.b16 %v803, %v801
        %v962 = vpack.c.b16 %v806, %v804
        %v963 = vpack.c.b16 %v807, %v805
        %v964 = vpack.c.b16 %v810, %v808
        %v965 = vpack.c.b16 %v811, %v809
        %v966 = vpack.c.b16 %v814, %v812
        %v967 = vpack.c.b16 %v815, %v813
        %v968 = vpack.c.b16 %v818, %v816
        %v969 = vpack.c.b16 %v819, %v817
        %v970 = vpack.c.b16 %v822, %v820
        %v971 = vpack.c.b16 %v823, %v821
        %v972 = vpack.c.b16 %v826, %v824
        %v973 = vpack.c.b16 %v827, %v825
        %v974 = vpack.c.b16 %v830, %v828
        %v975 = vpack.c.b16 %v831, %v829
        %v976 = vpack.c.b16 %v834, %v832
        %v977 = vpack.c.b16 %v835, %v833
        %v978 = vpack.c.b16 %v838, %v836
        %v979 = vpack.c.b16 %v839, %v837
        %v980 = vpack.c.b16 %v842, %v840
        %v981 = vpack.c.b16 %v843, %v841
        %v982 = vpack.c.b16 %v846, %v844
        %v983 = vpack.c.b16 %v847, %v845
        %v984 = vpack.c.b16 %v850, %v848
        %v985 = vpack.c.b16 %v851, %v849
        %v986 = vpack.c.b16 %v854, %v852
        %v987 = vpack.c.b16 %v855, %v853
        %v988 = vpack.c.b16 %v858, %v856
        %v989 = vpack.c.b16 %v859, %v857
        %v990 = vpack.c.b16 %v862, %v860
        %v991 = vpack.c.b16 %v863, %v861
        %1120 = vmatprep.subr.bf16.mxu0 %v865
        %1121 = vmatpush1.bf16.msra.mxu0 %v864
        %1122 = vmatprep.subr.bf16.mxu0 %v867
        %1123 = vmatpush1.bf16.msra.mxu0 %v866
        %1124 = vmatprep.subr.bf16.mxu0 %v869
        %1125 = vmatpush1.bf16.msra.mxu0 %v868
        %1126 = vmatprep.subr.bf16.mxu0 %v871
        %1127 = vmatpush1.bf16.msra.mxu0 %v870
        %1128 = vmatprep.subr.bf16.mxu0 %v873
        %1129 = vmatpush1.bf16.msra.mxu0 %v872
        %1130 = vmatprep.subr.bf16.mxu0 %v875
        %1131 = vmatpush1.bf16.msra.mxu0 %v874
        %1132 = vmatprep.subr.bf16.mxu0 %v877
        %1133 = vmatpush1.bf16.msra.mxu0 %v876
        %1134 = vmatprep.subr.bf16.mxu0 %v879
        %1135 = vmatpush1.bf16.msra.mxu0 %v878
        %1136 = vmatprep.subr.bf16.mxu0 %v881
        %1137 = vmatpush1.bf16.msra.mxu0 %v880
        %1138 = vmatprep.subr.bf16.mxu0 %v883
        %1139 = vmatpush1.bf16.msra.mxu0 %v882
        %1140 = vmatprep.subr.bf16.mxu0 %v885
        %1141 = vmatpush1.bf16.msra.mxu0 %v884
        %1142 = vmatprep.subr.bf16.mxu0 %v887
        %1143 = vmatpush1.bf16.msra.mxu0 %v886
        %1144 = vmatprep.subr.bf16.mxu0 %v889
        %1145 = vmatpush1.bf16.msra.mxu0 %v888
        %1146 = vmatprep.subr.bf16.mxu0 %v891
        %1147 = vmatpush1.bf16.msra.mxu0 %v890
        %1148 = vmatprep.subr.bf16.mxu0 %v893
        %1149 = vmatpush1.bf16.msra.mxu0 %v892
        %1150 = vmatprep.subr.bf16.mxu0 %v895
        %1151 = vmatpush1.bf16.msra.mxu0 %v894
        %1152 = vmatprep.mubr.bf16.mxu0 %v465
        %1153 = vmatmul.mubr.bf16.gmra.mrb[0].mxu0 %v464
        %v1154 = vpop.f32.mrb[0].mxu0
        %v1155 = vadd.f32 0.0, %v1154
        %v1156 = vpop.f32.mrb[0].mxu0
        %v1157 = vadd.f32 0.0, %v1156
        %v1158 = vpop.f32.mrb[0].mxu0
        %v1159 = vadd.f32 0.0, %v1158
        %v1160 = vpop.f32.mrb[0].mxu0
        %v1161 = vadd.f32 0.0, %v1160
        %1162 = vdwg.mxu0
        %1163 = vmatprep.subr.bf16.mxu0 %v897
        %1164 = vmatpush1.bf16.msra.mxu0 %v896
        %1165 = vmatprep.subr.bf16.mxu0 %v899
        %1166 = vmatpush1.bf16.msra.mxu0 %v898
        %1167 = vmatprep.subr.bf16.mxu0 %v901
        %1168 = vmatpush1.bf16.msra.mxu0 %v900
        %1169 = vmatprep.subr.bf16.mxu0 %v903
        %1170 = vmatpush1.bf16.msra.mxu0 %v902
        %1171 = vmatprep.subr.bf16.mxu0 %v905
        %1172 = vmatpush1.bf16.msra.mxu0 %v904
        %1173 = vmatprep.subr.bf16.mxu0 %v907
        %1174 = vmatpush1.bf16.msra.mxu0 %v906
        %1175 = vmatprep.subr.bf16.mxu0 %v909
        %1176 = vmatpush1.bf16.msra.mxu0 %v908
        %1177 = vmatprep.subr.bf16.mxu0 %v911
        %1178 = vmatpush1.bf16.msra.mxu0 %v910
        %1179 = vmatprep.subr.bf16.mxu0 %v913
        %1180 = vmatpush1.bf16.msra.mxu0 %v912
        %1181 = vmatprep.subr.bf16.mxu0 %v915
        %1182 = vmatpush1.bf16.msra.mxu0 %v914
        %1183 = vmatprep.subr.bf16.mxu0 %v917
        %1184 = vmatpush1.bf16.msra.mxu0 %v916
        %1185 = vmatprep.subr.bf16.mxu0 %v919
        %1186 = vmatpush1.bf16.msra.mxu0 %v918
        %1187 = vmatprep.subr.bf16.mxu0 %v921
        %1188 = vmatpush1.bf16.msra.mxu0 %v920
        %1189 = vmatprep.subr.bf16.mxu0 %v923
        %1190 = vmatpush1.bf16.msra.mxu0 %v922
        %1191 = vmatprep.subr.bf16.mxu0 %v925
        %1192 = vmatpush1.bf16.msra.mxu0 %v924
        %1193 = vmatprep.subr.bf16.mxu0 %v927
        %1194 = vmatpush1.bf16.msra.mxu0 %v926
        %1195 = vmatprep.mubr.bf16.mxu0 %v467
        %1196 = vmatmul.mubr.bf16.gmra.mrb[0].mxu0 %v466
        %v1197 = vpop.f32.mrb[0].mxu0
        %v1198 = vadd.f32 %v1155, %v1197
        %v1199 = vpop.f32.mrb[0].mxu0
        %v1200 = vadd.f32 %v1157, %v1199
        %v1201 = vpop.f32.mrb[0].mxu0
        %v1202 = vadd.f32 %v1159, %v1201
        %v1203 = vpop.f32.mrb[0].mxu0
        %v1204 = vadd.f32 %v1161, %v1203
        %1205 = vdwg.mxu0
        %1206 = vmatprep.subr.bf16.mxu0 %v929
        %1207 = vmatpush1.bf16.msra.mxu0 %v928
        %1208 = vmatprep.subr.bf16.mxu0 %v931
        %1209 = vmatpush1.bf16.msra.mxu0 %v930
        %1210 = vmatprep.subr.bf16.mxu0 %v933
        %1211 = vmatpush1.bf16.msra.mxu0 %v932
        %1212 = vmatprep.subr.bf16.mxu0 %v935
        %1213 = vmatpush1.bf16.msra.mxu0 %v934
        %1214 = vmatprep.subr.bf16.mxu0 %v937
        %1215 = vmatpush1.bf16.msra.mxu0 %v936
        %1216 = vmatprep.subr.bf16.mxu0 %v939
        %1217 = vmatpush1.bf16.msra.mxu0 %v938
        %1218 = vmatprep.subr.bf16.mxu0 %v941
        %1219 = vmatpush1.bf16.msra.mxu0 %v940
        %1220 = vmatprep.subr.bf16.mxu0 %v943
        %1221 = vmatpush1.bf16.msra.mxu0 %v942
        %1222 = vmatprep.subr.bf16.mxu0 %v945
        %1223 = vmatpush1.bf16.msra.mxu0 %v944
        %1224 = vmatprep.subr.bf16.mxu0 %v947
        %1225 = vmatpush1.bf16.msra.mxu0 %v946
        %1226 = vmatprep.subr.bf16.mxu0 %v949
        %1227 = vmatpush1.bf16.msra.mxu0 %v948
        %1228 = vmatprep.subr.bf16.mxu0 %v951
        %1229 = vmatpush1.bf16.msra.mxu0 %v950
        %1230 = vmatprep.subr.bf16.mxu0 %v953
        %1231 = vmatpush1.bf16.msra.mxu0 %v952
        %1232 = vmatprep.subr.bf16.mxu0 %v955
        %1233 = vmatpush1.bf16.msra.mxu0 %v954
        %1234 = vmatprep.subr.bf16.mxu0 %v957
        %1235 = vmatpush1.bf16.msra.mxu0 %v956
        %1236 = vmatprep.subr.bf16.mxu0 %v959
        %1237 = vmatpush1.bf16.msra.mxu0 %v958
        %1238 = vmatprep.mubr.bf16.mxu0 %v469
        %1239 = vmatmul.mubr.bf16.gmra.mrb[0].mxu0 %v468
        %v1240 = vpop.f32.mrb[0].mxu0
        %v1241 = vadd.f32 %v1198, %v1240
        %v1242 = vpop.f32.mrb[0].mxu0
        %v1243 = vadd.f32 %v1200, %v1242
        %v1244 = vpop.f32.mrb[0].mxu0
        %v1245 = vadd.f32 %v1202, %v1244
        %v1246 = vpop.f32.mrb[0].mxu0
        %v1247 = vadd.f32 %v1204, %v1246
        %1248 = vdwg.mxu0
        %1249 = vmatprep.subr.bf16.mxu0 %v961
        %1250 = vmatpush1.bf16.msra.mxu0 %v960
        %1251 = vmatprep.subr.bf16.mxu0 %v963
        %1252 = vmatpush1.bf16.msra.mxu0 %v962
        %1253 = vmatprep.subr.bf16.mxu0 %v965
        %1254 = vmatpush1.bf16.msra.mxu0 %v964
        %1255 = vmatprep.subr.bf16.mxu0 %v967
        %1256 = vmatpush1.bf16.msra.mxu0 %v966
        %1257 = vmatprep.subr.bf16.mxu0 %v969
        %1258 = vmatpush1.bf16.msra.mxu0 %v968
        %1259 = vmatprep.subr.bf16.mxu0 %v971
        %1260 = vmatpush1.bf16.msra.mxu0 %v970
        %1261 = vmatprep.subr.bf16.mxu0 %v973
        %1262 = vmatpush1.bf16.msra.mxu0 %v972
        %1263 = vmatprep.subr.bf16.mxu0 %v975
        %1264 = vmatpush1.bf16.msra.mxu0 %v974
        %1265 = vmatprep.subr.bf16.mxu0 %v977
        %1266 = vmatpush1.bf16.msra.mxu0 %v976
        %1267 = vmatprep.subr.bf16.mxu0 %v979
        %1268 = vmatpush1.bf16.msra.mxu0 %v978
        %1269 = vmatprep.subr.bf16.mxu0 %v981
        %1270 = vmatpush1.bf16.msra.mxu0 %v980
        %1271 = vmatprep.subr.bf16.mxu0 %v983
        %1272 = vmatpush1.bf16.msra.mxu0 %v982
        %1273 = vmatprep.subr.bf16.mxu0 %v985
        %1274 = vmatpush1.bf16.msra.mxu0 %v984
        %1275 = vmatprep.subr.bf16.mxu0 %v987
        %1276 = vmatpush1.bf16.msra.mxu0 %v986
        %1277 = vmatprep.subr.bf16.mxu0 %v989
        %1278 = vmatpush1.bf16.msra.mxu0 %v988
        %1279 = vmatprep.subr.bf16.mxu0 %v991
        %1280 = vmatpush1.bf16.msra.mxu0 %v990
        %1281 = vmatprep.mubr.bf16.mxu0 %v471
        %1282 = vmatmul.mubr.bf16.gmra.mrb[0].mxu0 %v470
        %v1283 = vpop.f32.mrb[0].mxu0
        %v1284 = vadd.f32 %v1241, %v1283
        %v1285 = vpop.f32.mrb[0].mxu0
        %v1286 = vadd.f32 %v1243, %v1285
        %v1287 = vpop.f32.mrb[0].mxu0
        %v1288 = vadd.f32 %v1245, %v1287
        %v1289 = vpop.f32.mrb[0].mxu0
        %v1290 = vadd.f32 %v1247, %v1289
        %1291 = vdwg.mxu0
        %v1292 = vadd.f32 %v300, %v1284
        %v1293 = vadd.f32 %v301, %v1286
        %v1294 = vadd.f32 %v302, %v1288
        %v1295 = vadd.f32 %v303, %v1290
        %1296 = vst [vmem:[#allocation2] sm:$0xff] %v1292
        %1297 = vst [vmem:[#allocation2 + $0x8] sm:$0xff] %v1293
        %1298 = vst [vmem:[#allocation2 + $0x10] sm:$0xff] %v1294
        %1299 = vst [vmem:[#allocation2 + $0x18] sm:$0xff] %v1295
        %p1300 = scmp.eq.s32.totalorder %s21, 2
        // Predicated region
        $region60: #{model_forward.2} parent=50 // pred_check
          %p1301 = pneg %p1300
        $region61: #{model_forward.2} parent=50 // pred_check_branch
          %1303 = sbr.rel (%p1301) target = $region63
        $region62: #{model_forward.2} parent=50 // pred_region
          %v1304 = vld [vmem:[#allocation2] sm:$0xff]
          %v1305 = vld [vmem:[#allocation2 + $0x8] sm:$0xff]
          %v1306 = vld [vmem:[#allocation2 + $0x10] sm:$0xff]
          %v1307 = vld [vmem:[#allocation2 + $0x18] sm:$0xff]
          %v1308 = vld [vmem:[%s2] sm:$0x3]
          %v1310 = vlaneseq
          %v1311 = vshrl.u32 %v1310, 7
          %v1312 = vsub.s32 0, %v1311
          %v1313 = vrot.slane %v1308, %v1312
          %v1314 = vlaneseq
          %v1315 = vshrl.u32 %v1314, 7
          %v1316 = vsub.s32 1, %v1315
          %v1317 = vrot.slane %v1308, %v1316
          %v1320 = vadd.f32 %v1304, %v1313
          %v1321 = vadd.f32 %v1305, %v1317
          %v1322 = vadd.f32 %v1306, %v1313
          %v1323 = vadd.f32 %v1307, %v1317
          %v1324 = vmax.f32 %v1320, 0.0
          %v1325 = vmax.f32 %v1321, 0.0
          %v1326 = vmax.f32 %v1322, 0.0
          %v1327 = vmax.f32 %v1323, 0.0
          %1328 = vst [vmem:[#allocation2] sm:$0xff] %v1324
          %1329 = vst [vmem:[#allocation2 + $0x8] sm:$0xff] %v1325
          %1330 = vst [vmem:[#allocation2 + $0x10] sm:$0xff] %v1326
          %1331 = vst [vmem:[#allocation2 + $0x18] sm:$0xff] %v1327
          %v1332 = vld [vmem:[#allocation2] sm:$0xff]
          %v1333 = vld [vmem:[#allocation2 + $0x8] sm:$0xff]
          %v1334 = vld [vmem:[#allocation2 + $0x10] sm:$0xff]
          %v1335 = vld [vmem:[#allocation2 + $0x18] sm:$0xff]
          %v1336 = vpack.c.bf16 %v1334, %v1332
          %v1337 = vpack.c.bf16 %v1335, %v1333
          %v1340 = vunpack.c.l.b16 %v1336
          %v1341 = vunpack.c.l.b16 %v1337
          %v1342 = vunpack.c.h.b16 %v1336
          %v1343 = vunpack.c.h.b16 %v1337
          %v1344 = vpack.c.b16 %v1341, %v1340
          %v1345 = vpack.c.b16 %v1343, %v1342
          %1348 = vst [vmem:[%s285] sm:$0xff] %v1344
          %1349 = vst [vmem:[%s285 + $0x8] sm:$0xff] %v1345
          %v1350 = vld [vmem:[#allocation2] sm:$0xff]
          %v1351 = vld [vmem:[#allocation2 + $0x8] sm:$0xff]
          %v1352 = vld [vmem:[#allocation2 + $0x10] sm:$0xff]
          %v1353 = vld [vmem:[#allocation2 + $0x18] sm:$0xff]
          %v1358 = vcombine.low %v1350, %v1351
          %v1359 = vcombine.high %v1350, %v1351
          %v1360 = vcombine.low %v1352, %v1353
          %v1361 = vcombine.high %v1352, %v1353
          %v1366 = vcombine.high %v1358, %v1358
          %v1367 = vcombine.high %v1359, %v1359
          %v1368 = vcombine.high %v1360, %v1360
          %v1369 = vcombine.high %v1361, %v1361
          %vm1374 = vcmask 1043456
          %v1375 = vsel %vm1374, %v1358, 0.0
          %v1376 = vrot.slane %v1375, 4
          %v1377 = vadd.f32 %v1375, %v1376
          %v1378 = vrot.slane %v1377, 2
          %v1379 = vadd.f32 %v1377, %v1378
          %v1380 = vrot.slane %v1379, 1
          %v1381 = vadd.f32 %v1379, %v1380
          %v1382 = vsel %vm1374, %v1366, 0.0
          %v1383 = vrot.slane %v1382, 4
          %v1384 = vadd.f32 %v1382, %v1383
          %v1385 = vrot.slane %v1384, 2
          %v1386 = vadd.f32 %v1384, %v1385
          %v1387 = vrot.slane %v1386, 1
          %v1388 = vadd.f32 %v1386, %v1387
          %v1389 = vsel %vm1374, %v1359, 0.0
          %v1390 = vrot.slane %v1389, 4
          %v1391 = vadd.f32 %v1389, %v1390
          %v1392 = vrot.slane %v1391, 2
          %v1393 = vadd.f32 %v1391, %v1392
          %v1394 = vrot.slane %v1393, 1
          %v1395 = vadd.f32 %v1393, %v1394
          %v1396 = vsel %vm1374, %v1367, 0.0
          %v1397 = vrot.slane %v1396, 4
          %v1398 = vadd.f32 %v1396, %v1397
          %v1399 = vrot.slane %v1398, 2
          %v1400 = vadd.f32 %v1398, %v1399
          %v1401 = vrot.slane %v1400, 1
          %v1402 = vadd.f32 %v1400, %v1401
          %v1403 = vsel %vm1374, %v1360, 0.0
          %v1404 = vrot.slane %v1403, 4
          %v1405 = vadd.f32 %v1403, %v1404
          %v1406 = vrot.slane %v1405, 2
          %v1407 = vadd.f32 %v1405, %v1406
          %v1408 = vrot.slane %v1407, 1
          %v1409 = vadd.f32 %v1407, %v1408
          %v1410 = vsel %vm1374, %v1368, 0.0
          %v1411 = vrot.slane %v1410, 4
          %v1412 = vadd.f32 %v1410, %v1411
          %v1413 = vrot.slane %v1412, 2
          %v1414 = vadd.f32 %v1412, %v1413
          %v1415 = vrot.slane %v1414, 1
          %v1416 = vadd.f32 %v1414, %v1415
          %v1417 = vsel %vm1374, %v1361, 0.0
          %v1418 = vrot.slane %v1417, 4
          %v1419 = vadd.f32 %v1417, %v1418
          %v1420 = vrot.slane %v1419, 2
          %v1421 = vadd.f32 %v1419, %v1420
          %v1422 = vrot.slane %v1421, 1
          %v1423 = vadd.f32 %v1421, %v1422
          %v1424 = vsel %vm1374, %v1369, 0.0
          %v1425 = vrot.slane %v1424, 4
          %v1426 = vadd.f32 %v1424, %v1425
          %v1427 = vrot.slane %v1426, 2
          %v1428 = vadd.f32 %v1426, %v1427
          %v1429 = vrot.slane %v1428, 1
          %v1430 = vadd.f32 %v1428, %v1429
          %v1431 = vrcp.pop 4.0
          %v1432 = vmul.f32 %v1381, %v1431
          %v1433 = vmul.f32 %v1388, %v1431
          %v1434 = vmul.f32 %v1395, %v1431
          %v1435 = vmul.f32 %v1402, %v1431
          %v1436 = vmul.f32 %v1409, %v1431
          %v1437 = vmul.f32 %v1416, %v1431
          %v1438 = vmul.f32 %v1423, %v1431
          %v1439 = vmul.f32 %v1430, %v1431
          %v1448 = vcombine.low %v1432, %v1433
          %v1449 = vcombine.low %v1434, %v1435
          %v1450 = vcombine.low %v1436, %v1437
          %v1451 = vcombine.low %v1438, %v1439
          %v1452 = vrot.slane %v1449, 7
          %vm1453 = vcmask 1041409
          %v1454 = vsel %vm1453, %v1452, %v1448
          %vm1455 = vcmask 1045509
          %v1456 = vsel %vm1455, %v1452, %v1454
          %v1457 = vrot.slane %v1450, 6
          %vm1458 = vcmask 1042434
          %v1459 = vsel %vm1458, %v1457, %v1456
          %vm1460 = vcmask 1046534
          %v1461 = vsel %vm1460, %v1457, %v1459
          %v1462 = vrot.slane %v1451, 5
          %vm1463 = vcmask 1043459
          %v1464 = vsel %vm1463, %v1462, %v1461
          %vm1465 = vcmask 1047559
          %v1466 = vsel %vm1465, %v1462, %v1464
          %1468 = vst [vmem:[%s291] sm:$0xff] %v1466
        $region63: #{model_forward.2} parent=50 // pred_fallthru
          _
        %s1469 = smul.u32 2, %s20
        %p1470 = scmp.lt.s32.totalorder %s1469, 3
        %s1471 = scalar_select %p1470, %s1469, 3
        %s1472 = smul.addr %s1471, 2
        %s1473 = smul.addr %s1472, 4
        %s1474 = scalar_lea.vmem %s3, %s1473
        %p1475 = scmp.lt.s32.totalorder %s20, 1
        %s1476 = scalar_select %p1475, %s20, 1
        %s1477 = smul.addr %s1476, 2
        %s1478 = smul.addr %s1477, 4
        %s1479 = scalar_lea.vmem %s4, %s1478
        // Predicated region
        $region64: #{model_forward.2} parent=50 // pred_check
          %p1480 = pneg %p121
        $region65: #{model_forward.2} parent=50 // pred_check_branch
          %1482 = sbr.rel (%p1480) target = $region67
        $region66: #{model_forward.2} parent=50 // pred_region
          %s1483 = smul.u32 2, %s20
        $region67: #{model_forward.2} parent=50 // pred_fallthru
          _
        // Predicated region
        $region68: #{model_forward.2} parent=50 // pred_check
          %p1484 = pneg %p147
        $region69: #{model_forward.2} parent=50 // pred_check_branch
          %1486 = sbr.rel (%p1484) target = $region71
        $region70: #{model_forward.2} parent=50 // pred_region
          _
        $region71: #{model_forward.2} parent=50 // pred_fallthru
          _
      $region51: #{model_forward.2} parent=5 // pred_fallthru
        _
      %p1487 = scmp.le.s32.totalorder 2, %s11
      // Predicated region
      $region72: #{model_forward.2} parent=5 // pred_check
        %p1488 = pneg %p1487
      $region73: #{model_forward.2} parent=5 // pred_check_branch
        %1490 = sbr.rel (%p1488) target = $region75
      $region74: #{model_forward.2} parent=5 // pred_region
        %s1491 = ssub.s32 %s11, 2
        // Predicated region
        $region76: #{model_forward.2} parent=74 // pred_check
          %p1492 = pneg %p127
        $region77: #{model_forward.2} parent=74 // pred_check_branch
          %1494 = sbr.rel (%p1492) target = $region79
        $region78: #{model_forward.2} parent=74 // pred_region
          %s1495 = smul.u32 2, %s22
          %p1496 = scmp.lt.s32.totalorder %s1495, 3
          %s1497 = scalar_select %p1496, %s1495, 3
          %s1498 = smul.addr %s1497, 2
          %s1499 = smul.addr %s1498, 4
          %s1500 = scalar_lea.vmem %s3, %s1499
        $region79: #{model_forward.2} parent=74 // pred_fallthru
          _
        // Predicated region
        $region80: #{model_forward.2} parent=74 // pred_check
          %p1501 = pneg %p153
        $region81: #{model_forward.2} parent=74 // pred_check_branch
          %1503 = sbr.rel (%p1501) target = $region83
        $region82: #{model_forward.2} parent=74 // pred_region
          %p1504 = scmp.lt.s32.totalorder %s22, 1
          %s1505 = scalar_select %p1504, %s22, 1
          %s1506 = smul.addr %s1505, 2
          %s1507 = smul.addr %s1506, 4
          %s1508 = scalar_lea.vmem %s4, %s1507
        $region83: #{model_forward.2} parent=74 // pred_fallthru
          _
      $region75: #{model_forward.2} parent=5 // pred_fallthru
        _
    $region6: #{model_forward.2} parent=1 // loop_footer
      %s15 = sadd.s32 1, %s11
    $region7: #{model_forward.2} parent=1 // loop_footer_branch
      %10 = sbr.rel target = $region3
    $region8: #{model_forward.2} parent=1 // loop_exit
      _

// kernel: model_forward.3
$region0: #{model_forward.3}
  #allocation0 [shape = 'u32[]', space=smem, size = 0x4, offset = 0x4, fixed_abs, tag = 'smem constant byte address 0x4 - core index']
  #allocation1 [shape = 'u32[144,128]{1,0:T(1,128)}', space=vmem, size = 0x12000, scoped, tag = 'internal scratch']
  #allocation2 [shape = 'f32[8,1024]{1,0:T(8,128)}', space=vmem, size = 0x8000, scoped, tag = 'scratch operand']
  %s0 = inlined_call_operand.vmem [shape: f32[8,256], index: 0, kind: input, shape index: {}]
  %s1 = inlined_call_operand.vmem [shape: bf16[256,1024], index: 1, kind: input, shape index: {}]
  %s2 = inlined_call_operand.vmem [shape: bf16[256,1024], index: 2, kind: input, shape index: {}]
  %s3 = inlined_call_operand.vmem [shape: f32[1,1024], index: 3, kind: input, shape index: {}]
  %s4 = inlined_call_operand.vmem [shape: f32[256,2], index: 4, kind: input, shape index: {}]
  %s5 = inlined_call_operand.vmem [shape: f32[1,2], index: 5, kind: input, shape index: {}]
  %s6 = inlined_call_operand.hbm [shape: f32[2,2], index: 6, kind: output, shape index: {}]
  %s7 = sld [smem:[#allocation0]]
  $region34: #{model_forward.3} parent=0
    _
  %s9 = ssub.s32 1, %s7
  %s10 = scalar_select 0, %s9, %s7
  $region1: #{model_forward.3} parent=0
    #allocation3 [shape = 'u8[1024]{0}', space=vmem, size = 0x400, scoped, tag = 'output window, operand 0, single buffered']
    #allocation4 [shape = 's32[1]{0}', space=sflag, size = 0x4, scoped, tag = 'scoped memory for model_forward.3']
    %11 = vsyncpa [#allocation4], 0
    // Predicated region
    $region2: #{model_forward.3} parent=1 // pred_check
      _
    $region3: #{model_forward.3} parent=1 // pred_check_branch
      %13 = sbr.rel (0) target = $region5
    $region4: #{model_forward.3} parent=1 // pred_region
      _
    $region5: #{model_forward.3} parent=1 // pred_fallthru
      _
    // Predicated region
    $region6: #{model_forward.3} parent=1 // pred_check
      _
    $region7: #{model_forward.3} parent=1 // pred_check_branch
      %15 = sbr.rel (0) target = $region9
    $region8: #{model_forward.3} parent=1 // pred_region
      _
    $region9: #{model_forward.3} parent=1 // pred_fallthru
      _
    // Predicated region
    $region10: #{model_forward.3} parent=1 // pred_check
      _
    $region11: #{model_forward.3} parent=1 // pred_check_branch
      %17 = sbr.rel (0) target = $region13
    $region12: #{model_forward.3} parent=1 // pred_region
      _
    $region13: #{model_forward.3} parent=1 // pred_fallthru
      _
    // Predicated region
    $region14: #{model_forward.3} parent=1 // pred_check
      _
    $region15: #{model_forward.3} parent=1 // pred_check_branch
      %19 = sbr.rel (0) target = $region17
    $region16: #{model_forward.3} parent=1 // pred_region
      _
    $region17: #{model_forward.3} parent=1 // pred_fallthru
      _
    // Predicated region
    $region18: #{model_forward.3} parent=1 // pred_check
      _
    $region19: #{model_forward.3} parent=1 // pred_check_branch
      %21 = sbr.rel (0) target = $region21
    $region20: #{model_forward.3} parent=1 // pred_region
      _
    $region21: #{model_forward.3} parent=1 // pred_fallthru
      _
    // Predicated region
    $region22: #{model_forward.3} parent=1 // pred_check
      _
    $region23: #{model_forward.3} parent=1 // pred_check_branch
      %23 = sbr.rel (0) target = $region25
    $region24: #{model_forward.3} parent=1 // pred_region
      _
    $region25: #{model_forward.3} parent=1 // pred_fallthru
      _
    %v25 = vld [vmem:[%s0] sm:$0xff]
    %v26 = vld [vmem:[%s0 + $0x8] sm:$0xff]
    %v27 = vpack.c.bf16 %v25, %v25
    %v28 = vpack.c.bf16 %v26, %v26
    %v29 = vld [vmem:[%s1] sm:$0xff]
    %v30 = vld [vmem:[%s1 + $0x8] sm:$0xff]
    %v31 = vld [vmem:[%s1 + $0x10] sm:$0xff]
    %v32 = vld [vmem:[%s1 + $0x18] sm:$0xff]
    %v33 = vld [vmem:[%s1 + $0x20] sm:$0xff]
    %v34 = vld [vmem:[%s1 + $0x28] sm:$0xff]
    %v35 = vld [vmem:[%s1 + $0x30] sm:$0xff]
    %v36 = vld [vmem:[%s1 + $0x38] sm:$0xff]
    %v37 = vld [vmem:[%s1 + $0x40] sm:$0xff]
    %v38 = vld [vmem:[%s1 + $0x48] sm:$0xff]
    %v39 = vld [vmem:[%s1 + $0x50] sm:$0xff]
    %v40 = vld [vmem:[%s1 + $0x58] sm:$0xff]
    %v41 = vld [vmem:[%s1 + $0x60] sm:$0xff]
    %v42 = vld [vmem:[%s1 + $0x68] sm:$0xff]
    %v43 = vld [vmem:[%s1 + $0x70] sm:$0xff]
    %v44 = vld [vmem:[%s1 + $0x78] sm:$0xff]
    %v45 = vld [vmem:[%s1 + $0x80] sm:$0xff]
    %v46 = vld [vmem:[%s1 + $0x88] sm:$0xff]
    %v47 = vld [vmem:[%s1 + $0x90] sm:$0xff]
    %v48 = vld [vmem:[%s1 + $0x98] sm:$0xff]
    %v49 = vld [vmem:[%s1 + $0xa0] sm:$0xff]
    %v50 = vld [vmem:[%s1 + $0xa8] sm:$0xff]
    %v51 = vld [vmem:[%s1 + $0xb0] sm:$0xff]
    %v52 = vld [vmem:[%s1 + $0xb8] sm:$0xff]
    %v53 = vld [vmem:[%s1 + $0xc0] sm:$0xff]
    %v54 = vld [vmem:[%s1 + $0xc8] sm:$0xff]
    %v55 = vld [vmem:[%s1 + $0xd0] sm:$0xff]
    %v56 = vld [vmem:[%s1 + $0xd8] sm:$0xff]
    %v57 = vld [vmem:[%s1 + $0xe0] sm:$0xff]
    %v58 = vld [vmem:[%s1 + $0xe8] sm:$0xff]
    %v59 = vld [vmem:[%s1 + $0xf0] sm:$0xff]
    %v60 = vld [vmem:[%s1 + $0xf8] sm:$0xff]
    %v61 = vld [vmem:[%s1 + $0x100] sm:$0xff]
    %v62 = vld [vmem:[%s1 + $0x108] sm:$0xff]
    %v63 = vld [vmem:[%s1 + $0x110] sm:$0xff]
    %v64 = vld [vmem:[%s1 + $0x118] sm:$0xff]
    %v65 = vld [vmem:[%s1 + $0x120] sm:$0xff]
    %v66 = vld [vmem:[%s1 + $0x128] sm:$0xff]
    %v67 = vld [vmem:[%s1 + $0x130] sm:$0xff]
    %v68 = vld [vmem:[%s1 + $0x138] sm:$0xff]
    %v69 = vld [vmem:[%s1 + $0x140] sm:$0xff]
    %v70 = vld [vmem:[%s1 + $0x148] sm:$0xff]
    %v71 = vld [vmem:[%s1 + $0x150] sm:$0xff]
    %v72 = vld [vmem:[%s1 + $0x158] sm:$0xff]
    %v73 = vld [vmem:[%s1 + $0x160] sm:$0xff]
    %v74 = vld [vmem:[%s1 + $0x168] sm:$0xff]
    %v75 = vld [vmem:[%s1 + $0x170] sm:$0xff]
    %v76 = vld [vmem:[%s1 + $0x178] sm:$0xff]
    %v77 = vld [vmem:[%s1 + $0x180] sm:$0xff]
    %v78 = vld [vmem:[%s1 + $0x188] sm:$0xff]
    %v79 = vld [vmem:[%s1 + $0x190] sm:$0xff]
    %v80 = vld [vmem:[%s1 + $0x198] sm:$0xff]
    %v81 = vld [vmem:[%s1 + $0x1a0] sm:$0xff]
    %v82 = vld [vmem:[%s1 + $0x1a8] sm:$0xff]
    %v83 = vld [vmem:[%s1 + $0x1b0] sm:$0xff]
    %v84 = vld [vmem:[%s1 + $0x1b8] sm:$0xff]
    %v85 = vld [vmem:[%s1 + $0x1c0] sm:$0xff]
    %v86 = vld [vmem:[%s1 + $0x1c8] sm:$0xff]
    %v87 = vld [vmem:[%s1 + $0x1d0] sm:$0xff]
    %v88 = vld [vmem:[%s1 + $0x1d8] sm:$0xff]
    %v89 = vld [vmem:[%s1 + $0x1e0] sm:$0xff]
    %v90 = vld [vmem:[%s1 + $0x1e8] sm:$0xff]
    %v91 = vld [vmem:[%s1 + $0x1f0] sm:$0xff]
    %v92 = vld [vmem:[%s1 + $0x1f8] sm:$0xff]
    %v93 = vld [vmem:[%s1 + $0x200] sm:$0xff]
    %v94 = vld [vmem:[%s1 + $0x208] sm:$0xff]
    %v95 = vld [vmem:[%s1 + $0x210] sm:$0xff]
    %v96 = vld [vmem:[%s1 + $0x218] sm:$0xff]
    %v97 = vld [vmem:[%s1 + $0x220] sm:$0xff]
    %v98 = vld [vmem:[%s1 + $0x228] sm:$0xff]
    %v99 = vld [vmem:[%s1 + $0x230] sm:$0xff]
    %v100 = vld [vmem:[%s1 + $0x238] sm:$0xff]
    %v101 = vld [vmem:[%s1 + $0x240] sm:$0xff]
    %v102 = vld [vmem:[%s1 + $0x248] sm:$0xff]
    %v103 = vld [vmem:[%s1 + $0x250] sm:$0xff]
    %v104 = vld [vmem:[%s1 + $0x258] sm:$0xff]
    %v105 = vld [vmem:[%s1 + $0x260] sm:$0xff]
    %v106 = vld [vmem:[%s1 + $0x268] sm:$0xff]
    %v107 = vld [vmem:[%s1 + $0x270] sm:$0xff]
    %v108 = vld [vmem:[%s1 + $0x278] sm:$0xff]
    %v109 = vld [vmem:[%s1 + $0x280] sm:$0xff]
    %v110 = vld [vmem:[%s1 + $0x288] sm:$0xff]
    %v111 = vld [vmem:[%s1 + $0x290] sm:$0xff]
    %v112 = vld [vmem:[%s1 + $0x298] sm:$0xff]
    %v113 = vld [vmem:[%s1 + $0x2a0] sm:$0xff]
    %v114 = vld [vmem:[%s1 + $0x2a8] sm:$0xff]
    %v115 = vld [vmem:[%s1 + $0x2b0] sm:$0xff]
    %v116 = vld [vmem:[%s1 + $0x2b8] sm:$0xff]
    %v117 = vld [vmem:[%s1 + $0x2c0] sm:$0xff]
    %v118 = vld [vmem:[%s1 + $0x2c8] sm:$0xff]
    %v119 = vld [vmem:[%s1 + $0x2d0] sm:$0xff]
    %v120 = vld [vmem:[%s1 + $0x2d8] sm:$0xff]
    %v121 = vld [vmem:[%s1 + $0x2e0] sm:$0xff]
    %v122 = vld [vmem:[%s1 + $0x2e8] sm:$0xff]
    %v123 = vld [vmem:[%s1 + $0x2f0] sm:$0xff]
    %v124 = vld [vmem:[%s1 + $0x2f8] sm:$0xff]
    %v125 = vld [vmem:[%s1 + $0x300] sm:$0xff]
    %v126 = vld [vmem:[%s1 + $0x308] sm:$0xff]
    %v127 = vld [vmem:[%s1 + $0x310] sm:$0xff]
    %v128 = vld [vmem:[%s1 + $0x318] sm:$0xff]
    %v129 = vld [vmem:[%s1 + $0x320] sm:$0xff]
    %v130 = vld [vmem:[%s1 + $0x328] sm:$0xff]
    %v131 = vld [vmem:[%s1 + $0x330] sm:$0xff]
    %v132 = vld [vmem:[%s1 + $0x338] sm:$0xff]
    %v133 = vld [vmem:[%s1 + $0x340] sm:$0xff]
    %v134 = vld [vmem:[%s1 + $0x348] sm:$0xff]
    %v135 = vld [vmem:[%s1 + $0x350] sm:$0xff]
    %v136 = vld [vmem:[%s1 + $0x358] sm:$0xff]
    %v137 = vld [vmem:[%s1 + $0x360] sm:$0xff]
    %v138 = vld [vmem:[%s1 + $0x368] sm:$0xff]
    %v139 = vld [vmem:[%s1 + $0x370] sm:$0xff]
    %v140 = vld [vmem:[%s1 + $0x378] sm:$0xff]
    %v141 = vld [vmem:[%s1 + $0x380] sm:$0xff]
    %v142 = vld [vmem:[%s1 + $0x388] sm:$0xff]
    %v143 = vld [vmem:[%s1 + $0x390] sm:$0xff]
    %v144 = vld [vmem:[%s1 + $0x398] sm:$0xff]
    %v145 = vld [vmem:[%s1 + $0x3a0] sm:$0xff]
    %v146 = vld [vmem:[%s1 + $0x3a8] sm:$0xff]
    %v147 = vld [vmem:[%s1 + $0x3b0] sm:$0xff]
    %v148 = vld [vmem:[%s1 + $0x3b8] sm:$0xff]
    %v149 = vld [vmem:[%s1 + $0x3c0] sm:$0xff]
    %v150 = vld [vmem:[%s1 + $0x3c8] sm:$0xff]
    %v151 = vld [vmem:[%s1 + $0x3d0] sm:$0xff]
    %v152 = vld [vmem:[%s1 + $0x3d8] sm:$0xff]
    %v153 = vld [vmem:[%s1 + $0x3e0] sm:$0xff]
    %v154 = vld [vmem:[%s1 + $0x3e8] sm:$0xff]
    %v155 = vld [vmem:[%s1 + $0x3f0] sm:$0xff]
    %v156 = vld [vmem:[%s1 + $0x3f8] sm:$0xff]
    %v157 = vld [vmem:[%s3] sm:$0xff]
    %v159 = vlaneseq
    %v160 = vshrl.u32 %v159, 7
    %v161 = vsub.s32 0, %v160
    %v162 = vrot.slane %v157, %v161
    %v163 = vlaneseq
    %v164 = vshrl.u32 %v163, 7
    %v165 = vsub.s32 1, %v164
    %v166 = vrot.slane %v157, %v165
    %v167 = vlaneseq
    %v168 = vshrl.u32 %v167, 7
    %v169 = vsub.s32 2, %v168
    %v170 = vrot.slane %v157, %v169
    %v171 = vlaneseq
    %v172 = vshrl.u32 %v171, 7
    %v173 = vsub.s32 3, %v172
    %v174 = vrot.slane %v157, %v173
    %v175 = vlaneseq
    %v176 = vshrl.u32 %v175, 7
    %v177 = vsub.s32 4, %v176
    %v178 = vrot.slane %v157, %v177
    %v179 = vlaneseq
    %v180 = vshrl.u32 %v179, 7
    %v181 = vsub.s32 5, %v180
    %v182 = vrot.slane %v157, %v181
    %v183 = vlaneseq
    %v184 = vshrl.u32 %v183, 7
    %v185 = vsub.s32 6, %v184
    %v186 = vrot.slane %v157, %v185
    %v187 = vlaneseq
    %v188 = vshrl.u32 %v187, 7
    %v189 = vsub.s32 7, %v188
    %v190 = vrot.slane %v157, %v189
    %v327 = vunpack.c.l.b16 %v29
    %v328 = vunpack.c.h.b16 %v29
    %v329 = vunpack.c.l.b16 %v30
    %v330 = vunpack.c.h.b16 %v30
    %v331 = vunpack.c.l.b16 %v31
    %v332 = vunpack.c.h.b16 %v31
    %v333 = vunpack.c.l.b16 %v32
    %v334 = vunpack.c.h.b16 %v32
    %v335 = vunpack.c.l.b16 %v33
    %v336 = vunpack.c.h.b16 %v33
    %v337 = vunpack.c.l.b16 %v34
    %v338 = vunpack.c.h.b16 %v34
    %v339 = vunpack.c.l.b16 %v35
    %v340 = vunpack.c.h.b16 %v35
    %v341 = vunpack.c.l.b16 %v36
    %v342 = vunpack.c.h.b16 %v36
    %v343 = vunpack.c.l.b16 %v37
    %v344 = vunpack.c.h.b16 %v37
    %v345 = vunpack.c.l.b16 %v38
    %v346 = vunpack.c.h.b16 %v38
    %v347 = vunpack.c.l.b16 %v39
    %v348 = vunpack.c.h.b16 %v39
    %v349 = vunpack.c.l.b16 %v40
    %v350 = vunpack.c.h.b16 %v40
    %v351 = vunpack.c.l.b16 %v41
    %v352 = vunpack.c.h.b16 %v41
    %v353 = vunpack.c.l.b16 %v42
    %v354 = vunpack.c.h.b16 %v42
    %v355 = vunpack.c.l.b16 %v43
    %v356 = vunpack.c.h.b16 %v43
    %v357 = vunpack.c.l.b16 %v44
    %v358 = vunpack.c.h.b16 %v44
    %v359 = vunpack.c.l.b16 %v45
    %v360 = vunpack.c.h.b16 %v45
    %v361 = vunpack.c.l.b16 %v46
    %v362 = vunpack.c.h.b16 %v46
    %v363 = vunpack.c.l.b16 %v47
    %v364 = vunpack.c.h.b16 %v47
    %v365 = vunpack.c.l.b16 %v48
    %v366 = vunpack.c.h.b16 %v48
    %v367 = vunpack.c.l.b16 %v49
    %v368 = vunpack.c.h.b16 %v49
    %v369 = vunpack.c.l.b16 %v50
    %v370 = vunpack.c.h.b16 %v50
    %v371 = vunpack.c.l.b16 %v51
    %v372 = vunpack.c.h.b16 %v51
    %v373 = vunpack.c.l.b16 %v52
    %v374 = vunpack.c.h.b16 %v52
    %v375 = vunpack.c.l.b16 %v53
    %v376 = vunpack.c.h.b16 %v53
    %v377 = vunpack.c.l.b16 %v54
    %v378 = vunpack.c.h.b16 %v54
    %v379 = vunpack.c.l.b16 %v55
    %v380 = vunpack.c.h.b16 %v55
    %v381 = vunpack.c.l.b16 %v56
    %v382 = vunpack.c.h.b16 %v56
    %v383 = vunpack.c.l.b16 %v57
    %v384 = vunpack.c.h.b16 %v57
    %v385 = vunpack.c.l.b16 %v58
    %v386 = vunpack.c.h.b16 %v58
    %v387 = vunpack.c.l.b16 %v59
    %v388 = vunpack.c.h.b16 %v59
    %v389 = vunpack.c.l.b16 %v60
    %v390 = vunpack.c.h.b16 %v60
    %v391 = vunpack.c.l.b16 %v61
    %v392 = vunpack.c.h.b16 %v61
    %v393 = vunpack.c.l.b16 %v62
    %v394 = vunpack.c.h.b16 %v62
    %v395 = vunpack.c.l.b16 %v63
    %v396 = vunpack.c.h.b16 %v63
    %v397 = vunpack.c.l.b16 %v64
    %v398 = vunpack.c.h.b16 %v64
    %v399 = vunpack.c.l.b16 %v65
    %v400 = vunpack.c.h.b16 %v65
    %v401 = vunpack.c.l.b16 %v66
    %v402 = vunpack.c.h.b16 %v66
    %v403 = vunpack.c.l.b16 %v67
    %v404 = vunpack.c.h.b16 %v67
    %v405 = vunpack.c.l.b16 %v68
    %v406 = vunpack.c.h.b16 %v68
    %v407 = vunpack.c.l.b16 %v69
    %v408 = vunpack.c.h.b16 %v69
    %v409 = vunpack.c.l.b16 %v70
    %v410 = vunpack.c.h.b16 %v70
    %v411 = vunpack.c.l.b16 %v71
    %v412 = vunpack.c.h.b16 %v71
    %v413 = vunpack.c.l.b16 %v72
    %v414 = vunpack.c.h.b16 %v72
    %v415 = vunpack.c.l.b16 %v73
    %v416 = vunpack.c.h.b16 %v73
    %v417 = vunpack.c.l.b16 %v74
    %v418 = vunpack.c.h.b16 %v74
    %v419 = vunpack.c.l.b16 %v75
    %v420 = vunpack.c.h.b16 %v75
    %v421 = vunpack.c.l.b16 %v76
    %v422 = vunpack.c.h.b16 %v76
    %v423 = vunpack.c.l.b16 %v77
    %v424 = vunpack.c.h.b16 %v77
    %v425 = vunpack.c.l.b16 %v78
    %v426 = vunpack.c.h.b16 %v78
    %v427 = vunpack.c.l.b16 %v79
    %v428 = vunpack.c.h.b16 %v79
    %v429 = vunpack.c.l.b16 %v80
    %v430 = vunpack.c.h.b16 %v80
    %v431 = vunpack.c.l.b16 %v81
    %v432 = vunpack.c.h.b16 %v81
    %v433 = vunpack.c.l.b16 %v82
    %v434 = vunpack.c.h.b16 %v82
    %v435 = vunpack.c.l.b16 %v83
    %v436 = vunpack.c.h.b16 %v83
    %v437 = vunpack.c.l.b16 %v84
    %v438 = vunpack.c.h.b16 %v84
    %v439 = vunpack.c.l.b16 %v85
    %v440 = vunpack.c.h.b16 %v85
    %v441 = vunpack.c.l.b16 %v86
    %v442 = vunpack.c.h.b16 %v86
    %v443 = vunpack.c.l.b16 %v87
    %v444 = vunpack.c.h.b16 %v87
    %v445 = vunpack.c.l.b16 %v88
    %v446 = vunpack.c.h.b16 %v88
    %v447 = vunpack.c.l.b16 %v89
    %v448 = vunpack.c.h.b16 %v89
    %v449 = vunpack.c.l.b16 %v90
    %v450 = vunpack.c.h.b16 %v90
    %v451 = vunpack.c.l.b16 %v91
    %v452 = vunpack.c.h.b16 %v91
    %v453 = vunpack.c.l.b16 %v92
    %v454 = vunpack.c.h.b16 %v92
    %v455 = vunpack.c.l.b16 %v93
    %v456 = vunpack.c.h.b16 %v93
    %v457 = vunpack.c.l.b16 %v94
    %v458 = vunpack.c.h.b16 %v94
    %v459 = vunpack.c.l.b16 %v95
    %v460 = vunpack.c.h.b16 %v95
    %v461 = vunpack.c.l.b16 %v96
    %v462 = vunpack.c.h.b16 %v96
    %v463 = vunpack.c.l.b16 %v97
    %v464 = vunpack.c.h.b16 %v97
    %v465 = vunpack.c.l.b16 %v98
    %v466 = vunpack.c.h.b16 %v98
    %v467 = vunpack.c.l.b16 %v99
    %v468 = vunpack.c.h.b16 %v99
    %v469 = vunpack.c.l.b16 %v100
    %v470 = vunpack.c.h.b16 %v100
    %v471 = vunpack.c.l.b16 %v101
    %v472 = vunpack.c.h.b16 %v101
    %v473 = vunpack.c.l.b16 %v102
    %v474 = vunpack.c.h.b16 %v102
    %v475 = vunpack.c.l.b16 %v103
    %v476 = vunpack.c.h.b16 %v103
    %v477 = vunpack.c.l.b16 %v104
    %v478 = vunpack.c.h.b16 %v104
    %v479 = vunpack.c.l.b16 %v105
    %v480 = vunpack.c.h.b16 %v105
    %v481 = vunpack.c.l.b16 %v106
    %v482 = vunpack.c.h.b16 %v106
    %v483 = vunpack.c.l.b16 %v107
    %v484 = vunpack.c.h.b16 %v107
    %v485 = vunpack.c.l.b16 %v108
    %v486 = vunpack.c.h.b16 %v108
    %v487 = vunpack.c.l.b16 %v109
    %v488 = vunpack.c.h.b16 %v109
    %v489 = vunpack.c.l.b16 %v110
    %v490 = vunpack.c.h.b16 %v110
    %v491 = vunpack.c.l.b16 %v111
    %v492 = vunpack.c.h.b16 %v111
    %v493 = vunpack.c.l.b16 %v112
    %v494 = vunpack.c.h.b16 %v112
    %v495 = vunpack.c.l.b16 %v113
    %v496 = vunpack.c.h.b16 %v113
    %v497 = vunpack.c.l.b16 %v114
    %v498 = vunpack.c.h.b16 %v114
    %v499 = vunpack.c.l.b16 %v115
    %v500 = vunpack.c.h.b16 %v115
    %v501 = vunpack.c.l.b16 %v116
    %v502 = vunpack.c.h.b16 %v116
    %v503 = vunpack.c.l.b16 %v117
    %v504 = vunpack.c.h.b16 %v117
    %v505 = vunpack.c.l.b16 %v118
    %v506 = vunpack.c.h.b16 %v118
    %v507 = vunpack.c.l.b16 %v119
    %v508 = vunpack.c.h.b16 %v119
    %v509 = vunpack.c.l.b16 %v120
    %v510 = vunpack.c.h.b16 %v120
    %v511 = vunpack.c.l.b16 %v121
    %v512 = vunpack.c.h.b16 %v121
    %v513 = vunpack.c.l.b16 %v122
    %v514 = vunpack.c.h.b16 %v122
    %v515 = vunpack.c.l.b16 %v123
    %v516 = vunpack.c.h.b16 %v123
    %v517 = vunpack.c.l.b16 %v124
    %v518 = vunpack.c.h.b16 %v124
    %v519 = vunpack.c.l.b16 %v125
    %v520 = vunpack.c.h.b16 %v125
    %v521 = vunpack.c.l.b16 %v126
    %v522 = vunpack.c.h.b16 %v126
    %v523 = vunpack.c.l.b16 %v127
    %v524 = vunpack.c.h.b16 %v127
    %v525 = vunpack.c.l.b16 %v128
    %v526 = vunpack.c.h.b16 %v128
    %v527 = vunpack.c.l.b16 %v129
    %v528 = vunpack.c.h.b16 %v129
    %v529 = vunpack.c.l.b16 %v130
    %v530 = vunpack.c.h.b16 %v130
    %v531 = vunpack.c.l.b16 %v131
    %v532 = vunpack.c.h.b16 %v131
    %v533 = vunpack.c.l.b16 %v132
    %v534 = vunpack.c.h.b16 %v132
    %v535 = vunpack.c.l.b16 %v133
    %v536 = vunpack.c.h.b16 %v133
    %v537 = vunpack.c.l.b16 %v134
    %v538 = vunpack.c.h.b16 %v134
    %v539 = vunpack.c.l.b16 %v135
    %v540 = vunpack.c.h.b16 %v135
    %v541 = vunpack.c.l.b16 %v136
    %v542 = vunpack.c.h.b16 %v136
    %v543 = vunpack.c.l.b16 %v137
    %v544 = vunpack.c.h.b16 %v137
    %v545 = vunpack.c.l.b16 %v138
    %v546 = vunpack.c.h.b16 %v138
    %v547 = vunpack.c.l.b16 %v139
    %v548 = vunpack.c.h.b16 %v139
    %v549 = vunpack.c.l.b16 %v140
    %v550 = vunpack.c.h.b16 %v140
    %v551 = vunpack.c.l.b16 %v141
    %v552 = vunpack.c.h.b16 %v141
    %v553 = vunpack.c.l.b16 %v142
    %v554 = vunpack.c.h.b16 %v142
    %v555 = vunpack.c.l.b16 %v143
    %v556 = vunpack.c.h.b16 %v143
    %v557 = vunpack.c.l.b16 %v144
    %v558 = vunpack.c.h.b16 %v144
    %v559 = vunpack.c.l.b16 %v145
    %v560 = vunpack.c.h.b16 %v145
    %v561 = vunpack.c.l.b16 %v146
    %v562 = vunpack.c.h.b16 %v146
    %v563 = vunpack.c.l.b16 %v147
    %v564 = vunpack.c.h.b16 %v147
    %v565 = vunpack.c.l.b16 %v148
    %v566 = vunpack.c.h.b16 %v148
    %v567 = vunpack.c.l.b16 %v149
    %v568 = vunpack.c.h.b16 %v149
    %v569 = vunpack.c.l.b16 %v150
    %v570 = vunpack.c.h.b16 %v150
    %v571 = vunpack.c.l.b16 %v151
    %v572 = vunpack.c.h.b16 %v151
    %v573 = vunpack.c.l.b16 %v152
    %v574 = vunpack.c.h.b16 %v152
    %v575 = vunpack.c.l.b16 %v153
    %v576 = vunpack.c.h.b16 %v153
    %v577 = vunpack.c.l.b16 %v154
    %v578 = vunpack.c.h.b16 %v154
    %v579 = vunpack.c.l.b16 %v155
    %v580 = vunpack.c.h.b16 %v155
    %v581 = vunpack.c.l.b16 %v156
    %v582 = vunpack.c.h.b16 %v156
    %v583 = vpack.c.b16 %v335, %v327
    %v584 = vpack.c.b16 %v336, %v328
    %v585 = vpack.c.b16 %v337, %v329
    %v586 = vpack.c.b16 %v338, %v330
    %v587 = vpack.c.b16 %v339, %v331
    %v588 = vpack.c.b16 %v340, %v332
    %v589 = vpack.c.b16 %v341, %v333
    %v590 = vpack.c.b16 %v342, %v334
    %v591 = vpack.c.b16 %v351, %v343
    %v592 = vpack.c.b16 %v352, %v344
    %v593 = vpack.c.b16 %v353, %v345
    %v594 = vpack.c.b16 %v354, %v346
    %v595 = vpack.c.b16 %v355, %v347
    %v596 = vpack.c.b16 %v356, %v348
    %v597 = vpack.c.b16 %v357, %v349
    %v598 = vpack.c.b16 %v358, %v350
    %v599 = vpack.c.b16 %v367, %v359
    %v600 = vpack.c.b16 %v368, %v360
    %v601 = vpack.c.b16 %v369, %v361
    %v602 = vpack.c.b16 %v370, %v362
    %v603 = vpack.c.b16 %v371, %v363
    %v604 = vpack.c.b16 %v372, %v364
    %v605 = vpack.c.b16 %v373, %v365
    %v606 = vpack.c.b16 %v374, %v366
    %v607 = vpack.c.b16 %v383, %v375
    %v608 = vpack.c.b16 %v384, %v376
    %v609 = vpack.c.b16 %v385, %v377
    %v610 = vpack.c.b16 %v386, %v378
    %v611 = vpack.c.b16 %v387, %v379
    %v612 = vpack.c.b16 %v388, %v380
    %v613 = vpack.c.b16 %v389, %v381
    %v614 = vpack.c.b16 %v390, %v382
    %v615 = vpack.c.b16 %v399, %v391
    %v616 = vpack.c.b16 %v400, %v392
    %v617 = vpack.c.b16 %v401, %v393
    %v618 = vpack.c.b16 %v402, %v394
    %v619 = vpack.c.b16 %v403, %v395
    %v620 = vpack.c.b16 %v404, %v396
    %v621 = vpack.c.b16 %v405, %v397
    %v622 = vpack.c.b16 %v406, %v398
    %v623 = vpack.c.b16 %v415, %v407
    %v624 = vpack.c.b16 %v416, %v408
    %v625 = vpack.c.b16 %v417, %v409
    %v626 = vpack.c.b16 %v418, %v410
    %v627 = vpack.c.b16 %v419, %v411
    %v628 = vpack.c.b16 %v420, %v412
    %v629 = vpack.c.b16 %v421, %v413
    %v630 = vpack.c.b16 %v422, %v414
    %v631 = vpack.c.b16 %v431, %v423
    %v632 = vpack.c.b16 %v432, %v424
    %v633 = vpack.c.b16 %v433, %v425
    %v634 = vpack.c.b16 %v434, %v426
    %v635 = vpack.c.b16 %v435, %v427
    %v636 = vpack.c.b16 %v436, %v428
    %v637 = vpack.c.b16 %v437, %v429
    %v638 = vpack.c.b16 %v438, %v430
    %v639 = vpack.c.b16 %v447, %v439
    %v640 = vpack.c.b16 %v448, %v440
    %v641 = vpack.c.b16 %v449, %v441
    %v642 = vpack.c.b16 %v450, %v442
    %v643 = vpack.c.b16 %v451, %v443
    %v644 = vpack.c.b16 %v452, %v444
    %v645 = vpack.c.b16 %v453, %v445
    %v646 = vpack.c.b16 %v454, %v446
    %v647 = vpack.c.b16 %v463, %v455
    %v648 = vpack.c.b16 %v464, %v456
    %v649 = vpack.c.b16 %v465, %v457
    %v650 = vpack.c.b16 %v466, %v458
    %v651 = vpack.c.b16 %v467, %v459
    %v652 = vpack.c.b16 %v468, %v460
    %v653 = vpack.c.b16 %v469, %v461
    %v654 = vpack.c.b16 %v470, %v462
    %v655 = vpack.c.b16 %v479, %v471
    %v656 = vpack.c.b16 %v480, %v472
    %v657 = vpack.c.b16 %v481, %v473
    %v658 = vpack.c.b16 %v482, %v474
    %v659 = vpack.c.b16 %v483, %v475
    %v660 = vpack.c.b16 %v484, %v476
    %v661 = vpack.c.b16 %v485, %v477
    %v662 = vpack.c.b16 %v486, %v478
    %v663 = vpack.c.b16 %v495, %v487
    %v664 = vpack.c.b16 %v496, %v488
    %v665 = vpack.c.b16 %v497, %v489
    %v666 = vpack.c.b16 %v498, %v490
    %v667 = vpack.c.b16 %v499, %v491
    %v668 = vpack.c.b16 %v500, %v492
    %v669 = vpack.c.b16 %v501, %v493
    %v670 = vpack.c.b16 %v502, %v494
    %v671 = vpack.c.b16 %v511, %v503
    %v672 = vpack.c.b16 %v512, %v504
    %v673 = vpack.c.b16 %v513, %v505
    %v674 = vpack.c.b16 %v514, %v506
    %v675 = vpack.c.b16 %v515, %v507
    %v676 = vpack.c.b16 %v516, %v508
    %v677 = vpack.c.b16 %v517, %v509
    %v678 = vpack.c.b16 %v518, %v510
    %v679 = vpack.c.b16 %v527, %v519
    %v680 = vpack.c.b16 %v528, %v520
    %v681 = vpack.c.b16 %v529, %v521
    %v682 = vpack.c.b16 %v530, %v522
    %v683 = vpack.c.b16 %v531, %v523
    %v684 = vpack.c.b16 %v532, %v524
    %v685 = vpack.c.b16 %v533, %v525
    %v686 = vpack.c.b16 %v534, %v526
    %v687 = vpack.c.b16 %v543, %v535
    %v688 = vpack.c.b16 %v544, %v536
    %v689 = vpack.c.b16 %v545, %v537
    %v690 = vpack.c.b16 %v546, %v538
    %v691 = vpack.c.b16 %v547, %v539
    %v692 = vpack.c.b16 %v548, %v540
    %v693 = vpack.c.b16 %v549, %v541
    %v694 = vpack.c.b16 %v550, %v542
    %v695 = vpack.c.b16 %v559, %v551
    %v696 = vpack.c.b16 %v560, %v552
    %v697 = vpack.c.b16 %v561, %v553
    %v698 = vpack.c.b16 %v562, %v554
    %v699 = vpack.c.b16 %v563, %v555
    %v700 = vpack.c.b16 %v564, %v556
    %v701 = vpack.c.b16 %v565, %v557
    %v702 = vpack.c.b16 %v566, %v558
    %v703 = vpack.c.b16 %v575, %v567
    %v704 = vpack.c.b16 %v576, %v568
    %v705 = vpack.c.b16 %v577, %v569
    %v706 = vpack.c.b16 %v578, %v570
    %v707 = vpack.c.b16 %v579, %v571
    %v708 = vpack.c.b16 %v580, %v572
    %v709 = vpack.c.b16 %v581, %v573
    %v710 = vpack.c.b16 %v582, %v574
    %839 = vmatprep.subr.bf16.mxu0 %v584
    %840 = vmatpush1.bf16.msra.mxu0 %v583
    %841 = vmatprep.subr.bf16.mxu0 %v592
    %842 = vmatpush1.bf16.msra.mxu0 %v591
    %843 = vmatprep.subr.bf16.mxu0 %v600
    %844 = vmatpush1.bf16.msra.mxu0 %v599
    %845 = vmatprep.subr.bf16.mxu0 %v608
    %846 = vmatpush1.bf16.msra.mxu0 %v607
    %847 = vmatprep.subr.bf16.mxu0 %v616
    %848 = vmatpush1.bf16.msra.mxu0 %v615
    %849 = vmatprep.subr.bf16.mxu0 %v624
    %850 = vmatpush1.bf16.msra.mxu0 %v623
    %851 = vmatprep.subr.bf16.mxu0 %v632
    %852 = vmatpush1.bf16.msra.mxu0 %v631
    %853 = vmatprep.subr.bf16.mxu0 %v640
    %854 = vmatpush1.bf16.msra.mxu0 %v639
    %855 = vmatprep.subr.bf16.mxu0 %v648
    %856 = vmatpush1.bf16.msra.mxu0 %v647
    %857 = vmatprep.subr.bf16.mxu0 %v656
    %858 = vmatpush1.bf16.msra.mxu0 %v655
    %859 = vmatprep.subr.bf16.mxu0 %v664
    %860 = vmatpush1.bf16.msra.mxu0 %v663
    %861 = vmatprep.subr.bf16.mxu0 %v672
    %862 = vmatpush1.bf16.msra.mxu0 %v671
    %863 = vmatprep.subr.bf16.mxu0 %v680
    %864 = vmatpush1.bf16.msra.mxu0 %v679
    %865 = vmatprep.subr.bf16.mxu0 %v688
    %866 = vmatpush1.bf16.msra.mxu0 %v687
    %867 = vmatprep.subr.bf16.mxu0 %v696
    %868 = vmatpush1.bf16.msra.mxu0 %v695
    %869 = vmatprep.subr.bf16.mxu0 %v704
    %870 = vmatpush1.bf16.msra.mxu0 %v703
    %871 = vmatprep.mubr.bf16.mxu0 %v28
    %872 = vmatmul.mubr.bf16.gmra.mrb[0].mxu0 %v27
    %v873 = vpop.f32.mrb[0].mxu0
    %v874 = vadd.f32 %v162, %v873
    %v875 = vpop.f32.mrb[0].mxu0
    %v876 = vadd.f32 %v166, %v875
    %v877 = vpop.f32.mrb[0].mxu0
    %v878 = vpop.f32.mrb[0].mxu0
    %879 = vdwg.mxu0
    %880 = vmatprep.subr.bf16.mxu0 %v586
    %881 = vmatpush1.bf16.msra.mxu0 %v585
    %882 = vmatprep.subr.bf16.mxu0 %v594
    %883 = vmatpush1.bf16.msra.mxu0 %v593
    %884 = vmatprep.subr.bf16.mxu0 %v602
    %885 = vmatpush1.bf16.msra.mxu0 %v601
    %886 = vmatprep.subr.bf16.mxu0 %v610
    %887 = vmatpush1.bf16.msra.mxu0 %v609
    %888 = vmatprep.subr.bf16.mxu0 %v618
    %889 = vmatpush1.bf16.msra.mxu0 %v617
    %890 = vmatprep.subr.bf16.mxu0 %v626
    %891 = vmatpush1.bf16.msra.mxu0 %v625
    %892 = vmatprep.subr.bf16.mxu0 %v634
    %893 = vmatpush1.bf16.msra.mxu0 %v633
    %894 = vmatprep.subr.bf16.mxu0 %v642
    %895 = vmatpush1.bf16.msra.mxu0 %v641
    %896 = vmatprep.subr.bf16.mxu0 %v650
    %897 = vmatpush1.bf16.msra.mxu0 %v649
    %898 = vmatprep.subr.bf16.mxu0 %v658
    %899 = vmatpush1.bf16.msra.mxu0 %v657
    %900 = vmatprep.subr.bf16.mxu0 %v666
    %901 = vmatpush1.bf16.msra.mxu0 %v665
    %902 = vmatprep.subr.bf16.mxu0 %v674
    %903 = vmatpush1.bf16.msra.mxu0 %v673
    %904 = vmatprep.subr.bf16.mxu0 %v682
    %905 = vmatpush1.bf16.msra.mxu0 %v681
    %906 = vmatprep.subr.bf16.mxu0 %v690
    %907 = vmatpush1.bf16.msra.mxu0 %v689
    %908 = vmatprep.subr.bf16.mxu0 %v698
    %909 = vmatpush1.bf16.msra.mxu0 %v697
    %910 = vmatprep.subr.bf16.mxu0 %v706
    %911 = vmatpush1.bf16.msra.mxu0 %v705
    %912 = vmatprep.mubr.bf16.mxu0 %v28
    %913 = vmatmul.mubr.bf16.gmra.mrb[0].mxu0 %v27
    %v914 = vpop.f32.mrb[0].mxu0
    %v915 = vadd.f32 %v170, %v914
    %v916 = vpop.f32.mrb[0].mxu0
    %v917 = vadd.f32 %v174, %v916
    %v918 = vpop.f32.mrb[0].mxu0
    %v919 = vpop.f32.mrb[0].mxu0
    %920 = vdwg.mxu0
    %921 = vmatprep.subr.bf16.mxu0 %v588
    %922 = vmatpush1.bf16.msra.mxu0 %v587
    %923 = vmatprep.subr.bf16.mxu0 %v596
    %924 = vmatpush1.bf16.msra.mxu0 %v595
    %925 = vmatprep.subr.bf16.mxu0 %v604
    %926 = vmatpush1.bf16.msra.mxu0 %v603
    %927 = vmatprep.subr.bf16.mxu0 %v612
    %928 = vmatpush1.bf16.msra.mxu0 %v611
    %929 = vmatprep.subr.bf16.mxu0 %v620
    %930 = vmatpush1.bf16.msra.mxu0 %v619
    %931 = vmatprep.subr.bf16.mxu0 %v628
    %932 = vmatpush1.bf16.msra.mxu0 %v627
    %933 = vmatprep.subr.bf16.mxu0 %v636
    %934 = vmatpush1.bf16.msra.mxu0 %v635
    %935 = vmatprep.subr.bf16.mxu0 %v644
    %936 = vmatpush1.bf16.msra.mxu0 %v643
    %937 = vmatprep.subr.bf16.mxu0 %v652
    %938 = vmatpush1.bf16.msra.mxu0 %v651
    %939 = vmatprep.subr.bf16.mxu0 %v660
    %940 = vmatpush1.bf16.msra.mxu0 %v659
    %941 = vmatprep.subr.bf16.mxu0 %v668
    %942 = vmatpush1.bf16.msra.mxu0 %v667
    %943 = vmatprep.subr.bf16.mxu0 %v676
    %944 = vmatpush1.bf16.msra.mxu0 %v675
    %945 = vmatprep.subr.bf16.mxu0 %v684
    %946 = vmatpush1.bf16.msra.mxu0 %v683
    %947 = vmatprep.subr.bf16.mxu0 %v692
    %948 = vmatpush1.bf16.msra.mxu0 %v691
    %949 = vmatprep.subr.bf16.mxu0 %v700
    %950 = vmatpush1.bf16.msra.mxu0 %v699
    %951 = vmatprep.subr.bf16.mxu0 %v708
    %952 = vmatpush1.bf16.msra.mxu0 %v707
    %953 = vmatprep.mubr.bf16.mxu0 %v28
    %954 = vmatmul.mubr.bf16.gmra.mrb[0].mxu0 %v27
    %v955 = vpop.f32.mrb[0].mxu0
    %v956 = vadd.f32 %v178, %v955
    %v957 = vpop.f32.mrb[0].mxu0
    %v958 = vadd.f32 %v182, %v957
    %v959 = vpop.f32.mrb[0].mxu0
    %v960 = vpop.f32.mrb[0].mxu0
    %961 = vdwg.mxu0
    %962 = vmatprep.subr.bf16.mxu0 %v590
    %963 = vmatpush1.bf16.msra.mxu0 %v589
    %964 = vmatprep.subr.bf16.mxu0 %v598
    %965 = vmatpush1.bf16.msra.mxu0 %v597
    %966 = vmatprep.subr.bf16.mxu0 %v606
    %967 = vmatpush1.bf16.msra.mxu0 %v605
    %968 = vmatprep.subr.bf16.mxu0 %v614
    %969 = vmatpush1.bf16.msra.mxu0 %v613
    %970 = vmatprep.subr.bf16.mxu0 %v622
    %971 = vmatpush1.bf16.msra.mxu0 %v621
    %972 = vmatprep.subr.bf16.mxu0 %v630
    %973 = vmatpush1.bf16.msra.mxu0 %v629
    %974 = vmatprep.subr.bf16.mxu0 %v638
    %975 = vmatpush1.bf16.msra.mxu0 %v637
    %976 = vmatprep.subr.bf16.mxu0 %v646
    %977 = vmatpush1.bf16.msra.mxu0 %v645
    %978 = vmatprep.subr.bf16.mxu0 %v654
    %979 = vmatpush1.bf16.msra.mxu0 %v653
    %980 = vmatprep.subr.bf16.mxu0 %v662
    %981 = vmatpush1.bf16.msra.mxu0 %v661
    %982 = vmatprep.subr.bf16.mxu0 %v670
    %983 = vmatpush1.bf16.msra.mxu0 %v669
    %984 = vmatprep.subr.bf16.mxu0 %v678
    %985 = vmatpush1.bf16.msra.mxu0 %v677
    %986 = vmatprep.subr.bf16.mxu0 %v686
    %987 = vmatpush1.bf16.msra.mxu0 %v685
    %988 = vmatprep.subr.bf16.mxu0 %v694
    %989 = vmatpush1.bf16.msra.mxu0 %v693
    %990 = vmatprep.subr.bf16.mxu0 %v702
    %991 = vmatpush1.bf16.msra.mxu0 %v701
    %992 = vmatprep.subr.bf16.mxu0 %v710
    %993 = vmatpush1.bf16.msra.mxu0 %v709
    %994 = vmatprep.mubr.bf16.mxu0 %v28
    %995 = vmatmul.mubr.bf16.gmra.mrb[0].mxu0 %v27
    %v996 = vpop.f32.mrb[0].mxu0
    %v997 = vadd.f32 %v186, %v996
    %v998 = vpop.f32.mrb[0].mxu0
    %v999 = vadd.f32 %v190, %v998
    %v1000 = vpop.f32.mrb[0].mxu0
    %v1001 = vpop.f32.mrb[0].mxu0
    %1002 = vdwg.mxu0
    %1003 = vst [vmem:[#allocation2] sm:$0xff] %v874
    %1004 = vst [vmem:[#allocation2 + $0x8] sm:$0xff] %v876
    %1005 = vst [vmem:[#allocation2 + $0x10] sm:$0xff] %v915
    %1006 = vst [vmem:[#allocation2 + $0x18] sm:$0xff] %v917
    %1007 = vst [vmem:[#allocation2 + $0x20] sm:$0xff] %v956
    %1008 = vst [vmem:[#allocation2 + $0x28] sm:$0xff] %v958
    %1009 = vst [vmem:[#allocation2 + $0x30] sm:$0xff] %v997
    %1010 = vst [vmem:[#allocation2 + $0x38] sm:$0xff] %v999
    %v1011 = vld [vmem:[#allocation2] sm:$0x3]
    %v1012 = vld [vmem:[#allocation2 + $0x8] sm:$0x3]
    %v1013 = vld [vmem:[#allocation2 + $0x10] sm:$0x3]
    %v1014 = vld [vmem:[#allocation2 + $0x18] sm:$0x3]
    %v1015 = vld [vmem:[#allocation2 + $0x20] sm:$0x3]
    %v1016 = vld [vmem:[#allocation2 + $0x28] sm:$0x3]
    %v1017 = vld [vmem:[#allocation2 + $0x30] sm:$0x3]
    %v1018 = vld [vmem:[#allocation2 + $0x38] sm:$0x3]
    %v1019 = vld [vmem:[%s2] sm:$0xff]
    %v1020 = vld [vmem:[%s2 + $0x8] sm:$0xff]
    %v1021 = vld [vmem:[%s2 + $0x10] sm:$0xff]
    %v1022 = vld [vmem:[%s2 + $0x18] sm:$0xff]
    %v1023 = vld [vmem:[%s2 + $0x20] sm:$0xff]
    %v1024 = vld [vmem:[%s2 + $0x28] sm:$0xff]
    %v1025 = vld [vmem:[%s2 + $0x30] sm:$0xff]
    %v1026 = vld [vmem:[%s2 + $0x38] sm:$0xff]
    %v1027 = vld [vmem:[%s2 + $0x40] sm:$0xff]
    %v1028 = vld [vmem:[%s2 + $0x48] sm:$0xff]
    %v1029 = vld [vmem:[%s2 + $0x50] sm:$0xff]
    %v1030 = vld [vmem:[%s2 + $0x58] sm:$0xff]
    %v1031 = vld [vmem:[%s2 + $0x60] sm:$0xff]
    %v1032 = vld [vmem:[%s2 + $0x68] sm:$0xff]
    %v1033 = vld [vmem:[%s2 + $0x70] sm:$0xff]
    %v1034 = vld [vmem:[%s2 + $0x78] sm:$0xff]
    %v1035 = vld [vmem:[%s2 + $0x80] sm:$0xff]
    %v1036 = vld [vmem:[%s2 + $0x88] sm:$0xff]
    %v1037 = vld [vmem:[%s2 + $0x90] sm:$0xff]
    %v1038 = vld [vmem:[%s2 + $0x98] sm:$0xff]
    %v1039 = vld [vmem:[%s2 + $0xa0] sm:$0xff]
    %v1040 = vld [vmem:[%s2 + $0xa8] sm:$0xff]
    %v1041 = vld [vmem:[%s2 + $0xb0] sm:$0xff]
    %v1042 = vld [vmem:[%s2 + $0xb8] sm:$0xff]
    %v1043 = vld [vmem:[%s2 + $0xc0] sm:$0xff]
    %v1044 = vld [vmem:[%s2 + $0xc8] sm:$0xff]
    %v1045 = vld [vmem:[%s2 + $0xd0] sm:$0xff]
    %v1046 = vld [vmem:[%s2 + $0xd8] sm:$0xff]
    %v1047 = vld [vmem:[%s2 + $0xe0] sm:$0xff]
    %v1048 = vld [vmem:[%s2 + $0xe8] sm:$0xff]
    %v1049 = vld [vmem:[%s2 + $0xf0] sm:$0xff]
    %v1050 = vld [vmem:[%s2 + $0xf8] sm:$0xff]
    %v1051 = vld [vmem:[%s2 + $0x100] sm:$0xff]
    %v1052 = vld [vmem:[%s2 + $0x108] sm:$0xff]
    %v1053 = vld [vmem:[%s2 + $0x110] sm:$0xff]
    %v1054 = vld [vmem:[%s2 + $0x118] sm:$0xff]
    %v1055 = vld [vmem:[%s2 + $0x120] sm:$0xff]
    %v1056 = vld [vmem:[%s2 + $0x128] sm:$0xff]
    %v1057 = vld [vmem:[%s2 + $0x130] sm:$0xff]
    %v1058 = vld [vmem:[%s2 + $0x138] sm:$0xff]
    %v1059 = vld [vmem:[%s2 + $0x140] sm:$0xff]
    %v1060 = vld [vmem:[%s2 + $0x148] sm:$0xff]
    %v1061 = vld [vmem:[%s2 + $0x150] sm:$0xff]
    %v1062 = vld [vmem:[%s2 + $0x158] sm:$0xff]
    %v1063 = vld [vmem:[%s2 + $0x160] sm:$0xff]
    %v1064 = vld [vmem:[%s2 + $0x168] sm:$0xff]
    %v1065 = vld [vmem:[%s2 + $0x170] sm:$0xff]
    %v1066 = vld [vmem:[%s2 + $0x178] sm:$0xff]
    %v1067 = vld [vmem:[%s2 + $0x180] sm:$0xff]
    %v1068 = vld [vmem:[%s2 + $0x188] sm:$0xff]
    %v1069 = vld [vmem:[%s2 + $0x190] sm:$0xff]
    %v1070 = vld [vmem:[%s2 + $0x198] sm:$0xff]
    %v1071 = vld [vmem:[%s2 + $0x1a0] sm:$0xff]
    %v1072 = vld [vmem:[%s2 + $0x1a8] sm:$0xff]
    %v1073 = vld [vmem:[%s2 + $0x1b0] sm:$0xff]
    %v1074 = vld [vmem:[%s2 + $0x1b8] sm:$0xff]
    %v1075 = vld [vmem:[%s2 + $0x1c0] sm:$0xff]
    %v1076 = vld [vmem:[%s2 + $0x1c8] sm:$0xff]
    %v1077 = vld [vmem:[%s2 + $0x1d0] sm:$0xff]
    %v1078 = vld [vmem:[%s2 + $0x1d8] sm:$0xff]
    %v1079 = vld [vmem:[%s2 + $0x1e0] sm:$0xff]
    %v1080 = vld [vmem:[%s2 + $0x1e8] sm:$0xff]
    %v1081 = vld [vmem:[%s2 + $0x1f0] sm:$0xff]
    %v1082 = vld [vmem:[%s2 + $0x1f8] sm:$0xff]
    %v1083 = vld [vmem:[%s2 + $0x200] sm:$0xff]
    %v1084 = vld [vmem:[%s2 + $0x208] sm:$0xff]
    %v1085 = vld [vmem:[%s2 + $0x210] sm:$0xff]
    %v1086 = vld [vmem:[%s2 + $0x218] sm:$0xff]
    %v1087 = vld [vmem:[%s2 + $0x220] sm:$0xff]
    %v1088 = vld [vmem:[%s2 + $0x228] sm:$0xff]
    %v1089 = vld [vmem:[%s2 + $0x230] sm:$0xff]
    %v1090 = vld [vmem:[%s2 + $0x238] sm:$0xff]
    %v1091 = vld [vmem:[%s2 + $0x240] sm:$0xff]
    %v1092 = vld [vmem:[%s2 + $0x248] sm:$0xff]
    %v1093 = vld [vmem:[%s2 + $0x250] sm:$0xff]
    %v1094 = vld [vmem:[%s2 + $0x258] sm:$0xff]
    %v1095 = vld [vmem:[%s2 + $0x260] sm:$0xff]
    %v1096 = vld [vmem:[%s2 + $0x268] sm:$0xff]
    %v1097 = vld [vmem:[%s2 + $0x270] sm:$0xff]
    %v1098 = vld [vmem:[%s2 + $0x278] sm:$0xff]
    %v1099 = vld [vmem:[%s2 + $0x280] sm:$0xff]
    %v1100 = vld [vmem:[%s2 + $0x288] sm:$0xff]
    %v1101 = vld [vmem:[%s2 + $0x290] sm:$0xff]
    %v1102 = vld [vmem:[%s2 + $0x298] sm:$0xff]
    %v1103 = vld [vmem:[%s2 + $0x2a0] sm:$0xff]
    %v1104 = vld [vmem:[%s2 + $0x2a8] sm:$0xff]
    %v1105 = vld [vmem:[%s2 + $0x2b0] sm:$0xff]
    %v1106 = vld [vmem:[%s2 + $0x2b8] sm:$0xff]
    %v1107 = vld [vmem:[%s2 + $0x2c0] sm:$0xff]
    %v1108 = vld [vmem:[%s2 + $0x2c8] sm:$0xff]
    %v1109 = vld [vmem:[%s2 + $0x2d0] sm:$0xff]
    %v1110 = vld [vmem:[%s2 + $0x2d8] sm:$0xff]
    %v1111 = vld [vmem:[%s2 + $0x2e0] sm:$0xff]
    %v1112 = vld [vmem:[%s2 + $0x2e8] sm:$0xff]
    %v1113 = vld [vmem:[%s2 + $0x2f0] sm:$0xff]
    %v1114 = vld [vmem:[%s2 + $0x2f8] sm:$0xff]
    %v1115 = vld [vmem:[%s2 + $0x300] sm:$0xff]
    %v1116 = vld [vmem:[%s2 + $0x308] sm:$0xff]
    %v1117 = vld [vmem:[%s2 + $0x310] sm:$0xff]
    %v1118 = vld [vmem:[%s2 + $0x318] sm:$0xff]
    %v1119 = vld [vmem:[%s2 + $0x320] sm:$0xff]
    %v1120 = vld [vmem:[%s2 + $0x328] sm:$0xff]
    %v1121 = vld [vmem:[%s2 + $0x330] sm:$0xff]
    %v1122 = vld [vmem:[%s2 + $0x338] sm:$0xff]
    %v1123 = vld [vmem:[%s2 + $0x340] sm:$0xff]
    %v1124 = vld [vmem:[%s2 + $0x348] sm:$0xff]
    %v1125 = vld [vmem:[%s2 + $0x350] sm:$0xff]
    %v1126 = vld [vmem:[%s2 + $0x358] sm:$0xff]
    %v1127 = vld [vmem:[%s2 + $0x360] sm:$0xff]
    %v1128 = vld [vmem:[%s2 + $0x368] sm:$0xff]
    %v1129 = vld [vmem:[%s2 + $0x370] sm:$0xff]
    %v1130 = vld [vmem:[%s2 + $0x378] sm:$0xff]
    %v1131 = vld [vmem:[%s2 + $0x380] sm:$0xff]
    %v1132 = vld [vmem:[%s2 + $0x388] sm:$0xff]
    %v1133 = vld [vmem:[%s2 + $0x390] sm:$0xff]
    %v1134 = vld [vmem:[%s2 + $0x398] sm:$0xff]
    %v1135 = vld [vmem:[%s2 + $0x3a0] sm:$0xff]
    %v1136 = vld [vmem:[%s2 + $0x3a8] sm:$0xff]
    %v1137 = vld [vmem:[%s2 + $0x3b0] sm:$0xff]
    %v1138 = vld [vmem:[%s2 + $0x3b8] sm:$0xff]
    %v1139 = vld [vmem:[%s2 + $0x3c0] sm:$0xff]
    %v1140 = vld [vmem:[%s2 + $0x3c8] sm:$0xff]
    %v1141 = vld [vmem:[%s2 + $0x3d0] sm:$0xff]
    %v1142 = vld [vmem:[%s2 + $0x3d8] sm:$0xff]
    %v1143 = vld [vmem:[%s2 + $0x3e0] sm:$0xff]
    %v1144 = vld [vmem:[%s2 + $0x3e8] sm:$0xff]
    %v1145 = vld [vmem:[%s2 + $0x3f0] sm:$0xff]
    %v1146 = vld [vmem:[%s2 + $0x3f8] sm:$0xff]
    %v1275 = vunpack.c.l.b16 %v1019
    %v1276 = vunpack.c.h.b16 %v1019
    %v1277 = vunpack.c.l.b16 %v1020
    %v1278 = vunpack.c.h.b16 %v1020
    %v1279 = vunpack.c.l.b16 %v1021
    %v1280 = vunpack.c.h.b16 %v1021
    %v1281 = vunpack.c.l.b16 %v1022
    %v1282 = vunpack.c.h.b16 %v1022
    %v1283 = vunpack.c.l.b16 %v1023
    %v1284 = vunpack.c.h.b16 %v1023
    %v1285 = vunpack.c.l.b16 %v1024
    %v1286 = vunpack.c.h.b16 %v1024
    %v1287 = vunpack.c.l.b16 %v1025
    %v1288 = vunpack.c.h.b16 %v1025
    %v1289 = vunpack.c.l.b16 %v1026
    %v1290 = vunpack.c.h.b16 %v1026
    %v1291 = vunpack.c.l.b16 %v1027
    %v1292 = vunpack.c.h.b16 %v1027
    %v1293 = vunpack.c.l.b16 %v1028
    %v1294 = vunpack.c.h.b16 %v1028
    %v1295 = vunpack.c.l.b16 %v1029
    %v1296 = vunpack.c.h.b16 %v1029
    %v1297 = vunpack.c.l.b16 %v1030
    %v1298 = vunpack.c.h.b16 %v1030
    %v1299 = vunpack.c.l.b16 %v1031
    %v1300 = vunpack.c.h.b16 %v1031
    %v1301 = vunpack.c.l.b16 %v1032
    %v1302 = vunpack.c.h.b16 %v1032
    %v1303 = vunpack.c.l.b16 %v1033
    %v1304 = vunpack.c.h.b16 %v1033
    %v1305 = vunpack.c.l.b16 %v1034
    %v1306 = vunpack.c.h.b16 %v1034
    %v1307 = vunpack.c.l.b16 %v1035
    %v1308 = vunpack.c.h.b16 %v1035
    %v1309 = vunpack.c.l.b16 %v1036
    %v1310 = vunpack.c.h.b16 %v1036
    %v1311 = vunpack.c.l.b16 %v1037
    %v1312 = vunpack.c.h.b16 %v1037
    %v1313 = vunpack.c.l.b16 %v1038
    %v1314 = vunpack.c.h.b16 %v1038
    %v1315 = vunpack.c.l.b16 %v1039
    %v1316 = vunpack.c.h.b16 %v1039
    %v1317 = vunpack.c.l.b16 %v1040
    %v1318 = vunpack.c.h.b16 %v1040
    %v1319 = vunpack.c.l.b16 %v1041
    %v1320 = vunpack.c.h.b16 %v1041
    %v1321 = vunpack.c.l.b16 %v1042
    %v1322 = vunpack.c.h.b16 %v1042
    %v1323 = vunpack.c.l.b16 %v1043
    %v1324 = vunpack.c.h.b16 %v1043
    %v1325 = vunpack.c.l.b16 %v1044
    %v1326 = vunpack.c.h.b16 %v1044
    %v1327 = vunpack.c.l.b16 %v1045
    %v1328 = vunpack.c.h.b16 %v1045
    %v1329 = vunpack.c.l.b16 %v1046
    %v1330 = vunpack.c.h.b16 %v1046
    %v1331 = vunpack.c.l.b16 %v1047
    %v1332 = vunpack.c.h.b16 %v1047
    %v1333 = vunpack.c.l.b16 %v1048
    %v1334 = vunpack.c.h.b16 %v1048
    %v1335 = vunpack.c.l.b16 %v1049
    %v1336 = vunpack.c.h.b16 %v1049
    %v1337 = vunpack.c.l.b16 %v1050
    %v1338 = vunpack.c.h.b16 %v1050
    %v1339 = vunpack.c.l.b16 %v1051
    %v1340 = vunpack.c.h.b16 %v1051
    %v1341 = vunpack.c.l.b16 %v1052
    %v1342 = vunpack.c.h.b16 %v1052
    %v1343 = vunpack.c.l.b16 %v1053
    %v1344 = vunpack.c.h.b16 %v1053
    %v1345 = vunpack.c.l.b16 %v1054
    %v1346 = vunpack.c.h.b16 %v1054
    %v1347 = vunpack.c.l.b16 %v1055
    %v1348 = vunpack.c.h.b16 %v1055
    %v1349 = vunpack.c.l.b16 %v1056
    %v1350 = vunpack.c.h.b16 %v1056
    %v1351 = vunpack.c.l.b16 %v1057
    %v1352 = vunpack.c.h.b16 %v1057
    %v1353 = vunpack.c.l.b16 %v1058
    %v1354 = vunpack.c.h.b16 %v1058
    %v1355 = vunpack.c.l.b16 %v1059
    %v1356 = vunpack.c.h.b16 %v1059
    %v1357 = vunpack.c.l.b16 %v1060
    %v1358 = vunpack.c.h.b16 %v1060
    %v1359 = vunpack.c.l.b16 %v1061
    %v1360 = vunpack.c.h.b16 %v1061
    %v1361 = vunpack.c.l.b16 %v1062
    %v1362 = vunpack.c.h.b16 %v1062
    %v1363 = vunpack.c.l.b16 %v1063
    %v1364 = vunpack.c.h.b16 %v1063
    %v1365 = vunpack.c.l.b16 %v1064
    %v1366 = vunpack.c.h.b16 %v1064
    %v1367 = vunpack.c.l.b16 %v1065
    %v1368 = vunpack.c.h.b16 %v1065
    %v1369 = vunpack.c.l.b16 %v1066
    %v1370 = vunpack.c.h.b16 %v1066
    %v1371 = vunpack.c.l.b16 %v1067
    %v1372 = vunpack.c.h.b16 %v1067
    %v1373 = vunpack.c.l.b16 %v1068
    %v1374 = vunpack.c.h.b16 %v1068
    %v1375 = vunpack.c.l.b16 %v1069
    %v1376 = vunpack.c.h.b16 %v1069
    %v1377 = vunpack.c.l.b16 %v1070
    %v1378 = vunpack.c.h.b16 %v1070
    %v1379 = vunpack.c.l.b16 %v1071
    %v1380 = vunpack.c.h.b16 %v1071
    %v1381 = vunpack.c.l.b16 %v1072
    %v1382 = vunpack.c.h.b16 %v1072
    %v1383 = vunpack.c.l.b16 %v1073
    %v1384 = vunpack.c.h.b16 %v1073
    %v1385 = vunpack.c.l.b16 %v1074
    %v1386 = vunpack.c.h.b16 %v1074
    %v1387 = vunpack.c.l.b16 %v1075
    %v1388 = vunpack.c.h.b16 %v1075
    %v1389 = vunpack.c.l.b16 %v1076
    %v1390 = vunpack.c.h.b16 %v1076
    %v1391 = vunpack.c.l.b16 %v1077
    %v1392 = vunpack.c.h.b16 %v1077
    %v1393 = vunpack.c.l.b16 %v1078
    %v1394 = vunpack.c.h.b16 %v1078
    %v1395 = vunpack.c.l.b16 %v1079
    %v1396 = vunpack.c.h.b16 %v1079
    %v1397 = vunpack.c.l.b16 %v1080
    %v1398 = vunpack.c.h.b16 %v1080
    %v1399 = vunpack.c.l.b16 %v1081
    %v1400 = vunpack.c.h.b16 %v1081
    %v1401 = vunpack.c.l.b16 %v1082
    %v1402 = vunpack.c.h.b16 %v1082
    %v1403 = vunpack.c.l.b16 %v1083
    %v1404 = vunpack.c.h.b16 %v1083
    %v1405 = vunpack.c.l.b16 %v1084
    %v1406 = vunpack.c.h.b16 %v1084
    %v1407 = vunpack.c.l.b16 %v1085
    %v1408 = vunpack.c.h.b16 %v1085
    %v1409 = vunpack.c.l.b16 %v1086
    %v1410 = vunpack.c.h.b16 %v1086
    %v1411 = vunpack.c.l.b16 %v1087
    %v1412 = vunpack.c.h.b16 %v1087
    %v1413 = vunpack.c.l.b16 %v1088
    %v1414 = vunpack.c.h.b16 %v1088
    %v1415 = vunpack.c.l.b16 %v1089
    %v1416 = vunpack.c.h.b16 %v1089
    %v1417 = vunpack.c.l.b16 %v1090
    %v1418 = vunpack.c.h.b16 %v1090
    %v1419 = vunpack.c.l.b16 %v1091
    %v1420 = vunpack.c.h.b16 %v1091
    %v1421 = vunpack.c.l.b16 %v1092
    %v1422 = vunpack.c.h.b16 %v1092
    %v1423 = vunpack.c.l.b16 %v1093
    %v1424 = vunpack.c.h.b16 %v1093
    %v1425 = vunpack.c.l.b16 %v1094
    %v1426 = vunpack.c.h.b16 %v1094
    %v1427 = vunpack.c.l.b16 %v1095
    %v1428 = vunpack.c.h.b16 %v1095
    %v1429 = vunpack.c.l.b16 %v1096
    %v1430 = vunpack.c.h.b16 %v1096
    %v1431 = vunpack.c.l.b16 %v1097
    %v1432 = vunpack.c.h.b16 %v1097
    %v1433 = vunpack.c.l.b16 %v1098
    %v1434 = vunpack.c.h.b16 %v1098
    %v1435 = vunpack.c.l.b16 %v1099
    %v1436 = vunpack.c.h.b16 %v1099
    %v1437 = vunpack.c.l.b16 %v1100
    %v1438 = vunpack.c.h.b16 %v1100
    %v1439 = vunpack.c.l.b16 %v1101
    %v1440 = vunpack.c.h.b16 %v1101
    %v1441 = vunpack.c.l.b16 %v1102
    %v1442 = vunpack.c.h.b16 %v1102
    %v1443 = vunpack.c.l.b16 %v1103
    %v1444 = vunpack.c.h.b16 %v1103
    %v1445 = vunpack.c.l.b16 %v1104
    %v1446 = vunpack.c.h.b16 %v1104
    %v1447 = vunpack.c.l.b16 %v1105
    %v1448 = vunpack.c.h.b16 %v1105
    %v1449 = vunpack.c.l.b16 %v1106
    %v1450 = vunpack.c.h.b16 %v1106
    %v1451 = vunpack.c.l.b16 %v1107
    %v1452 = vunpack.c.h.b16 %v1107
    %v1453 = vunpack.c.l.b16 %v1108
    %v1454 = vunpack.c.h.b16 %v1108
    %v1455 = vunpack.c.l.b16 %v1109
    %v1456 = vunpack.c.h.b16 %v1109
    %v1457 = vunpack.c.l.b16 %v1110
    %v1458 = vunpack.c.h.b16 %v1110
    %v1459 = vunpack.c.l.b16 %v1111
    %v1460 = vunpack.c.h.b16 %v1111
    %v1461 = vunpack.c.l.b16 %v1112
    %v1462 = vunpack.c.h.b16 %v1112
    %v1463 = vunpack.c.l.b16 %v1113
    %v1464 = vunpack.c.h.b16 %v1113
    %v1465 = vunpack.c.l.b16 %v1114
    %v1466 = vunpack.c.h.b16 %v1114
    %v1467 = vunpack.c.l.b16 %v1115
    %v1468 = vunpack.c.h.b16 %v1115
    %v1469 = vunpack.c.l.b16 %v1116
    %v1470 = vunpack.c.h.b16 %v1116
    %v1471 = vunpack.c.l.b16 %v1117
    %v1472 = vunpack.c.h.b16 %v1117
    %v1473 = vunpack.c.l.b16 %v1118
    %v1474 = vunpack.c.h.b16 %v1118
    %v1475 = vunpack.c.l.b16 %v1119
    %v1476 = vunpack.c.h.b16 %v1119
    %v1477 = vunpack.c.l.b16 %v1120
    %v1478 = vunpack.c.h.b16 %v1120
    %v1479 = vunpack.c.l.b16 %v1121
    %v1480 = vunpack.c.h.b16 %v1121
    %v1481 = vunpack.c.l.b16 %v1122
    %v1482 = vunpack.c.h.b16 %v1122
    %v1483 = vunpack.c.l.b16 %v1123
    %v1484 = vunpack.c.h.b16 %v1123
    %v1485 = vunpack.c.l.b16 %v1124
    %v1486 = vunpack.c.h.b16 %v1124
    %v1487 = vunpack.c.l.b16 %v1125
    %v1488 = vunpack.c.h.b16 %v1125
    %v1489 = vunpack.c.l.b16 %v1126
    %v1490 = vunpack.c.h.b16 %v1126
    %v1491 = vunpack.c.l.b16 %v1127
    %v1492 = vunpack.c.h.b16 %v1127
    %v1493 = vunpack.c.l.b16 %v1128
    %v1494 = vunpack.c.h.b16 %v1128
    %v1495 = vunpack.c.l.b16 %v1129
    %v1496 = vunpack.c.h.b16 %v1129
    %v1497 = vunpack.c.l.b16 %v1130
    %v1498 = vunpack.c.h.b16 %v1130
    %v1499 = vunpack.c.l.b16 %v1131
    %v1500 = vunpack.c.h.b16 %v1131
    %v1501 = vunpack.c.l.b16 %v1132
    %v1502 = vunpack.c.h.b16 %v1132
    %v1503 = vunpack.c.l.b16 %v1133
    %v1504 = vunpack.c.h.b16 %v1133
    %v1505 = vunpack.c.l.b16 %v1134
    %v1506 = vunpack.c.h.b16 %v1134
    %v1507 = vunpack.c.l.b16 %v1135
    %v1508 = vunpack.c.h.b16 %v1135
    %v1509 = vunpack.c.l.b16 %v1136
    %v1510 = vunpack.c.h.b16 %v1136
    %v1511 = vunpack.c.l.b16 %v1137
    %v1512 = vunpack.c.h.b16 %v1137
    %v1513 = vunpack.c.l.b16 %v1138
    %v1514 = vunpack.c.h.b16 %v1138
    %v1515 = vunpack.c.l.b16 %v1139
    %v1516 = vunpack.c.h.b16 %v1139
    %v1517 = vunpack.c.l.b16 %v1140
    %v1518 = vunpack.c.h.b16 %v1140
    %v1519 = vunpack.c.l.b16 %v1141
    %v1520 = vunpack.c.h.b16 %v1141
    %v1521 = vunpack.c.l.b16 %v1142
    %v1522 = vunpack.c.h.b16 %v1142
    %v1523 = vunpack.c.l.b16 %v1143
    %v1524 = vunpack.c.h.b16 %v1143
    %v1525 = vunpack.c.l.b16 %v1144
    %v1526 = vunpack.c.h.b16 %v1144
    %v1527 = vunpack.c.l.b16 %v1145
    %v1528 = vunpack.c.h.b16 %v1145
    %v1529 = vunpack.c.l.b16 %v1146
    %v1530 = vunpack.c.h.b16 %v1146
    %v1531 = vpack.c.b16 %v1283, %v1275
    %v1532 = vpack.c.b16 %v1284, %v1276
    %v1533 = vpack.c.b16 %v1285, %v1277
    %v1534 = vpack.c.b16 %v1286, %v1278
    %v1535 = vpack.c.b16 %v1287, %v1279
    %v1536 = vpack.c.b16 %v1288, %v1280
    %v1537 = vpack.c.b16 %v1289, %v1281
    %v1538 = vpack.c.b16 %v1290, %v1282
    %v1539 = vpack.c.b16 %v1299, %v1291
    %v1540 = vpack.c.b16 %v1300, %v1292
    %v1541 = vpack.c.b16 %v1301, %v1293
    %v1542 = vpack.c.b16 %v1302, %v1294
    %v1543 = vpack.c.b16 %v1303, %v1295
    %v1544 = vpack.c.b16 %v1304, %v1296
    %v1545 = vpack.c.b16 %v1305, %v1297
    %v1546 = vpack.c.b16 %v1306, %v1298
    %v1547 = vpack.c.b16 %v1315, %v1307
    %v1548 = vpack.c.b16 %v1316, %v1308
    %v1549 = vpack.c.b16 %v1317, %v1309
    %v1550 = vpack.c.b16 %v1318, %v1310
    %v1551 = vpack.c.b16 %v1319, %v1311
    %v1552 = vpack.c.b16 %v1320, %v1312
    %v1553 = vpack.c.b16 %v1321, %v1313
    %v1554 = vpack.c.b16 %v1322, %v1314
    %v1555 = vpack.c.b16 %v1331, %v1323
    %v1556 = vpack.c.b16 %v1332, %v1324
    %v1557 = vpack.c.b16 %v1333, %v1325
    %v1558 = vpack.c.b16 %v1334, %v1326
    %v1559 = vpack.c.b16 %v1335, %v1327
    %v1560 = vpack.c.b16 %v1336, %v1328
    %v1561 = vpack.c.b16 %v1337, %v1329
    %v1562 = vpack.c.b16 %v1338, %v1330
    %v1563 = vpack.c.b16 %v1347, %v1339
    %v1564 = vpack.c.b16 %v1348, %v1340
    %v1565 = vpack.c.b16 %v1349, %v1341
    %v1566 = vpack.c.b16 %v1350, %v1342
    %v1567 = vpack.c.b16 %v1351, %v1343
    %v1568 = vpack.c.b16 %v1352, %v1344
    %v1569 = vpack.c.b16 %v1353, %v1345
    %v1570 = vpack.c.b16 %v1354, %v1346
    %v1571 = vpack.c.b16 %v1363, %v1355
    %v1572 = vpack.c.b16 %v1364, %v1356
    %v1573 = vpack.c.b16 %v1365, %v1357
    %v1574 = vpack.c.b16 %v1366, %v1358
    %v1575 = vpack.c.b16 %v1367, %v1359
    %v1576 = vpack.c.b16 %v1368, %v1360
    %v1577 = vpack.c.b16 %v1369, %v1361
    %v1578 = vpack.c.b16 %v1370, %v1362
    %v1579 = vpack.c.b16 %v1379, %v1371
    %v1580 = vpack.c.b16 %v1380, %v1372
    %v1581 = vpack.c.b16 %v1381, %v1373
    %v1582 = vpack.c.b16 %v1382, %v1374
    %v1583 = vpack.c.b16 %v1383, %v1375
    %v1584 = vpack.c.b16 %v1384, %v1376
    %v1585 = vpack.c.b16 %v1385, %v1377
    %v1586 = vpack.c.b16 %v1386, %v1378
    %v1587 = vpack.c.b16 %v1395, %v1387
    %v1588 = vpack.c.b16 %v1396, %v1388
    %v1589 = vpack.c.b16 %v1397, %v1389
    %v1590 = vpack.c.b16 %v1398, %v1390
    %v1591 = vpack.c.b16 %v1399, %v1391
    %v1592 = vpack.c.b16 %v1400, %v1392
    %v1593 = vpack.c.b16 %v1401, %v1393
    %v1594 = vpack.c.b16 %v1402, %v1394
    %v1595 = vpack.c.b16 %v1411, %v1403
    %v1596 = vpack.c.b16 %v1412, %v1404
    %v1597 = vpack.c.b16 %v1413, %v1405
    %v1598 = vpack.c.b16 %v1414, %v1406
    %v1599 = vpack.c.b16 %v1415, %v1407
    %v1600 = vpack.c.b16 %v1416, %v1408
    %v1601 = vpack.c.b16 %v1417, %v1409
    %v1602 = vpack.c.b16 %v1418, %v1410
    %v1603 = vpack.c.b16 %v1427, %v1419
    %v1604 = vpack.c.b16 %v1428, %v1420
    %v1605 = vpack.c.b16 %v1429, %v1421
    %v1606 = vpack.c.b16 %v1430, %v1422
    %v1607 = vpack.c.b16 %v1431, %v1423
    %v1608 = vpack.c.b16 %v1432, %v1424
    %v1609 = vpack.c.b16 %v1433, %v1425
    %v1610 = vpack.c.b16 %v1434, %v1426
    %v1611 = vpack.c.b16 %v1443, %v1435
    %v1612 = vpack.c.b16 %v1444, %v1436
    %v1613 = vpack.c.b16 %v1445, %v1437
    %v1614 = vpack.c.b16 %v1446, %v1438
    %v1615 = vpack.c.b16 %v1447, %v1439
    %v1616 = vpack.c.b16 %v1448, %v1440
    %v1617 = vpack.c.b16 %v1449, %v1441
    %v1618 = vpack.c.b16 %v1450, %v1442
    %v1619 = vpack.c.b16 %v1459, %v1451
    %v1620 = vpack.c.b16 %v1460, %v1452
    %v1621 = vpack.c.b16 %v1461, %v1453
    %v1622 = vpack.c.b16 %v1462, %v1454
    %v1623 = vpack.c.b16 %v1463, %v1455
    %v1624 = vpack.c.b16 %v1464, %v1456
    %v1625 = vpack.c.b16 %v1465, %v1457
    %v1626 = vpack.c.b16 %v1466, %v1458
    %v1627 = vpack.c.b16 %v1475, %v1467
    %v1628 = vpack.c.b16 %v1476, %v1468
    %v1629 = vpack.c.b16 %v1477, %v1469
    %v1630 = vpack.c.b16 %v1478, %v1470
    %v1631 = vpack.c.b16 %v1479, %v1471
    %v1632 = vpack.c.b16 %v1480, %v1472
    %v1633 = vpack.c.b16 %v1481, %v1473
    %v1634 = vpack.c.b16 %v1482, %v1474
    %v1635 = vpack.c.b16 %v1491, %v1483
    %v1636 = vpack.c.b16 %v1492, %v1484
    %v1637 = vpack.c.b16 %v1493, %v1485
    %v1638 = vpack.c.b16 %v1494, %v1486
    %v1639 = vpack.c.b16 %v1495, %v1487
    %v1640 = vpack.c.b16 %v1496, %v1488
    %v1641 = vpack.c.b16 %v1497, %v1489
    %v1642 = vpack.c.b16 %v1498, %v1490
    %v1643 = vpack.c.b16 %v1507, %v1499
    %v1644 = vpack.c.b16 %v1508, %v1500
    %v1645 = vpack.c.b16 %v1509, %v1501
    %v1646 = vpack.c.b16 %v1510, %v1502
    %v1647 = vpack.c.b16 %v1511, %v1503
    %v1648 = vpack.c.b16 %v1512, %v1504
    %v1649 = vpack.c.b16 %v1513, %v1505
    %v1650 = vpack.c.b16 %v1514, %v1506
    %v1651 = vpack.c.b16 %v1523, %v1515
    %v1652 = vpack.c.b16 %v1524, %v1516
    %v1653 = vpack.c.b16 %v1525, %v1517
    %v1654 = vpack.c.b16 %v1526, %v1518
    %v1655 = vpack.c.b16 %v1527, %v1519
    %v1656 = vpack.c.b16 %v1528, %v1520
    %v1657 = vpack.c.b16 %v1529, %v1521
    %v1658 = vpack.c.b16 %v1530, %v1522
    %1787 = vmatprep.subr.bf16.mxu0 %v1532
    %1788 = vmatpush1.bf16.msra.mxu0 %v1531
    %1789 = vmatprep.subr.bf16.mxu0 %v1540
    %1790 = vmatpush1.bf16.msra.mxu0 %v1539
    %1791 = vmatprep.subr.bf16.mxu0 %v1548
    %1792 = vmatpush1.bf16.msra.mxu0 %v1547
    %1793 = vmatprep.subr.bf16.mxu0 %v1556
    %1794 = vmatpush1.bf16.msra.mxu0 %v1555
    %1795 = vmatprep.subr.bf16.mxu0 %v1564
    %1796 = vmatpush1.bf16.msra.mxu0 %v1563
    %1797 = vmatprep.subr.bf16.mxu0 %v1572
    %1798 = vmatpush1.bf16.msra.mxu0 %v1571
    %1799 = vmatprep.subr.bf16.mxu0 %v1580
    %1800 = vmatpush1.bf16.msra.mxu0 %v1579
    %1801 = vmatprep.subr.bf16.mxu0 %v1588
    %1802 = vmatpush1.bf16.msra.mxu0 %v1587
    %1803 = vmatprep.subr.bf16.mxu0 %v1596
    %1804 = vmatpush1.bf16.msra.mxu0 %v1595
    %1805 = vmatprep.subr.bf16.mxu0 %v1604
    %1806 = vmatpush1.bf16.msra.mxu0 %v1603
    %1807 = vmatprep.subr.bf16.mxu0 %v1612
    %1808 = vmatpush1.bf16.msra.mxu0 %v1611
    %1809 = vmatprep.subr.bf16.mxu0 %v1620
    %1810 = vmatpush1.bf16.msra.mxu0 %v1619
    %1811 = vmatprep.subr.bf16.mxu0 %v1628
    %1812 = vmatpush1.bf16.msra.mxu0 %v1627
    %1813 = vmatprep.subr.bf16.mxu0 %v1636
    %1814 = vmatpush1.bf16.msra.mxu0 %v1635
    %1815 = vmatprep.subr.bf16.mxu0 %v1644
    %1816 = vmatpush1.bf16.msra.mxu0 %v1643
    %1817 = vmatprep.subr.bf16.mxu0 %v1652
    %1818 = vmatpush1.bf16.msra.mxu0 %v1651
    %1819 = vmatprep.mubr.bf16.mxu0 0
    %1820 = vmatmul.mubr.bf16.gmra.mrb[0].mxu0 0
    %v1821 = vpop.f32.mrb[0].mxu0
    %v1822 = vadd.f32 0.0, %v1821
    %v1823 = vpop.f32.mrb[0].mxu0
    %v1824 = vadd.f32 0.0, %v1823
    %v1825 = vpop.f32.mrb[0].mxu0
    %v1826 = vpop.f32.mrb[0].mxu0
    %1827 = vdwg.mxu0
    %1828 = vmatprep.subr.bf16.mxu0 %v1534
    %1829 = vmatpush1.bf16.msra.mxu0 %v1533
    %1830 = vmatprep.subr.bf16.mxu0 %v1542
    %1831 = vmatpush1.bf16.msra.mxu0 %v1541
    %1832 = vmatprep.subr.bf16.mxu0 %v1550
    %1833 = vmatpush1.bf16.msra.mxu0 %v1549
    %1834 = vmatprep.subr.bf16.mxu0 %v1558
    %1835 = vmatpush1.bf16.msra.mxu0 %v1557
    %1836 = vmatprep.subr.bf16.mxu0 %v1566
    %1837 = vmatpush1.bf16.msra.mxu0 %v1565
    %1838 = vmatprep.subr.bf16.mxu0 %v1574
    %1839 = vmatpush1.bf16.msra.mxu0 %v1573
    %1840 = vmatprep.subr.bf16.mxu0 %v1582
    %1841 = vmatpush1.bf16.msra.mxu0 %v1581
    %1842 = vmatprep.subr.bf16.mxu0 %v1590
    %1843 = vmatpush1.bf16.msra.mxu0 %v1589
    %1844 = vmatprep.subr.bf16.mxu0 %v1598
    %1845 = vmatpush1.bf16.msra.mxu0 %v1597
    %1846 = vmatprep.subr.bf16.mxu0 %v1606
    %1847 = vmatpush1.bf16.msra.mxu0 %v1605
    %1848 = vmatprep.subr.bf16.mxu0 %v1614
    %1849 = vmatpush1.bf16.msra.mxu0 %v1613
    %1850 = vmatprep.subr.bf16.mxu0 %v1622
    %1851 = vmatpush1.bf16.msra.mxu0 %v1621
    %1852 = vmatprep.subr.bf16.mxu0 %v1630
    %1853 = vmatpush1.bf16.msra.mxu0 %v1629
    %1854 = vmatprep.subr.bf16.mxu0 %v1638
    %1855 = vmatpush1.bf16.msra.mxu0 %v1637
    %1856 = vmatprep.subr.bf16.mxu0 %v1646
    %1857 = vmatpush1.bf16.msra.mxu0 %v1645
    %1858 = vmatprep.subr.bf16.mxu0 %v1654
    %1859 = vmatpush1.bf16.msra.mxu0 %v1653
    %1860 = vmatprep.mubr.bf16.mxu0 0
    %1861 = vmatmul.mubr.bf16.gmra.mrb[0].mxu0 0
    %v1862 = vpop.f32.mrb[0].mxu0
    %v1863 = vadd.f32 0.0, %v1862
    %v1864 = vpop.f32.mrb[0].mxu0
    %v1865 = vadd.f32 0.0, %v1864
    %v1866 = vpop.f32.mrb[0].mxu0
    %v1867 = vpop.f32.mrb[0].mxu0
    %1868 = vdwg.mxu0
    %1869 = vmatprep.subr.bf16.mxu0 %v1536
    %1870 = vmatpush1.bf16.msra.mxu0 %v1535
    %1871 = vmatprep.subr.bf16.mxu0 %v1544
    %1872 = vmatpush1.bf16.msra.mxu0 %v1543
    %1873 = vmatprep.subr.bf16.mxu0 %v1552
    %1874 = vmatpush1.bf16.msra.mxu0 %v1551
    %1875 = vmatprep.subr.bf16.mxu0 %v1560
    %1876 = vmatpush1.bf16.msra.mxu0 %v1559
    %1877 = vmatprep.subr.bf16.mxu0 %v1568
    %1878 = vmatpush1.bf16.msra.mxu0 %v1567
    %1879 = vmatprep.subr.bf16.mxu0 %v1576
    %1880 = vmatpush1.bf16.msra.mxu0 %v1575
    %1881 = vmatprep.subr.bf16.mxu0 %v1584
    %1882 = vmatpush1.bf16.msra.mxu0 %v1583
    %1883 = vmatprep.subr.bf16.mxu0 %v1592
    %1884 = vmatpush1.bf16.msra.mxu0 %v1591
    %1885 = vmatprep.subr.bf16.mxu0 %v1600
    %1886 = vmatpush1.bf16.msra.mxu0 %v1599
    %1887 = vmatprep.subr.bf16.mxu0 %v1608
    %1888 = vmatpush1.bf16.msra.mxu0 %v1607
    %1889 = vmatprep.subr.bf16.mxu0 %v1616
    %1890 = vmatpush1.bf16.msra.mxu0 %v1615
    %1891 = vmatprep.subr.bf16.mxu0 %v1624
    %1892 = vmatpush1.bf16.msra.mxu0 %v1623
    %1893 = vmatprep.subr.bf16.mxu0 %v1632
    %1894 = vmatpush1.bf16.msra.mxu0 %v1631
    %1895 = vmatprep.subr.bf16.mxu0 %v1640
    %1896 = vmatpush1.bf16.msra.mxu0 %v1639
    %1897 = vmatprep.subr.bf16.mxu0 %v1648
    %1898 = vmatpush1.bf16.msra.mxu0 %v1647
    %1899 = vmatprep.subr.bf16.mxu0 %v1656
    %1900 = vmatpush1.bf16.msra.mxu0 %v1655
    %1901 = vmatprep.mubr.bf16.mxu0 0
    %1902 = vmatmul.mubr.bf16.gmra.mrb[0].mxu0 0
    %v1903 = vpop.f32.mrb[0].mxu0
    %v1904 = vadd.f32 0.0, %v1903
    %v1905 = vpop.f32.mrb[0].mxu0
    %v1906 = vadd.f32 0.0, %v1905
    %v1907 = vpop.f32.mrb[0].mxu0
    %v1908 = vpop.f32.mrb[0].mxu0
    %1909 = vdwg.mxu0
    %1910 = vmatprep.subr.bf16.mxu0 %v1538
    %1911 = vmatpush1.bf16.msra.mxu0 %v1537
    %1912 = vmatprep.subr.bf16.mxu0 %v1546
    %1913 = vmatpush1.bf16.msra.mxu0 %v1545
    %1914 = vmatprep.subr.bf16.mxu0 %v1554
    %1915 = vmatpush1.bf16.msra.mxu0 %v1553
    %1916 = vmatprep.subr.bf16.mxu0 %v1562
    %1917 = vmatpush1.bf16.msra.mxu0 %v1561
    %1918 = vmatprep.subr.bf16.mxu0 %v1570
    %1919 = vmatpush1.bf16.msra.mxu0 %v1569
    %1920 = vmatprep.subr.bf16.mxu0 %v1578
    %1921 = vmatpush1.bf16.msra.mxu0 %v1577
    %1922 = vmatprep.subr.bf16.mxu0 %v1586
    %1923 = vmatpush1.bf16.msra.mxu0 %v1585
    %1924 = vmatprep.subr.bf16.mxu0 %v1594
    %1925 = vmatpush1.bf16.msra.mxu0 %v1593
    %1926 = vmatprep.subr.bf16.mxu0 %v1602
    %1927 = vmatpush1.bf16.msra.mxu0 %v1601
    %1928 = vmatprep.subr.bf16.mxu0 %v1610
    %1929 = vmatpush1.bf16.msra.mxu0 %v1609
    %1930 = vmatprep.subr.bf16.mxu0 %v1618
    %1931 = vmatpush1.bf16.msra.mxu0 %v1617
    %1932 = vmatprep.subr.bf16.mxu0 %v1626
    %1933 = vmatpush1.bf16.msra.mxu0 %v1625
    %1934 = vmatprep.subr.bf16.mxu0 %v1634
    %1935 = vmatpush1.bf16.msra.mxu0 %v1633
    %1936 = vmatprep.subr.bf16.mxu0 %v1642
    %1937 = vmatpush1.bf16.msra.mxu0 %v1641
    %1938 = vmatprep.subr.bf16.mxu0 %v1650
    %1939 = vmatpush1.bf16.msra.mxu0 %v1649
    %1940 = vmatprep.subr.bf16.mxu0 %v1658
    %1941 = vmatpush1.bf16.msra.mxu0 %v1657
    %1942 = vmatprep.mubr.bf16.mxu0 0
    %1943 = vmatmul.mubr.bf16.gmra.mrb[0].mxu0 0
    %v1944 = vpop.f32.mrb[0].mxu0
    %v1945 = vadd.f32 0.0, %v1944
    %v1946 = vpop.f32.mrb[0].mxu0
    %v1947 = vadd.f32 0.0, %v1946
    %v1948 = vpop.f32.mrb[0].mxu0
    %v1949 = vpop.f32.mrb[0].mxu0
    %1950 = vdwg.mxu0
    %v1951 = vadd.f32 %v1011, %v1822
    %v1952 = vadd.f32 %v1012, %v1824
    %v1953 = vadd.f32 %v1013, %v1863
    %v1954 = vadd.f32 %v1014, %v1865
    %v1955 = vadd.f32 %v1015, %v1904
    %v1956 = vadd.f32 %v1016, %v1906
    %v1957 = vadd.f32 %v1017, %v1945
    %v1958 = vadd.f32 %v1018, %v1947
    %v1959 = vxor.u32 %v1951, 2147483648
    %v1960 = vxor.u32 %v1952, 2147483648
    %v1961 = vmul.f32 %v1959, 1.442695
    %v1962 = vpow.pop %v1961
    %v1963 = vmul.f32 %v1960, 1.442695
    %v1964 = vpow.pop %v1963
    %v1965 = vadd.f32 %v1962, 1.0
    %v1966 = vadd.f32 %v1964, 1.0
    %v1967 = vrcp.pop %v1965
    %v1968 = vmul.f32 1.0, %v1967
    %v1969 = vrcp.pop %v1966
    %v1970 = vmul.f32 1.0, %v1969
    %v1971 = vxor.u32 %v1953, 2147483648
    %v1972 = vxor.u32 %v1954, 2147483648
    %v1973 = vmul.f32 %v1971, 1.442695
    %v1974 = vpow.pop %v1973
    %v1975 = vmul.f32 %v1972, 1.442695
    %v1976 = vpow.pop %v1975
    %v1977 = vadd.f32 %v1974, 1.0
    %v1978 = vadd.f32 %v1976, 1.0
    %v1979 = vrcp.pop %v1977
    %v1980 = vmul.f32 1.0, %v1979
    %v1981 = vrcp.pop %v1978
    %v1982 = vmul.f32 1.0, %v1981
    %v1983 = vtanh.pop %v1955
    %v1984 = vtanh.pop %v1956
    %v1985 = vxor.u32 %v1957, 2147483648
    %v1986 = vxor.u32 %v1958, 2147483648
    %v1987 = vmul.f32 %v1985, 1.442695
    %v1988 = vpow.pop %v1987
    %v1989 = vmul.f32 %v1986, 1.442695
    %v1990 = vpow.pop %v1989
    %v1991 = vadd.f32 %v1988, 1.0
    %v1992 = vadd.f32 %v1990, 1.0
    %v1993 = vrcp.pop %v1991
    %v1994 = vmul.f32 1.0, %v1993
    %v1995 = vrcp.pop %v1992
    %v1996 = vmul.f32 1.0, %v1995
    %v1997 = vmul.f32 %v1980, 0.0
    %v1998 = vmul.f32 %v1982, 0.0
    %v1999 = vmul.f32 %v1968, %v1983
    %v2000 = vmul.f32 %v1970, %v1984
    %v2001 = vadd.f32 %v1997, %v1999
    %v2002 = vadd.f32 %v1998, %v2000
    %v2003 = vtanh.pop %v2001
    %v2004 = vtanh.pop %v2002
    %v2005 = vmul.f32 %v1994, %v2003
    %v2006 = vmul.f32 %v1996, %v2004
    %v2007 = vadd.f32 %v2005, 0.0
    %v2008 = vadd.f32 %v2006, 0.0
    %v2009 = vld [vmem:[#allocation2] sm:$0xc]
    %v2010 = vld [vmem:[#allocation2 + $0x8] sm:$0xc]
    %v2011 = vld [vmem:[#allocation2 + $0x10] sm:$0xc]
    %v2012 = vld [vmem:[#allocation2 + $0x18] sm:$0xc]
    %v2013 = vld [vmem:[#allocation2 + $0x20] sm:$0xc]
    %v2014 = vld [vmem:[#allocation2 + $0x28] sm:$0xc]
    %v2015 = vld [vmem:[#allocation2 + $0x30] sm:$0xc]
    %v2016 = vld [vmem:[#allocation2 + $0x38] sm:$0xc]
    %v2017 = vpack.c.bf16 %v2005, %v2005
    %v2018 = vpack.c.bf16 %v2006, %v2006
    %2019 = vmatprep.subr.bf16.mxu0 %v1532
    %2020 = vmatpush1.bf16.msra.mxu0 %v1531
    %2021 = vmatprep.subr.bf16.mxu0 %v1540
    %2022 = vmatpush1.bf16.msra.mxu0 %v1539
    %2023 = vmatprep.subr.bf16.mxu0 %v1548
    %2024 = vmatpush1.bf16.msra.mxu0 %v1547
    %2025 = vmatprep.subr.bf16.mxu0 %v1556
    %2026 = vmatpush1.bf16.msra.mxu0 %v1555
    %2027 = vmatprep.subr.bf16.mxu0 %v1564
    %2028 = vmatpush1.bf16.msra.mxu0 %v1563
    %2029 = vmatprep.subr.bf16.mxu0 %v1572
    %2030 = vmatpush1.bf16.msra.mxu0 %v1571
    %2031 = vmatprep.subr.bf16.mxu0 %v1580
    %2032 = vmatpush1.bf16.msra.mxu0 %v1579
    %2033 = vmatprep.subr.bf16.mxu0 %v1588
    %2034 = vmatpush1.bf16.msra.mxu0 %v1587
    %2035 = vmatprep.subr.bf16.mxu0 %v1596
    %2036 = vmatpush1.bf16.msra.mxu0 %v1595
    %2037 = vmatprep.subr.bf16.mxu0 %v1604
    %2038 = vmatpush1.bf16.msra.mxu0 %v1603
    %2039 = vmatprep.subr.bf16.mxu0 %v1612
    %2040 = vmatpush1.bf16.msra.mxu0 %v1611
    %2041 = vmatprep.subr.bf16.mxu0 %v1620
    %2042 = vmatpush1.bf16.msra.mxu0 %v1619
    %2043 = vmatprep.subr.bf16.mxu0 %v1628
    %2044 = vmatpush1.bf16.msra.mxu0 %v1627
    %2045 = vmatprep.subr.bf16.mxu0 %v1636
    %2046 = vmatpush1.bf16.msra.mxu0 %v1635
    %2047 = vmatprep.subr.bf16.mxu0 %v1644
    %2048 = vmatpush1.bf16.msra.mxu0 %v1643
    %2049 = vmatprep.subr.bf16.mxu0 %v1652
    %2050 = vmatpush1.bf16.msra.mxu0 %v1651
    %2051 = vmatprep.mubr.bf16.mxu0 %v2018
    %2052 = vmatmul.mubr.bf16.gmra.mrb[0].mxu0 %v2017
    %v2053 = vpop.f32.mrb[0].mxu0
    %v2054 = vadd.f32 0.0, %v2053
    %v2055 = vpop.f32.mrb[0].mxu0
    %v2056 = vadd.f32 0.0, %v2055
    %v2057 = vpop.f32.mrb[0].mxu0
    %v2058 = vpop.f32.mrb[0].mxu0
    %2059 = vdwg.mxu0
    %2060 = vmatprep.subr.bf16.mxu0 %v1534
    %2061 = vmatpush1.bf16.msra.mxu0 %v1533
    %2062 = vmatprep.subr.bf16.mxu0 %v1542
    %2063 = vmatpush1.bf16.msra.mxu0 %v1541
    %2064 = vmatprep.subr.bf16.mxu0 %v1550
    %2065 = vmatpush1.bf16.msra.mxu0 %v1549
    %2066 = vmatprep.subr.bf16.mxu0 %v1558
    %2067 = vmatpush1.bf16.msra.mxu0 %v1557
    %2068 = vmatprep.subr.bf16.mxu0 %v1566
    %2069 = vmatpush1.bf16.msra.mxu0 %v1565
    %2070 = vmatprep.subr.bf16.mxu0 %v1574
    %2071 = vmatpush1.bf16.msra.mxu0 %v1573
    %2072 = vmatprep.subr.bf16.mxu0 %v1582
    %2073 = vmatpush1.bf16.msra.mxu0 %v1581
    %2074 = vmatprep.subr.bf16.mxu0 %v1590
    %2075 = vmatpush1.bf16.msra.mxu0 %v1589
    %2076 = vmatprep.subr.bf16.mxu0 %v1598
    %2077 = vmatpush1.bf16.msra.mxu0 %v1597
    %2078 = vmatprep.subr.bf16.mxu0 %v1606
    %2079 = vmatpush1.bf16.msra.mxu0 %v1605
    %2080 = vmatprep.subr.bf16.mxu0 %v1614
    %2081 = vmatpush1.bf16.msra.mxu0 %v1613
    %2082 = vmatprep.subr.bf16.mxu0 %v1622
    %2083 = vmatpush1.bf16.msra.mxu0 %v1621
    %2084 = vmatprep.subr.bf16.mxu0 %v1630
    %2085 = vmatpush1.bf16.msra.mxu0 %v1629
    %2086 = vmatprep.subr.bf16.mxu0 %v1638
    %2087 = vmatpush1.bf16.msra.mxu0 %v1637
    %2088 = vmatprep.subr.bf16.mxu0 %v1646
    %2089 = vmatpush1.bf16.msra.mxu0 %v1645
    %2090 = vmatprep.subr.bf16.mxu0 %v1654
    %2091 = vmatpush1.bf16.msra.mxu0 %v1653
    %2092 = vmatprep.mubr.bf16.mxu0 %v2018
    %2093 = vmatmul.mubr.bf16.gmra.mrb[0].mxu0 %v2017
    %v2094 = vpop.f32.mrb[0].mxu0
    %v2095 = vadd.f32 0.0, %v2094
    %v2096 = vpop.f32.mrb[0].mxu0
    %v2097 = vadd.f32 0.0, %v2096
    %v2098 = vpop.f32.mrb[0].mxu0
    %v2099 = vpop.f32.mrb[0].mxu0
    %2100 = vdwg.mxu0
    %2101 = vmatprep.subr.bf16.mxu0 %v1536
    %2102 = vmatpush1.bf16.msra.mxu0 %v1535
    %2103 = vmatprep.subr.bf16.mxu0 %v1544
    %2104 = vmatpush1.bf16.msra.mxu0 %v1543
    %2105 = vmatprep.subr.bf16.mxu0 %v1552
    %2106 = vmatpush1.bf16.msra.mxu0 %v1551
    %2107 = vmatprep.subr.bf16.mxu0 %v1560
    %2108 = vmatpush1.bf16.msra.mxu0 %v1559
    %2109 = vmatprep.subr.bf16.mxu0 %v1568
    %2110 = vmatpush1.bf16.msra.mxu0 %v1567
    %2111 = vmatprep.subr.bf16.mxu0 %v1576
    %2112 = vmatpush1.bf16.msra.mxu0 %v1575
    %2113 = vmatprep.subr.bf16.mxu0 %v1584
    %2114 = vmatpush1.bf16.msra.mxu0 %v1583
    %2115 = vmatprep.subr.bf16.mxu0 %v1592
    %2116 = vmatpush1.bf16.msra.mxu0 %v1591
    %2117 = vmatprep.subr.bf16.mxu0 %v1600
    %2118 = vmatpush1.bf16.msra.mxu0 %v1599
    %2119 = vmatprep.subr.bf16.mxu0 %v1608
    %2120 = vmatpush1.bf16.msra.mxu0 %v1607
    %2121 = vmatprep.subr.bf16.mxu0 %v1616
    %2122 = vmatpush1.bf16.msra.mxu0 %v1615
    %2123 = vmatprep.subr.bf16.mxu0 %v1624
    %2124 = vmatpush1.bf16.msra.mxu0 %v1623
    %2125 = vmatprep.subr.bf16.mxu0 %v1632
    %2126 = vmatpush1.bf16.msra.mxu0 %v1631
    %2127 = vmatprep.subr.bf16.mxu0 %v1640
    %2128 = vmatpush1.bf16.msra.mxu0 %v1639
    %2129 = vmatprep.subr.bf16.mxu0 %v1648
    %2130 = vmatpush1.bf16.msra.mxu0 %v1647
    %2131 = vmatprep.subr.bf16.mxu0 %v1656
    %2132 = vmatpush1.bf16.msra.mxu0 %v1655
    %2133 = vmatprep.mubr.bf16.mxu0 %v2018
    %2134 = vmatmul.mubr.bf16.gmra.mrb[0].mxu0 %v2017
    %v2135 = vpop.f32.mrb[0].mxu0
    %v2136 = vadd.f32 0.0, %v2135
    %v2137 = vpop.f32.mrb[0].mxu0
    %v2138 = vadd.f32 0.0, %v2137
    %v2139 = vpop.f32.mrb[0].mxu0
    %v2140 = vpop.f32.mrb[0].mxu0
    %2141 = vdwg.mxu0
    %2142 = vmatprep.subr.bf16.mxu0 %v1538
    %2143 = vmatpush1.bf16.msra.mxu0 %v1537
    %2144 = vmatprep.subr.bf16.mxu0 %v1546
    %2145 = vmatpush1.bf16.msra.mxu0 %v1545
    %2146 = vmatprep.subr.bf16.mxu0 %v1554
    %2147 = vmatpush1.bf16.msra.mxu0 %v1553
    %2148 = vmatprep.subr.bf16.mxu0 %v1562
    %2149 = vmatpush1.bf16.msra.mxu0 %v1561
    %2150 = vmatprep.subr.bf16.mxu0 %v1570
    %2151 = vmatpush1.bf16.msra.mxu0 %v1569
    %2152 = vmatprep.subr.bf16.mxu0 %v1578
    %2153 = vmatpush1.bf16.msra.mxu0 %v1577
    %2154 = vmatprep.subr.bf16.mxu0 %v1586
    %2155 = vmatpush1.bf16.msra.mxu0 %v1585
    %2156 = vmatprep.subr.bf16.mxu0 %v1594
    %2157 = vmatpush1.bf16.msra.mxu0 %v1593
    %2158 = vmatprep.subr.bf16.mxu0 %v1602
    %2159 = vmatpush1.bf16.msra.mxu0 %v1601
    %2160 = vmatprep.subr.bf16.mxu0 %v1610
    %2161 = vmatpush1.bf16.msra.mxu0 %v1609
    %2162 = vmatprep.subr.bf16.mxu0 %v1618
    %2163 = vmatpush1.bf16.msra.mxu0 %v1617
    %2164 = vmatprep.subr.bf16.mxu0 %v1626
    %2165 = vmatpush1.bf16.msra.mxu0 %v1625
    %2166 = vmatprep.subr.bf16.mxu0 %v1634
    %2167 = vmatpush1.bf16.msra.mxu0 %v1633
    %2168 = vmatprep.subr.bf16.mxu0 %v1642
    %2169 = vmatpush1.bf16.msra.mxu0 %v1641
    %2170 = vmatprep.subr.bf16.mxu0 %v1650
    %2171 = vmatpush1.bf16.msra.mxu0 %v1649
    %2172 = vmatprep.subr.bf16.mxu0 %v1658
    %2173 = vmatpush1.bf16.msra.mxu0 %v1657
    %2174 = vmatprep.mubr.bf16.mxu0 %v2018
    %2175 = vmatmul.mubr.bf16.gmra.mrb[0].mxu0 %v2017
    %v2176 = vpop.f32.mrb[0].mxu0
    %v2177 = vadd.f32 0.0, %v2176
    %v2178 = vpop.f32.mrb[0].mxu0
    %v2179 = vadd.f32 0.0, %v2178
    %v2180 = vpop.f32.mrb[0].mxu0
    %v2181 = vpop.f32.mrb[0].mxu0
    %2182 = vdwg.mxu0
    %v2191 = vrot.slane %v2054, 6
    %v2192 = vrot.slane %v2056, 6
    %v2193 = vrot.slane %v2095, 6
    %v2194 = vrot.slane %v2097, 6
    %v2195 = vrot.slane %v2136, 6
    %v2196 = vrot.slane %v2138, 6
    %v2197 = vrot.slane %v2177, 6
    %v2198 = vrot.slane %v2179, 6
    %v2207 = vadd.f32 %v2009, %v2191
    %v2208 = vadd.f32 %v2010, %v2192
    %v2209 = vadd.f32 %v2011, %v2193
    %v2210 = vadd.f32 %v2012, %v2194
    %v2211 = vadd.f32 %v2013, %v2195
    %v2212 = vadd.f32 %v2014, %v2196
    %v2213 = vadd.f32 %v2015, %v2197
    %v2214 = vadd.f32 %v2016, %v2198
    %v2215 = vxor.u32 %v2207, 2147483648
    %v2216 = vxor.u32 %v2208, 2147483648
    %v2217 = vmul.f32 %v2215, 1.442695
    %v2218 = vpow.pop %v2217
    %v2219 = vmul.f32 %v2216, 1.442695
    %v2220 = vpow.pop %v2219
    %v2221 = vadd.f32 %v2218, 1.0
    %v2222 = vadd.f32 %v2220, 1.0
    %v2223 = vrcp.pop %v2221
    %v2224 = vmul.f32 1.0, %v2223
    %v2225 = vrcp.pop %v2222
    %v2226 = vmul.f32 1.0, %v2225
    %v2227 = vxor.u32 %v2209, 2147483648
    %v2228 = vxor.u32 %v2210, 2147483648
    %v2229 = vmul.f32 %v2227, 1.442695
    %v2230 = vpow.pop %v2229
    %v2231 = vmul.f32 %v2228, 1.442695
    %v2232 = vpow.pop %v2231
    %v2233 = vadd.f32 %v2230, 1.0
    %v2234 = vadd.f32 %v2232, 1.0
    %v2235 = vrcp.pop %v2233
    %v2236 = vmul.f32 1.0, %v2235
    %v2237 = vrcp.pop %v2234
    %v2238 = vmul.f32 1.0, %v2237
    %v2239 = vtanh.pop %v2211
    %v2240 = vtanh.pop %v2212
    %v2241 = vxor.u32 %v2213, 2147483648
    %v2242 = vxor.u32 %v2214, 2147483648
    %v2243 = vmul.f32 %v2241, 1.442695
    %v2244 = vpow.pop %v2243
    %v2245 = vmul.f32 %v2242, 1.442695
    %v2246 = vpow.pop %v2245
    %v2247 = vadd.f32 %v2244, 1.0
    %v2248 = vadd.f32 %v2246, 1.0
    %v2249 = vrcp.pop %v2247
    %v2250 = vmul.f32 1.0, %v2249
    %v2251 = vrcp.pop %v2248
    %v2252 = vmul.f32 1.0, %v2251
    %v2255 = vrot.slane %v2001, 6
    %v2256 = vrot.slane %v2002, 6
    %v2259 = vmul.f32 %v2236, %v2255
    %v2260 = vmul.f32 %v2238, %v2256
    %v2261 = vmul.f32 %v2224, %v2239
    %v2262 = vmul.f32 %v2226, %v2240
    %v2263 = vadd.f32 %v2259, %v2261
    %v2264 = vadd.f32 %v2260, %v2262
    %v2265 = vtanh.pop %v2263
    %v2266 = vtanh.pop %v2264
    %v2267 = vmul.f32 %v2250, %v2265
    %v2268 = vmul.f32 %v2252, %v2266
    %v2271 = vrot.slane %v2267, 2
    %v2272 = vrot.slane %v2268, 2
    %v2275 = vadd.f32 %v2007, %v2271
    %v2276 = vadd.f32 %v2008, %v2272
    %v2277 = vld [vmem:[#allocation2] sm:$0x30]
    %v2278 = vld [vmem:[#allocation2 + $0x8] sm:$0x30]
    %v2279 = vld [vmem:[#allocation2 + $0x10] sm:$0x30]
    %v2280 = vld [vmem:[#allocation2 + $0x18] sm:$0x30]
    %v2281 = vld [vmem:[#allocation2 + $0x20] sm:$0x30]
    %v2282 = vld [vmem:[#allocation2 + $0x28] sm:$0x30]
    %v2283 = vld [vmem:[#allocation2 + $0x30] sm:$0x30]
    %v2284 = vld [vmem:[#allocation2 + $0x38] sm:$0x30]
    %v2285 = vpack.c.bf16 %v2267, %v2267
    %v2286 = vpack.c.bf16 %v2268, %v2268
    %v2289 = vrot.slane %v2285, 1
    %v2290 = vrot.slane %v2286, 1
    %2293 = vmatprep.subr.bf16.mxu0 %v1532
    %2294 = vmatpush1.bf16.msra.mxu0 %v1531
    %2295 = vmatprep.subr.bf16.mxu0 %v1540
    %2296 = vmatpush1.bf16.msra.mxu0 %v1539
    %2297 = vmatprep.subr.bf16.mxu0 %v1548
    %2298 = vmatpush1.bf16.msra.mxu0 %v1547
    %2299 = vmatprep.subr.bf16.mxu0 %v1556
    %2300 = vmatpush1.bf16.msra.mxu0 %v1555
    %2301 = vmatprep.subr.bf16.mxu0 %v1564
    %2302 = vmatpush1.bf16.msra.mxu0 %v1563
    %2303 = vmatprep.subr.bf16.mxu0 %v1572
    %2304 = vmatpush1.bf16.msra.mxu0 %v1571
    %2305 = vmatprep.subr.bf16.mxu0 %v1580
    %2306 = vmatpush1.bf16.msra.mxu0 %v1579
    %2307 = vmatprep.subr.bf16.mxu0 %v1588
    %2308 = vmatpush1.bf16.msra.mxu0 %v1587
    %2309 = vmatprep.subr.bf16.mxu0 %v1596
    %2310 = vmatpush1.bf16.msra.mxu0 %v1595
    %2311 = vmatprep.subr.bf16.mxu0 %v1604
    %2312 = vmatpush1.bf16.msra.mxu0 %v1603
    %2313 = vmatprep.subr.bf16.mxu0 %v1612
    %2314 = vmatpush1.bf16.msra.mxu0 %v1611
    %2315 = vmatprep.subr.bf16.mxu0 %v1620
    %2316 = vmatpush1.bf16.msra.mxu0 %v1619
    %2317 = vmatprep.subr.bf16.mxu0 %v1628
    %2318 = vmatpush1.bf16.msra.mxu0 %v1627
    %2319 = vmatprep.subr.bf16.mxu0 %v1636
    %2320 = vmatpush1.bf16.msra.mxu0 %v1635
    %2321 = vmatprep.subr.bf16.mxu0 %v1644
    %2322 = vmatpush1.bf16.msra.mxu0 %v1643
    %2323 = vmatprep.subr.bf16.mxu0 %v1652
    %2324 = vmatpush1.bf16.msra.mxu0 %v1651
    %2325 = vmatprep.mubr.bf16.mxu0 %v2290
    %2326 = vmatmul.mubr.bf16.gmra.mrb[0].mxu0 %v2289
    %v2327 = vpop.f32.mrb[0].mxu0
    %v2328 = vadd.f32 0.0, %v2327
    %v2329 = vpop.f32.mrb[0].mxu0
    %v2330 = vadd.f32 0.0, %v2329
    %v2331 = vpop.f32.mrb[0].mxu0
    %v2332 = vpop.f32.mrb[0].mxu0
    %2333 = vdwg.mxu0
    %2334 = vmatprep.subr.bf16.mxu0 %v1534
    %2335 = vmatpush1.bf16.msra.mxu0 %v1533
    %2336 = vmatprep.subr.bf16.mxu0 %v1542
    %2337 = vmatpush1.bf16.msra.mxu0 %v1541
    %2338 = vmatprep.subr.bf16.mxu0 %v1550
    %2339 = vmatpush1.bf16.msra.mxu0 %v1549
    %2340 = vmatprep.subr.bf16.mxu0 %v1558
    %2341 = vmatpush1.bf16.msra.mxu0 %v1557
    %2342 = vmatprep.subr.bf16.mxu0 %v1566
    %2343 = vmatpush1.bf16.msra.mxu0 %v1565
    %2344 = vmatprep.subr.bf16.mxu0 %v1574
    %2345 = vmatpush1.bf16.msra.mxu0 %v1573
    %2346 = vmatprep.subr.bf16.mxu0 %v1582
    %2347 = vmatpush1.bf16.msra.mxu0 %v1581
    %2348 = vmatprep.subr.bf16.mxu0 %v1590
    %2349 = vmatpush1.bf16.msra.mxu0 %v1589
    %2350 = vmatprep.subr.bf16.mxu0 %v1598
    %2351 = vmatpush1.bf16.msra.mxu0 %v1597
    %2352 = vmatprep.subr.bf16.mxu0 %v1606
    %2353 = vmatpush1.bf16.msra.mxu0 %v1605
    %2354 = vmatprep.subr.bf16.mxu0 %v1614
    %2355 = vmatpush1.bf16.msra.mxu0 %v1613
    %2356 = vmatprep.subr.bf16.mxu0 %v1622
    %2357 = vmatpush1.bf16.msra.mxu0 %v1621
    %2358 = vmatprep.subr.bf16.mxu0 %v1630
    %2359 = vmatpush1.bf16.msra.mxu0 %v1629
    %2360 = vmatprep.subr.bf16.mxu0 %v1638
    %2361 = vmatpush1.bf16.msra.mxu0 %v1637
    %2362 = vmatprep.subr.bf16.mxu0 %v1646
    %2363 = vmatpush1.bf16.msra.mxu0 %v1645
    %2364 = vmatprep.subr.bf16.mxu0 %v1654
    %2365 = vmatpush1.bf16.msra.mxu0 %v1653
    %2366 = vmatprep.mubr.bf16.mxu0 %v2290
    %2367 = vmatmul.mubr.bf16.gmra.mrb[0].mxu0 %v2289
    %v2368 = vpop.f32.mrb[0].mxu0
    %v2369 = vadd.f32 0.0, %v2368
    %v2370 = vpop.f32.mrb[0].mxu0
    %v2371 = vadd.f32 0.0, %v2370
    %v2372 = vpop.f32.mrb[0].mxu0
    %v2373 = vpop.f32.mrb[0].mxu0
    %2374 = vdwg.mxu0
    %2375 = vmatprep.subr.bf16.mxu0 %v1536
    %2376 = vmatpush1.bf16.msra.mxu0 %v1535
    %2377 = vmatprep.subr.bf16.mxu0 %v1544
    %2378 = vmatpush1.bf16.msra.mxu0 %v1543
    %2379 = vmatprep.subr.bf16.mxu0 %v1552
    %2380 = vmatpush1.bf16.msra.mxu0 %v1551
    %2381 = vmatprep.subr.bf16.mxu0 %v1560
    %2382 = vmatpush1.bf16.msra.mxu0 %v1559
    %2383 = vmatprep.subr.bf16.mxu0 %v1568
    %2384 = vmatpush1.bf16.msra.mxu0 %v1567
    %2385 = vmatprep.subr.bf16.mxu0 %v1576
    %2386 = vmatpush1.bf16.msra.mxu0 %v1575
    %2387 = vmatprep.subr.bf16.mxu0 %v1584
    %2388 = vmatpush1.bf16.msra.mxu0 %v1583
    %2389 = vmatprep.subr.bf16.mxu0 %v1592
    %2390 = vmatpush1.bf16.msra.mxu0 %v1591
    %2391 = vmatprep.subr.bf16.mxu0 %v1600
    %2392 = vmatpush1.bf16.msra.mxu0 %v1599
    %2393 = vmatprep.subr.bf16.mxu0 %v1608
    %2394 = vmatpush1.bf16.msra.mxu0 %v1607
    %2395 = vmatprep.subr.bf16.mxu0 %v1616
    %2396 = vmatpush1.bf16.msra.mxu0 %v1615
    %2397 = vmatprep.subr.bf16.mxu0 %v1624
    %2398 = vmatpush1.bf16.msra.mxu0 %v1623
    %2399 = vmatprep.subr.bf16.mxu0 %v1632
    %2400 = vmatpush1.bf16.msra.mxu0 %v1631
    %2401 = vmatprep.subr.bf16.mxu0 %v1640
    %2402 = vmatpush1.bf16.msra.mxu0 %v1639
    %2403 = vmatprep.subr.bf16.mxu0 %v1648
    %2404 = vmatpush1.bf16.msra.mxu0 %v1647
    %2405 = vmatprep.subr.bf16.mxu0 %v1656
    %2406 = vmatpush1.bf16.msra.mxu0 %v1655
    %2407 = vmatprep.mubr.bf16.mxu0 %v2290
    %2408 = vmatmul.mubr.bf16.gmra.mrb[0].mxu0 %v2289
    %v2409 = vpop.f32.mrb[0].mxu0
    %v2410 = vadd.f32 0.0, %v2409
    %v2411 = vpop.f32.mrb[0].mxu0
    %v2412 = vadd.f32 0.0, %v2411
    %v2413 = vpop.f32.mrb[0].mxu0
    %v2414 = vpop.f32.mrb[0].mxu0
    %2415 = vdwg.mxu0
    %2416 = vmatprep.subr.bf16.mxu0 %v1538
    %2417 = vmatpush1.bf16.msra.mxu0 %v1537
    %2418 = vmatprep.subr.bf16.mxu0 %v1546
    %2419 = vmatpush1.bf16.msra.mxu0 %v1545
    %2420 = vmatprep.subr.bf16.mxu0 %v1554
    %2421 = vmatpush1.bf16.msra.mxu0 %v1553
    %2422 = vmatprep.subr.bf16.mxu0 %v1562
    %2423 = vmatpush1.bf16.msra.mxu0 %v1561
    %2424 = vmatprep.subr.bf16.mxu0 %v1570
    %2425 = vmatpush1.bf16.msra.mxu0 %v1569
    %2426 = vmatprep.subr.bf16.mxu0 %v1578
    %2427 = vmatpush1.bf16.msra.mxu0 %v1577
    %2428 = vmatprep.subr.bf16.mxu0 %v1586
    %2429 = vmatpush1.bf16.msra.mxu0 %v1585
    %2430 = vmatprep.subr.bf16.mxu0 %v1594
    %2431 = vmatpush1.bf16.msra.mxu0 %v1593
    %2432 = vmatprep.subr.bf16.mxu0 %v1602
    %2433 = vmatpush1.bf16.msra.mxu0 %v1601
    %2434 = vmatprep.subr.bf16.mxu0 %v1610
    %2435 = vmatpush1.bf16.msra.mxu0 %v1609
    %2436 = vmatprep.subr.bf16.mxu0 %v1618
    %2437 = vmatpush1.bf16.msra.mxu0 %v1617
    %2438 = vmatprep.subr.bf16.mxu0 %v1626
    %2439 = vmatpush1.bf16.msra.mxu0 %v1625
    %2440 = vmatprep.subr.bf16.mxu0 %v1634
    %2441 = vmatpush1.bf16.msra.mxu0 %v1633
    %2442 = vmatprep.subr.bf16.mxu0 %v1642
    %2443 = vmatpush1.bf16.msra.mxu0 %v1641
    %2444 = vmatprep.subr.bf16.mxu0 %v1650
    %2445 = vmatpush1.bf16.msra.mxu0 %v1649
    %2446 = vmatprep.subr.bf16.mxu0 %v1658
    %2447 = vmatpush1.bf16.msra.mxu0 %v1657
    %2448 = vmatprep.mubr.bf16.mxu0 %v2290
    %2449 = vmatmul.mubr.bf16.gmra.mrb[0].mxu0 %v2289
    %v2450 = vpop.f32.mrb[0].mxu0
    %v2451 = vadd.f32 0.0, %v2450
    %v2452 = vpop.f32.mrb[0].mxu0
    %v2453 = vadd.f32 0.0, %v2452
    %v2454 = vpop.f32.mrb[0].mxu0
    %v2455 = vpop.f32.mrb[0].mxu0
    %2456 = vdwg.mxu0
    %v2465 = vrot.slane %v2328, 4
    %v2466 = vrot.slane %v2330, 4
    %v2467 = vrot.slane %v2369, 4
    %v2468 = vrot.slane %v2371, 4
    %v2469 = vrot.slane %v2410, 4
    %v2470 = vrot.slane %v2412, 4
    %v2471 = vrot.slane %v2451, 4
    %v2472 = vrot.slane %v2453, 4
    %v2481 = vadd.f32 %v2277, %v2465
    %v2482 = vadd.f32 %v2278, %v2466
    %v2483 = vadd.f32 %v2279, %v2467
    %v2484 = vadd.f32 %v2280, %v2468
    %v2485 = vadd.f32 %v2281, %v2469
    %v2486 = vadd.f32 %v2282, %v2470
    %v2487 = vadd.f32 %v2283, %v2471
    %v2488 = vadd.f32 %v2284, %v2472
    %v2489 = vxor.u32 %v2481, 2147483648
    %v2490 = vxor.u32 %v2482, 2147483648
    %v2491 = vmul.f32 %v2489, 1.442695
    %v2492 = vpow.pop %v2491
    %v2493 = vmul.f32 %v2490, 1.442695
    %v2494 = vpow.pop %v2493
    %v2495 = vadd.f32 %v2492, 1.0
    %v2496 = vadd.f32 %v2494, 1.0
    %v2497 = vrcp.pop %v2495
    %v2498 = vmul.f32 1.0, %v2497
    %v2499 = vrcp.pop %v2496
    %v2500 = vmul.f32 1.0, %v2499
    %v2501 = vxor.u32 %v2483, 2147483648
    %v2502 = vxor.u32 %v2484, 2147483648
    %v2503 = vmul.f32 %v2501, 1.442695
    %v2504 = vpow.pop %v2503
    %v2505 = vmul.f32 %v2502, 1.442695
    %v2506 = vpow.pop %v2505
    %v2507 = vadd.f32 %v2504, 1.0
    %v2508 = vadd.f32 %v2506, 1.0
    %v2509 = vrcp.pop %v2507
    %v2510 = vmul.f32 1.0, %v2509
    %v2511 = vrcp.pop %v2508
    %v2512 = vmul.f32 1.0, %v2511
    %v2513 = vtanh.pop %v2485
    %v2514 = vtanh.pop %v2486
    %v2515 = vxor.u32 %v2487, 2147483648
    %v2516 = vxor.u32 %v2488, 2147483648
    %v2517 = vmul.f32 %v2515, 1.442695
    %v2518 = vpow.pop %v2517
    %v2519 = vmul.f32 %v2516, 1.442695
    %v2520 = vpow.pop %v2519
    %v2521 = vadd.f32 %v2518, 1.0
    %v2522 = vadd.f32 %v2520, 1.0
    %v2523 = vrcp.pop %v2521
    %v2524 = vmul.f32 1.0, %v2523
    %v2525 = vrcp.pop %v2522
    %v2526 = vmul.f32 1.0, %v2525
    %v2529 = vrot.slane %v2263, 6
    %v2530 = vrot.slane %v2264, 6
    %v2533 = vmul.f32 %v2510, %v2529
    %v2534 = vmul.f32 %v2512, %v2530
    %v2535 = vmul.f32 %v2498, %v2513
    %v2536 = vmul.f32 %v2500, %v2514
    %v2537 = vadd.f32 %v2533, %v2535
    %v2538 = vadd.f32 %v2534, %v2536
    %v2539 = vtanh.pop %v2537
    %v2540 = vtanh.pop %v2538
    %v2541 = vmul.f32 %v2524, %v2539
    %v2542 = vmul.f32 %v2526, %v2540
    %v2545 = vrot.slane %v2541, 4
    %v2546 = vrot.slane %v2542, 4
    %v2549 = vadd.f32 %v2275, %v2545
    %v2550 = vadd.f32 %v2276, %v2546
    %v2551 = vld [vmem:[#allocation2] sm:$0xc0]
    %v2552 = vld [vmem:[#allocation2 + $0x8] sm:$0xc0]
    %v2553 = vld [vmem:[#allocation2 + $0x10] sm:$0xc0]
    %v2554 = vld [vmem:[#allocation2 + $0x18] sm:$0xc0]
    %v2555 = vld [vmem:[#allocation2 + $0x20] sm:$0xc0]
    %v2556 = vld [vmem:[#allocation2 + $0x28] sm:$0xc0]
    %v2557 = vld [vmem:[#allocation2 + $0x30] sm:$0xc0]
    %v2558 = vld [vmem:[#allocation2 + $0x38] sm:$0xc0]
    %v2559 = vpack.c.bf16 %v2541, %v2541
    %v2560 = vpack.c.bf16 %v2542, %v2542
    %v2563 = vrot.slane %v2559, 2
    %v2564 = vrot.slane %v2560, 2
    %2567 = vmatprep.subr.bf16.mxu0 %v1532
    %2568 = vmatpush1.bf16.msra.mxu0 %v1531
    %2569 = vmatprep.subr.bf16.mxu0 %v1540
    %2570 = vmatpush1.bf16.msra.mxu0 %v1539
    %2571 = vmatprep.subr.bf16.mxu0 %v1548
    %2572 = vmatpush1.bf16.msra.mxu0 %v1547
    %2573 = vmatprep.subr.bf16.mxu0 %v1556
    %2574 = vmatpush1.bf16.msra.mxu0 %v1555
    %2575 = vmatprep.subr.bf16.mxu0 %v1564
    %2576 = vmatpush1.bf16.msra.mxu0 %v1563
    %2577 = vmatprep.subr.bf16.mxu0 %v1572
    %2578 = vmatpush1.bf16.msra.mxu0 %v1571
    %2579 = vmatprep.subr.bf16.mxu0 %v1580
    %2580 = vmatpush1.bf16.msra.mxu0 %v1579
    %2581 = vmatprep.subr.bf16.mxu0 %v1588
    %2582 = vmatpush1.bf16.msra.mxu0 %v1587
    %2583 = vmatprep.subr.bf16.mxu0 %v1596
    %2584 = vmatpush1.bf16.msra.mxu0 %v1595
    %2585 = vmatprep.subr.bf16.mxu0 %v1604
    %2586 = vmatpush1.bf16.msra.mxu0 %v1603
    %2587 = vmatprep.subr.bf16.mxu0 %v1612
    %2588 = vmatpush1.bf16.msra.mxu0 %v1611
    %2589 = vmatprep.subr.bf16.mxu0 %v1620
    %2590 = vmatpush1.bf16.msra.mxu0 %v1619
    %2591 = vmatprep.subr.bf16.mxu0 %v1628
    %2592 = vmatpush1.bf16.msra.mxu0 %v1627
    %2593 = vmatprep.subr.bf16.mxu0 %v1636
    %2594 = vmatpush1.bf16.msra.mxu0 %v1635
    %2595 = vmatprep.subr.bf16.mxu0 %v1644
    %2596 = vmatpush1.bf16.msra.mxu0 %v1643
    %2597 = vmatprep.subr.bf16.mxu0 %v1652
    %2598 = vmatpush1.bf16.msra.mxu0 %v1651
    %2599 = vmatprep.mubr.bf16.mxu0 %v2564
    %2600 = vmatmul.mubr.bf16.gmra.mrb[0].mxu0 %v2563
    %v2601 = vpop.f32.mrb[0].mxu0
    %v2602 = vadd.f32 0.0, %v2601
    %v2603 = vpop.f32.mrb[0].mxu0
    %v2604 = vadd.f32 0.0, %v2603
    %v2605 = vpop.f32.mrb[0].mxu0
    %v2606 = vpop.f32.mrb[0].mxu0
    %2607 = vdwg.mxu0
    %2608 = vmatprep.subr.bf16.mxu0 %v1534
    %2609 = vmatpush1.bf16.msra.mxu0 %v1533
    %2610 = vmatprep.subr.bf16.mxu0 %v1542
    %2611 = vmatpush1.bf16.msra.mxu0 %v1541
    %2612 = vmatprep.subr.bf16.mxu0 %v1550
    %2613 = vmatpush1.bf16.msra.mxu0 %v1549
    %2614 = vmatprep.subr.bf16.mxu0 %v1558
    %2615 = vmatpush1.bf16.msra.mxu0 %v1557
    %2616 = vmatprep.subr.bf16.mxu0 %v1566
    %2617 = vmatpush1.bf16.msra.mxu0 %v1565
    %2618 = vmatprep.subr.bf16.mxu0 %v1574
    %2619 = vmatpush1.bf16.msra.mxu0 %v1573
    %2620 = vmatprep.subr.bf16.mxu0 %v1582
    %2621 = vmatpush1.bf16.msra.mxu0 %v1581
    %2622 = vmatprep.subr.bf16.mxu0 %v1590
    %2623 = vmatpush1.bf16.msra.mxu0 %v1589
    %2624 = vmatprep.subr.bf16.mxu0 %v1598
    %2625 = vmatpush1.bf16.msra.mxu0 %v1597
    %2626 = vmatprep.subr.bf16.mxu0 %v1606
    %2627 = vmatpush1.bf16.msra.mxu0 %v1605
    %2628 = vmatprep.subr.bf16.mxu0 %v1614
    %2629 = vmatpush1.bf16.msra.mxu0 %v1613
    %2630 = vmatprep.subr.bf16.mxu0 %v1622
    %2631 = vmatpush1.bf16.msra.mxu0 %v1621
    %2632 = vmatprep.subr.bf16.mxu0 %v1630
    %2633 = vmatpush1.bf16.msra.mxu0 %v1629
    %2634 = vmatprep.subr.bf16.mxu0 %v1638
    %2635 = vmatpush1.bf16.msra.mxu0 %v1637
    %2636 = vmatprep.subr.bf16.mxu0 %v1646
    %2637 = vmatpush1.bf16.msra.mxu0 %v1645
    %2638 = vmatprep.subr.bf16.mxu0 %v1654
    %2639 = vmatpush1.bf16.msra.mxu0 %v1653
    %2640 = vmatprep.mubr.bf16.mxu0 %v2564
    %2641 = vmatmul.mubr.bf16.gmra.mrb[0].mxu0 %v2563
    %v2642 = vpop.f32.mrb[0].mxu0
    %v2643 = vadd.f32 0.0, %v2642
    %v2644 = vpop.f32.mrb[0].mxu0
    %v2645 = vadd.f32 0.0, %v2644
    %v2646 = vpop.f32.mrb[0].mxu0
    %v2647 = vpop.f32.mrb[0].mxu0
    %2648 = vdwg.mxu0
    %2649 = vmatprep.subr.bf16.mxu0 %v1536
    %2650 = vmatpush1.bf16.msra.mxu0 %v1535
    %2651 = vmatprep.subr.bf16.mxu0 %v1544
    %2652 = vmatpush1.bf16.msra.mxu0 %v1543
    %2653 = vmatprep.subr.bf16.mxu0 %v1552
    %2654 = vmatpush1.bf16.msra.mxu0 %v1551
    %2655 = vmatprep.subr.bf16.mxu0 %v1560
    %2656 = vmatpush1.bf16.msra.mxu0 %v1559
    %2657 = vmatprep.subr.bf16.mxu0 %v1568
    %2658 = vmatpush1.bf16.msra.mxu0 %v1567
    %2659 = vmatprep.subr.bf16.mxu0 %v1576
    %2660 = vmatpush1.bf16.msra.mxu0 %v1575
    %2661 = vmatprep.subr.bf16.mxu0 %v1584
    %2662 = vmatpush1.bf16.msra.mxu0 %v1583
    %2663 = vmatprep.subr.bf16.mxu0 %v1592
    %2664 = vmatpush1.bf16.msra.mxu0 %v1591
    %2665 = vmatprep.subr.bf16.mxu0 %v1600
    %2666 = vmatpush1.bf16.msra.mxu0 %v1599
    %2667 = vmatprep.subr.bf16.mxu0 %v1608
    %2668 = vmatpush1.bf16.msra.mxu0 %v1607
    %2669 = vmatprep.subr.bf16.mxu0 %v1616
    %2670 = vmatpush1.bf16.msra.mxu0 %v1615
    %2671 = vmatprep.subr.bf16.mxu0 %v1624
    %2672 = vmatpush1.bf16.msra.mxu0 %v1623
    %2673 = vmatprep.subr.bf16.mxu0 %v1632
    %2674 = vmatpush1.bf16.msra.mxu0 %v1631
    %2675 = vmatprep.subr.bf16.mxu0 %v1640
    %2676 = vmatpush1.bf16.msra.mxu0 %v1639
    %2677 = vmatprep.subr.bf16.mxu0 %v1648
    %2678 = vmatpush1.bf16.msra.mxu0 %v1647
    %2679 = vmatprep.subr.bf16.mxu0 %v1656
    %2680 = vmatpush1.bf16.msra.mxu0 %v1655
    %2681 = vmatprep.mubr.bf16.mxu0 %v2564
    %2682 = vmatmul.mubr.bf16.gmra.mrb[0].mxu0 %v2563
    %v2683 = vpop.f32.mrb[0].mxu0
    %v2684 = vadd.f32 0.0, %v2683
    %v2685 = vpop.f32.mrb[0].mxu0
    %v2686 = vadd.f32 0.0, %v2685
    %v2687 = vpop.f32.mrb[0].mxu0
    %v2688 = vpop.f32.mrb[0].mxu0
    %2689 = vdwg.mxu0
    %2690 = vmatprep.subr.bf16.mxu0 %v1538
    %2691 = vmatpush1.bf16.msra.mxu0 %v1537
    %2692 = vmatprep.subr.bf16.mxu0 %v1546
    %2693 = vmatpush1.bf16.msra.mxu0 %v1545
    %2694 = vmatprep.subr.bf16.mxu0 %v1554
    %2695 = vmatpush1.bf16.msra.mxu0 %v1553
    %2696 = vmatprep.subr.bf16.mxu0 %v1562
    %2697 = vmatpush1.bf16.msra.mxu0 %v1561
    %2698 = vmatprep.subr.bf16.mxu0 %v1570
    %2699 = vmatpush1.bf16.msra.mxu0 %v1569
    %2700 = vmatprep.subr.bf16.mxu0 %v1578
    %2701 = vmatpush1.bf16.msra.mxu0 %v1577
    %2702 = vmatprep.subr.bf16.mxu0 %v1586
    %2703 = vmatpush1.bf16.msra.mxu0 %v1585
    %2704 = vmatprep.subr.bf16.mxu0 %v1594
    %2705 = vmatpush1.bf16.msra.mxu0 %v1593
    %2706 = vmatprep.subr.bf16.mxu0 %v1602
    %2707 = vmatpush1.bf16.msra.mxu0 %v1601
    %2708 = vmatprep.subr.bf16.mxu0 %v1610
    %2709 = vmatpush1.bf16.msra.mxu0 %v1609
    %2710 = vmatprep.subr.bf16.mxu0 %v1618
    %2711 = vmatpush1.bf16.msra.mxu0 %v1617
    %2712 = vmatprep.subr.bf16.mxu0 %v1626
    %2713 = vmatpush1.bf16.msra.mxu0 %v1625
    %2714 = vmatprep.subr.bf16.mxu0 %v1634
    %2715 = vmatpush1.bf16.msra.mxu0 %v1633
    %2716 = vmatprep.subr.bf16.mxu0 %v1642
    %2717 = vmatpush1.bf16.msra.mxu0 %v1641
    %2718 = vmatprep.subr.bf16.mxu0 %v1650
    %2719 = vmatpush1.bf16.msra.mxu0 %v1649
    %2720 = vmatprep.subr.bf16.mxu0 %v1658
    %2721 = vmatpush1.bf16.msra.mxu0 %v1657
    %2722 = vmatprep.mubr.bf16.mxu0 %v2564
    %2723 = vmatmul.mubr.bf16.gmra.mrb[0].mxu0 %v2563
    %v2724 = vpop.f32.mrb[0].mxu0
    %v2725 = vadd.f32 0.0, %v2724
    %v2726 = vpop.f32.mrb[0].mxu0
    %v2727 = vadd.f32 0.0, %v2726
    %v2728 = vpop.f32.mrb[0].mxu0
    %v2729 = vpop.f32.mrb[0].mxu0
    %2730 = vdwg.mxu0
    %v2739 = vrot.slane %v2602, 2
    %v2740 = vrot.slane %v2604, 2
    %v2741 = vrot.slane %v2643, 2
    %v2742 = vrot.slane %v2645, 2
    %v2743 = vrot.slane %v2684, 2
    %v2744 = vrot.slane %v2686, 2
    %v2745 = vrot.slane %v2725, 2
    %v2746 = vrot.slane %v2727, 2
    %v2755 = vadd.f32 %v2551, %v2739
    %v2756 = vadd.f32 %v2552, %v2740
    %v2757 = vadd.f32 %v2553, %v2741
    %v2758 = vadd.f32 %v2554, %v2742
    %v2759 = vadd.f32 %v2555, %v2743
    %v2760 = vadd.f32 %v2556, %v2744
    %v2761 = vadd.f32 %v2557, %v2745
    %v2762 = vadd.f32 %v2558, %v2746
    %v2763 = vxor.u32 %v2755, 2147483648
    %v2764 = vxor.u32 %v2756, 2147483648
    %v2765 = vmul.f32 %v2763, 1.442695
    %v2766 = vpow.pop %v2765
    %v2767 = vmul.f32 %v2764, 1.442695
    %v2768 = vpow.pop %v2767
    %v2769 = vadd.f32 %v2766, 1.0
    %v2770 = vadd.f32 %v2768, 1.0
    %v2771 = vrcp.pop %v2769
    %v2772 = vmul.f32 1.0, %v2771
    %v2773 = vrcp.pop %v2770
    %v2774 = vmul.f32 1.0, %v2773
    %v2775 = vxor.u32 %v2757, 2147483648
    %v2776 = vxor.u32 %v2758, 2147483648
    %v2777 = vmul.f32 %v2775, 1.442695
    %v2778 = vpow.pop %v2777
    %v2779 = vmul.f32 %v2776, 1.442695
    %v2780 = vpow.pop %v2779
    %v2781 = vadd.f32 %v2778, 1.0
    %v2782 = vadd.f32 %v2780, 1.0
    %v2783 = vrcp.pop %v2781
    %v2784 = vmul.f32 1.0, %v2783
    %v2785 = vrcp.pop %v2782
    %v2786 = vmul.f32 1.0, %v2785
    %v2787 = vtanh.pop %v2759
    %v2788 = vtanh.pop %v2760
    %v2789 = vxor.u32 %v2761, 2147483648
    %v2790 = vxor.u32 %v2762, 2147483648
    %v2791 = vmul.f32 %v2789, 1.442695
    %v2792 = vpow.pop %v2791
    %v2793 = vmul.f32 %v2790, 1.442695
    %v2794 = vpow.pop %v2793
    %v2795 = vadd.f32 %v2792, 1.0
    %v2796 = vadd.f32 %v2794, 1.0
    %v2797 = vrcp.pop %v2795
    %v2798 = vmul.f32 1.0, %v2797
    %v2799 = vrcp.pop %v2796
    %v2800 = vmul.f32 1.0, %v2799
    %v2803 = vrot.slane %v2537, 6
    %v2804 = vrot.slane %v2538, 6
    %v2807 = vmul.f32 %v2784, %v2803
    %v2808 = vmul.f32 %v2786, %v2804
    %v2809 = vmul.f32 %v2772, %v2787
    %v2810 = vmul.f32 %v2774, %v2788
    %v2811 = vadd.f32 %v2807, %v2809
    %v2812 = vadd.f32 %v2808, %v2810
    %v2813 = vtanh.pop %v2811
    %v2814 = vtanh.pop %v2812
    %v2815 = vmul.f32 %v2798, %v2813
    %v2816 = vmul.f32 %v2800, %v2814
    %v2819 = vrot.slane %v2815, 6
    %v2820 = vrot.slane %v2816, 6
    %v2823 = vadd.f32 %v2549, %v2819
    %v2824 = vadd.f32 %v2550, %v2820
    %v2825 = vmul.f32 %v2823, 0.25
    %v2826 = vmul.f32 %v2824, 0.25
    %v2827 = vld [vmem:[%s4] sm:$0xff]
    %v2828 = vld [vmem:[%s4 + $0x8] sm:$0xff]
    %v2829 = vld [vmem:[%s4 + $0x10] sm:$0xff]
    %v2830 = vld [vmem:[%s4 + $0x18] sm:$0xff]
    %v2831 = vld [vmem:[%s4 + $0x20] sm:$0xff]
    %v2832 = vld [vmem:[%s4 + $0x28] sm:$0xff]
    %v2833 = vld [vmem:[%s4 + $0x30] sm:$0xff]
    %v2834 = vld [vmem:[%s4 + $0x38] sm:$0xff]
    %v2835 = vld [vmem:[%s4 + $0x40] sm:$0xff]
    %v2836 = vld [vmem:[%s4 + $0x48] sm:$0xff]
    %v2837 = vld [vmem:[%s4 + $0x50] sm:$0xff]
    %v2838 = vld [vmem:[%s4 + $0x58] sm:$0xff]
    %v2839 = vld [vmem:[%s4 + $0x60] sm:$0xff]
    %v2840 = vld [vmem:[%s4 + $0x68] sm:$0xff]
    %v2841 = vld [vmem:[%s4 + $0x70] sm:$0xff]
    %v2842 = vld [vmem:[%s4 + $0x78] sm:$0xff]
    %v2843 = vld [vmem:[%s4 + $0x80] sm:$0xff]
    %v2844 = vld [vmem:[%s4 + $0x88] sm:$0xff]
    %v2845 = vld [vmem:[%s4 + $0x90] sm:$0xff]
    %v2846 = vld [vmem:[%s4 + $0x98] sm:$0xff]
    %v2847 = vld [vmem:[%s4 + $0xa0] sm:$0xff]
    %v2848 = vld [vmem:[%s4 + $0xa8] sm:$0xff]
    %v2849 = vld [vmem:[%s4 + $0xb0] sm:$0xff]
    %v2850 = vld [vmem:[%s4 + $0xb8] sm:$0xff]
    %v2851 = vld [vmem:[%s4 + $0xc0] sm:$0xff]
    %v2852 = vld [vmem:[%s4 + $0xc8] sm:$0xff]
    %v2853 = vld [vmem:[%s4 + $0xd0] sm:$0xff]
    %v2854 = vld [vmem:[%s4 + $0xd8] sm:$0xff]
    %v2855 = vld [vmem:[%s4 + $0xe0] sm:$0xff]
    %v2856 = vld [vmem:[%s4 + $0xe8] sm:$0xff]
    %v2857 = vld [vmem:[%s4 + $0xf0] sm:$0xff]
    %v2858 = vld [vmem:[%s4 + $0xf8] sm:$0xff]
    %v2859 = vld [vmem:[%s5] sm:$0x1]
    %v2861 = vlaneseq
    %v2862 = vshrl.u32 %v2861, 7
    %v2863 = vsub.s32 0, %v2862
    %v2864 = vrot.slane %v2859, %v2863
    %2866 = vmatprep.subr.mxu0 0.0
    %2867 = vmatpush1.msra.mxu0 %v2827
    %2868 = vmatprep.subr.mxu0 0.0
    %2869 = vmatpush1.msra.mxu0 %v2828
    %2870 = vmatprep.subr.mxu0 0.0
    %2871 = vmatpush1.msra.mxu0 %v2829
    %2872 = vmatprep.subr.mxu0 0.0
    %2873 = vmatpush1.msra.mxu0 %v2830
    %2874 = vmatprep.subr.mxu0 0.0
    %2875 = vmatpush1.msra.mxu0 %v2831
    %2876 = vmatprep.subr.mxu0 0.0
    %2877 = vmatpush1.msra.mxu0 %v2832
    %2878 = vmatprep.subr.mxu0 0.0
    %2879 = vmatpush1.msra.mxu0 %v2833
    %2880 = vmatprep.subr.mxu0 0.0
    %2881 = vmatpush1.msra.mxu0 %v2834
    %2882 = vmatprep.subr.mxu0 0.0
    %2883 = vmatpush1.msra.mxu0 %v2835
    %2884 = vmatprep.subr.mxu0 0.0
    %2885 = vmatpush1.msra.mxu0 %v2836
    %2886 = vmatprep.subr.mxu0 0.0
    %2887 = vmatpush1.msra.mxu0 %v2837
    %2888 = vmatprep.subr.mxu0 0.0
    %2889 = vmatpush1.msra.mxu0 %v2838
    %2890 = vmatprep.subr.mxu0 0.0
    %2891 = vmatpush1.msra.mxu0 %v2839
    %2892 = vmatprep.subr.mxu0 0.0
    %2893 = vmatpush1.msra.mxu0 %v2840
    %2894 = vmatprep.subr.mxu0 0.0
    %2895 = vmatpush1.msra.mxu0 %v2841
    %2896 = vmatprep.subr.mxu0 0.0
    %2897 = vmatpush1.msra.mxu0 %v2842
    %2898 = vmatprep.subr.mxu0 0.0
    %2899 = vmatpush1.msra.mxu0 %v2843
    %2900 = vmatprep.subr.mxu0 0.0
    %2901 = vmatpush1.msra.mxu0 %v2844
    %2902 = vmatprep.subr.mxu0 0.0
    %2903 = vmatpush1.msra.mxu0 %v2845
    %2904 = vmatprep.subr.mxu0 0.0
    %2905 = vmatpush1.msra.mxu0 %v2846
    %2906 = vmatprep.subr.mxu0 0.0
    %2907 = vmatpush1.msra.mxu0 %v2847
    %2908 = vmatprep.subr.mxu0 0.0
    %2909 = vmatpush1.msra.mxu0 %v2848
    %2910 = vmatprep.subr.mxu0 0.0
    %2911 = vmatpush1.msra.mxu0 %v2849
    %2912 = vmatprep.subr.mxu0 0.0
    %2913 = vmatpush1.msra.mxu0 %v2850
    %2914 = vmatprep.subr.mxu0 0.0
    %2915 = vmatpush1.msra.mxu0 %v2851
    %2916 = vmatprep.subr.mxu0 0.0
    %2917 = vmatpush1.msra.mxu0 %v2852
    %2918 = vmatprep.subr.mxu0 0.0
    %2919 = vmatpush1.msra.mxu0 %v2853
    %2920 = vmatprep.subr.mxu0 0.0
    %2921 = vmatpush1.msra.mxu0 %v2854
    %2922 = vmatprep.subr.mxu0 0.0
    %2923 = vmatpush1.msra.mxu0 %v2855
    %2924 = vmatprep.subr.mxu0 0.0
    %2925 = vmatpush1.msra.mxu0 %v2856
    %2926 = vmatprep.subr.mxu0 0.0
    %2927 = vmatpush1.msra.mxu0 %v2857
    %2928 = vmatprep.subr.mxu0 0.0
    %2929 = vmatpush1.msra.mxu0 %v2858
    %2930 = vmatprep.mubr.f32.mxu0 %v2826
    %2931 = vmatmul.mubr.f32.gmra.mrb[0].mxu0 %v2825
    %v2932 = vpop.f32.mrb[0].mxu0
    %v2933 = vadd.f32 %v2864, %v2932
    %v2934 = vpop.f32.mrb[0].mxu0
    %2935 = vdwg.mxu0
    %vm2936 = vcmask 9216
    %2937 = vst.msk [vmem:[#allocation3] sm:$0x3] %vm2936, %v2933
    // Predicated region
    $region26: #{model_forward.3} parent=1 // pred_check
      _
    $region27: #{model_forward.3} parent=1 // pred_check_branch
      %2939 = sbr.rel (0) target = $region29
    $region28: #{model_forward.3} parent=1 // pred_region
      %s2941 = ssub.s32 32, 32
      %2942 = vsyncadd [#allocation4], %s2941
      %s2944 = sshll.u32 [#allocation3], 4
      %s2945 = int_to_ptr.vmem [resolvable:$true] %s2944
      %2947 = dma.vmem_to_hbm [thread:$0]  %s2945, 32, %s6, [#allocation4]
    $region29: #{model_forward.3} parent=1 // pred_fallthru
      _
    // Predicated region
    $region30: #{model_forward.3} parent=1 // pred_check
      _
    $region31: #{model_forward.3} parent=1 // pred_check_branch
      %2949 = sbr.rel (0) target = $region33
    $region32: #{model_forward.3} parent=1 // pred_region
      %2950 = dma.done [#allocation4], 32
    $region33: #{model_forward.3} parent=1 // pred_fallthru
      _
    %2951 = vsyncpa [#allocation4], 1

</llo_original>
